<compile_context>
chip_gen: v7x
topology: tpu7x:2x2x1
jax: 0.10.0
libtpu: 0.0.40
codegen_flags: <defaults>
</compile_context>

<pallas_src>
import functools

import jax
import jax.numpy as jnp
from jax.experimental import pallas as pl
from jax.experimental.pallas import tpu as pltpu

BP = 8  # padded batch rows (one sublane tile)


def _round_up(n, m):
    return (n + m - 1) // m * m


# ----------------------------------------------------------------------------- kernel


def four_dir_lstm_kernel(xc_ref, w_ref, state_ref, out_ref, gx_ref,
                         *, T_lr, T_ud, B, H, K):
    """Merged four-directional LSTM recurrence.

    xc_ref    : (T*BP, K)      bf16  packed per-step inputs (+ ones bias column)
    w_ref     : (K + 4H, 16H)  bf16  rows [0:K)   = wih_comb (bias row folded in)
                                     rows [K:K+4H)= whh_comb (block-diagonal)
    state_ref : (2*BP, 4H)     f32   rows [0:BP)=h0, [BP:2BP)=c0,
                                     lanes [lr_fw | lr_bw | ud_fw | ud_bw]
    out_ref   : (B, 4H)        f32   [h_lr_fw | h_lr_bw | h_ud_fw | h_ud_bw]
    gx_ref    : (T*BP, 16H)    f32   VMEM scratch for the hoisted projection
    """
    T = max(T_lr, T_ud)
    H4 = 4 * H          # combined hidden width (= recurrent matmul K)

    # Hoisted input projection: ONE MXU matmul covers every timestep, both
    # layers, both directions; the ones-column picks up bias_ih + bias_hh.
    # Parked in VMEM scratch so the unrolled recurrence is not forced to keep
    # the whole (T*BP, 16H) result live in vregs.
    gx_ref[...] = jnp.dot(xc_ref[...], w_ref[0:K, :],
                          preferred_element_type=jnp.float32)

    h = state_ref[0:BP, :]          # (BP, 4H) f32
    c = state_ref[BP:2 * BP, :]     # (BP, 4H) f32

    if T_lr != T_ud:
        lane = jax.lax.broadcasted_iota(jnp.int32, (BP, H4), dimension=1)
        lr_lanes = lane < 2 * H     # lanes owned by the LR layer

    # Fully unrolled merged recurrence: one (BP,4H)@(4H,16H) matmul + 3 EUP
    # pushes (sigmoid over [i|f|o], tanh(g), tanh(c)) per step on the chain.
    for t in range(T):
        whh = w_ref[K:K + H4, :]                                   # (4H, 16H) bf16
        gates = gx_ref[t * BP:(t + 1) * BP, :] + jnp.dot(
            h.astype(jnp.bfloat16), whh, preferred_element_type=jnp.float32)
        sig = jax.nn.sigmoid(gates[:, 0:3 * H4])                   # [i | f | o]
        i_g = sig[:, 0:H4]
        f_g = sig[:, H4:2 * H4]
        o_g = sig[:, 2 * H4:3 * H4]
        g_g = jnp.tanh(gates[:, 3 * H4:4 * H4])
        c_new = f_g * c + i_g * g_g
        h_new = o_g * jnp.tanh(c_new)
        if t < T_lr and t < T_ud:                                  # both layers active
            c, h = c_new, h_new
        else:                                                      # freeze finished layer
            upd = lr_lanes if t < T_lr else jnp.logical_not(lr_lanes)
            c = jnp.where(upd, c_new, c)
            h = jnp.where(upd, h_new, h)

    # Single lane-dense (B, 4H) store, already in the module's concat order.
    out_ref[...] = h[0:B, :]


# ----------------------------------------------------------------------------- weight packing (once, at init)


def _reorder_ifgo(w, H):
    """Gate columns [i,f,g,o] -> [i,f,o,g] (sigmoid gates contiguous)."""
    return jnp.concatenate([w[:, 0:2 * H], w[:, 3 * H:4 * H], w[:, 2 * H:3 * H]],
                           axis=1)


def _place(w_ifog, slot, H):
    """(R, 4H) per-direction matrix -> (R, 16H) combined layout.

    Combined gate columns: [i_lrfw i_lrbw i_udfw i_udbw | f_... | o_... | g_...],
    i.e. output column q*4H + slot*H + j  <-  w_ifog[:, q*H + j].
    """
    R = w_ifog.shape[0]
    blocks = w_ifog.reshape(R, 4, H)
    full = jnp.zeros((R, 4, 4, H), w_ifog.dtype).at[:, :, slot, :].set(blocks)
    return full.reshape(R, 16 * H)


def pack_four_dir_lstm_weights(params_lr, params_ud, seq_size, feat_size, H):
    """Build the (K + 4H, 16H) bf16 weight slab.  Call ONCE at init."""
    D_lr, D_ud = feat_size, seq_size
    K = _round_up(2 * D_lr + 2 * D_ud + 1, 128)    # + ones/bias column

    def pieces(p):
        return tuple(_reorder_ifgo(p[k], H)
                     for k in ("wih_fw", "whh_fw", "b_fw", "wih_bw", "whh_bw", "b_bw"))

    wih_lrf, whh_lrf, b_lrf, wih_lrb, whh_lrb, b_lrb = pieces(params_lr)
    wih_udf, whh_udf, b_udf, wih_udb, whh_udb, b_udb = pieces(params_ud)

    wih = jnp.zeros((K, 16 * H), jnp.float32)
    r = 0
    for w, slot in ((wih_lrf, 0), (wih_lrb, 1), (wih_udf, 2), (wih_udb, 3)):
        wih = wih.at[r:r + w.shape[0]].set(_place(w, slot, H))
        r += w.shape[0]
    bias = (_place(b_lrf, 0, H) + _place(b_lrb, 1, H)
            + _place(b_udf, 2, H) + _place(b_udb, 3, H))           # (1, 16H)
    wih = wih.at[r:r + 1].set(bias)      # picked up by the ones-column of xc

    whh = jnp.concatenate([_place(whh_lrf, 0, H), _place(whh_lrb, 1, H),
                           _place(whh_udf, 2, H), _place(whh_udb, 3, H)], axis=0)
    return jnp.concatenate([wih, whh], axis=0).astype(jnp.bfloat16), K


def pack_four_dir_lstm_state(hidden_lr, hidden_ud, B, H):
    """Per-layer torch (h0, c0) of shape (2,B,H) -> (2*BP, 4H) f32 state slab."""
    def pack(h_lr, h_ud):
        hc = jnp.concatenate([h_lr[0], h_lr[1], h_ud[0], h_ud[1]], axis=1)  # (B, 4H)
        return jnp.pad(hc, ((0, BP - B), (0, 0)))
    h0 = pack(hidden_lr[0], hidden_ud[0])
    c0 = pack(hidden_lr[1], hidden_ud[1])
    return jnp.concatenate([h0, c0], axis=0).astype(jnp.float32)


# ----------------------------------------------------------------------------- forward (jitted: input packing + kernel)


def _pack_inputs(x, seq_size, feat_size, K):
    """(B, seq*feat) -> (T*BP, K) bf16; row block t = [x_lr[t]|x_lr[T-1-t]|x_ud[t]|x_ud[T-1-t]|1|0..]."""
    B = x.shape[0]
    T_lr, D_lr = seq_size, feat_size
    T_ud, D_ud = feat_size, seq_size
    T = max(T_lr, T_ud)
    x_rl = x.reshape(B, T_lr, D_lr)
    x_ud = jnp.transpose(x_rl, (0, 2, 1))
    x_rl_t = jnp.transpose(x_rl, (1, 0, 2))   # (T_lr, B, D_lr)
    x_ud_t = jnp.transpose(x_ud, (1, 0, 2))   # (T_ud, B, D_ud)

    def pad_t(a):
        return jnp.pad(a, ((0, T - a.shape[0]), (0, 0), (0, 0)))

    rows = jnp.concatenate(
        [pad_t(x_rl_t), pad_t(x_rl_t[::-1]),
         pad_t(x_ud_t), pad_t(x_ud_t[::-1]),
         jnp.ones((T, B, 1), x.dtype)], axis=-1)       # (T, B, 2*D_lr+2*D_ud+1)
    rows = jnp.pad(rows, ((0, 0), (0, BP - B), (0, K - rows.shape[-1])))
    return rows.reshape(T * BP, K).astype(jnp.bfloat16)


@functools.partial(jax.jit, static_argnums=(3, 4, 5, 6))
def four_directional_lstm(x, w_slab, state0, seq_size, feat_size, hidden_size, K):
    B = x.shape[0]
    H = hidden_size
    T = max(seq_size, feat_size)
    assert B <= BP and w_slab.shape == (K + 4 * H, 16 * H)

    xc = _pack_inputs(x, seq_size, feat_size, K)

    kernel = functools.partial(four_dir_lstm_kernel, T_lr=seq_size,
                               T_ud=feat_size, B=B, H=H, K=K)
    vmem = pl.BlockSpec(memory_space=pltpu.MemorySpace.VMEM)
    flops = 2 * (T * BP) * K * 16 * H + 2 * T * BP * 4 * H * 16 * H
    return pl.pallas_call(
        kernel,
        out_shape=jax.ShapeDtypeStruct((B, 4 * H), jnp.float32),
        in_specs=[vmem, vmem, vmem],
        out_specs=vmem,
        scratch_shapes=[pltpu.VMEM((T * BP, 16 * H), jnp.float32)],
        cost_estimate=pl.CostEstimate(
            flops=flops,
            transcendentals=T * BP * 20 * H,
            bytes_accessed=xc.size * 2 + w_slab.size * 2 + state0.size * 4
                           + B * 4 * H * 4),
    )(xc, w_slab, state0)


# ----------------------------------------------------------------------------- params (PyTorch nn.LSTM default init)


def init_lstm_params(key, input_size, hidden_size):
    """PyTorch nn.LSTM default init: U(-1/sqrt(H), 1/sqrt(H)); gate order [i,f,g,o]."""
    k = 1.0 / float(hidden_size) ** 0.5
    keys = jax.random.split(key, 8)

    def u(kk, shape):
        return jax.random.uniform(kk, shape, jnp.float32, minval=-k, maxval=k)

    H4 = 4 * hidden_size
    # PyTorch stores weight_ih as (4H, D) / weight_hh as (4H, H); transposed here
    # so the matmul is x_t @ W.  Gate column blocks: [i, f, g, o].
    return {
        "wih_fw": u(keys[0], (H4, input_size)).T,
        "whh_fw": u(keys[1], (H4, hidden_size)).T,
        "b_fw": (u(keys[2], (H4,)) + u(keys[3], (H4,)))[None, :],
        "wih_bw": u(keys[4], (H4, input_size)).T,
        "whh_bw": u(keys[5], (H4, hidden_size)).T,
        "b_bw": (u(keys[6], (H4,)) + u(keys[7], (H4,)))[None, :],
    }


# ----------------------------------------------------------------------------- pure-JAX f32 reference


def _lstm_dir_ref(x_tbd, wih, whh, b, h0, c0, H):
    h, c = h0, c0
    for t in range(x_tbd.shape[0]):
        a = x_tbd[t] @ wih + h @ whh + b
        i = jax.nn.sigmoid(a[:, 0:H])
        f = jax.nn.sigmoid(a[:, H:2 * H])
        g = jnp.tanh(a[:, 2 * H:3 * H])
        o = jax.nn.sigmoid(a[:, 3 * H:4 * H])
        c = f * c + i * g
        h = o * jnp.tanh(c)
    return h


def four_dir_lstm_reference(x, params_lr, params_ud, hidden_lr, hidden_ud,
                            seq_size, feat_size, H):
    B = x.shape[0]
    x_rl = x.reshape(B, seq_size, feat_size)
    x_ud = jnp.transpose(x_rl, (0, 2, 1))

    def bidir(x_btd, p, hidden):
        h0, c0 = hidden
        xt = jnp.transpose(x_btd, (1, 0, 2))
        h_fw = _lstm_dir_ref(xt, p["wih_fw"], p["whh_fw"], p["b_fw"], h0[0], c0[0], H)
        h_bw = _lstm_dir_ref(xt[::-1], p["wih_bw"], p["whh_bw"], p["b_bw"], h0[1], c0[1], H)
        return h_fw, h_bw

    lf, lb = bidir(x_rl, params_lr, hidden_lr)
    uf, ub = bidir(x_ud, params_ud, hidden_ud)
    return jnp.concatenate([lf, lb, uf, ub], axis=1)


# ----------------------------------------------------------------------------- main


if __name__ == "__main__":
    # Module config (consistent with the forward pass):
    seq_size = 8
    origin_feat_size = 128
    hidden_size = 32
    feat_size = origin_feat_size // seq_size   # 16
    batch = 2

    root = jax.random.PRNGKey(0)
    k_x, k_lr, k_ud, k_h = jax.random.split(root, 4)

    params_lr = init_lstm_params(k_lr, feat_size, hidden_size)   # lstm_rightleft
    params_ud = init_lstm_params(k_ud, seq_size, hidden_size)    # lstm_downup

    # init_hidden_ uses torch.randn each forward; generated deterministically here.
    kh = jax.random.split(k_h, 4)
    hidden_lr = (jax.random.normal(kh[0], (2, batch, hidden_size), jnp.float32),
                 jax.random.normal(kh[1], (2, batch, hidden_size), jnp.float32))
    hidden_ud = (jax.random.normal(kh[2], (2, batch, hidden_size), jnp.float32),
                 jax.random.normal(kh[3], (2, batch, hidden_size), jnp.float32))

    x = jax.random.normal(k_x, (batch, origin_feat_size), jnp.float32)

    # One-time packing (off the per-forward path).
    w_slab, K = pack_four_dir_lstm_weights(params_lr, params_ud,
                                           seq_size, feat_size, hidden_size)
    state0 = pack_four_dir_lstm_state(hidden_lr, hidden_ud, batch, hidden_size)

    out = four_directional_lstm(x, w_slab, state0,
                                seq_size, feat_size, hidden_size, K)
    out = jax.block_until_ready(out)

    assert out.shape == (batch, 4 * hidden_size), out.shape
    assert bool(jnp.all(jnp.isfinite(out)))

    ref = four_dir_lstm_reference(x, params_lr, params_ud, hidden_lr, hidden_ud,
                                  seq_size, feat_size, hidden_size)
    err = float(jnp.max(jnp.abs(out - ref)))
    assert err < 3e-2, f"max |kernel - f32 reference| = {err}"
    print("KERNEL_OK")
</pallas_src>

<mosaic_0001>
module attributes {stable_mosaic.version = 11 : i64} {
  func.func @four_dir_lstm_kernel(%arg0: memref<128x128xbf16, #tpu.memory_space<vmem>>, %arg1: memref<256x512xbf16, #tpu.memory_space<vmem>>, %arg2: memref<16x128xf32, #tpu.memory_space<vmem>>, %arg3: memref<2x128xf32, #tpu.memory_space<vmem>>, %arg4: memref<128x512xf32, #tpu.memory_space<vmem>>) attributes {dimension_semantics = [], scalar_prefetch = 0 : i64, scratch_operands = 1 : i64, tpu.core_type = #tpu.core_type<tc>} {
    %c0 = arith.constant 0 : index
    %c0_0 = arith.constant 0 : index
    %0 = vector.load %arg0[%c0, %c0_0] : memref<128x128xbf16, #tpu.memory_space<vmem>>, vector<128x128xbf16>
    %c0_1 = arith.constant 0 : index
    %c0_2 = arith.constant 0 : index
    %1 = vector.load %arg1[%c0_1, %c0_2] : memref<256x512xbf16, #tpu.memory_space<vmem>>, vector<128x512xbf16>
    %cst = arith.constant dense<0.000000e+00> : vector<128x512xf32>
    %2 = tpu.matmul %0, %1, %cst {dimension_numbers = #tpu.dot_dimension_numbers<[1], [0], [0], [1], [0, 0, 1, 1], [], []>} : vector<128x128xbf16>, vector<128x512xbf16>, vector<128x512xf32> -> vector<128x512xf32>
    %c0_3 = arith.constant 0 : index
    %c0_4 = arith.constant 0 : index
    %3 = vector.load %arg4[%c0_3, %c0_4] : memref<128x512xf32, #tpu.memory_space<vmem>>, vector<128x512xf32>
    tpu.vector_store %arg4[%c0_3, %c0_4], %2 {strides = array<i32>} : memref<128x512xf32, #tpu.memory_space<vmem>>, vector<128x512xf32>,
    %c0_5 = arith.constant 0 : index
    %c0_6 = arith.constant 0 : index
    %4 = vector.load %arg2[%c0_5, %c0_6] : memref<16x128xf32, #tpu.memory_space<vmem>>, vector<8x128xf32>
    %c8 = arith.constant 8 : index
    %c0_7 = arith.constant 0 : index
    %5 = vector.load %arg2[%c8, %c0_7] : memref<16x128xf32, #tpu.memory_space<vmem>>, vector<8x128xf32>
    %6 = tpu.iota {dimensions = array<i32: 1>} : vector<8x128xi32>
    %c64_i32 = arith.constant 64 : i32
    %7 = vector.broadcast %c64_i32 : i32 to vector<8x128xi32>
    %8 = arith.cmpi slt, %6, %7 : vector<8x128xi32>
    %c128 = arith.constant 128 : index
    %c0_8 = arith.constant 0 : index
    %9 = vector.load %arg1[%c128, %c0_8] : memref<256x512xbf16, #tpu.memory_space<vmem>>, vector<128x512xbf16>
    %c0_9 = arith.constant 0 : index
    %c0_10 = arith.constant 0 : index
    %10 = vector.load %arg4[%c0_9, %c0_10] : memref<128x512xf32, #tpu.memory_space<vmem>>, vector<8x512xf32>
    %11 = arith.truncf %4 : vector<8x128xf32> to vector<8x128xbf16>
    %cst_11 = arith.constant dense<0.000000e+00> : vector<8x512xf32>
    %12 = tpu.matmul %11, %9, %cst_11 {dimension_numbers = #tpu.dot_dimension_numbers<[1], [0], [0], [1], [0, 0, 1, 1], [], []>} : vector<8x128xbf16>, vector<128x512xbf16>, vector<8x512xf32> -> vector<8x512xf32>
    %13 = arith.addf %10, %12 : vector<8x512xf32>
    %14 = vector.extract_strided_slice %13 {offsets = [0, 0], sizes = [8, 384], strides = [1, 1]} : vector<8x512xf32> to vector<8x384xf32>
    %15 = arith.negf %14 : vector<8x384xf32>
    %16 = math.exp %15 : vector<8x384xf32>
    %cst_12 = arith.constant 1.000000e+00 : f32
    %17 = vector.broadcast %cst_12 : f32 to vector<8x384xf32>
    %18 = arith.addf %17, %16 : vector<8x384xf32>
    %19 = arith.divf %17, %18 : vector<8x384xf32>
    %20 = vector.extract_strided_slice %19 {offsets = [0, 0], sizes = [8, 128], strides = [1, 1]} : vector<8x384xf32> to vector<8x128xf32>
    %21 = vector.extract_strided_slice %19 {offsets = [0, 128], sizes = [8, 128], strides = [1, 1]} : vector<8x384xf32> to vector<8x128xf32>
    %22 = vector.extract_strided_slice %19 {offsets = [0, 256], sizes = [8, 128], strides = [1, 1]} : vector<8x384xf32> to vector<8x128xf32>
    %23 = vector.extract_strided_slice %13 {offsets = [0, 384], sizes = [8, 128], strides = [1, 1]} : vector<8x512xf32> to vector<8x128xf32>
    %24 = math.tanh %23 : vector<8x128xf32>
    %25 = arith.mulf %21, %5 : vector<8x128xf32>
    %26 = arith.mulf %20, %24 : vector<8x128xf32>
    %27 = arith.addf %25, %26 : vector<8x128xf32>
    %28 = math.tanh %27 : vector<8x128xf32>
    %29 = arith.mulf %22, %28 : vector<8x128xf32>
    %c128_13 = arith.constant 128 : index
    %c0_14 = arith.constant 0 : index
    %30 = vector.load %arg1[%c128_13, %c0_14] : memref<256x512xbf16, #tpu.memory_space<vmem>>, vector<128x512xbf16>
    %c8_15 = arith.constant 8 : index
    %c0_16 = arith.constant 0 : index
    %31 = vector.load %arg4[%c8_15, %c0_16] : memref<128x512xf32, #tpu.memory_space<vmem>>, vector<8x512xf32>
    %32 = arith.truncf %29 : vector<8x128xf32> to vector<8x128xbf16>
    %cst_17 = arith.constant dense<0.000000e+00> : vector<8x512xf32>
    %33 = tpu.matmul %32, %30, %cst_17 {dimension_numbers = #tpu.dot_dimension_numbers<[1], [0], [0], [1], [0, 0, 1, 1], [], []>} : vector<8x128xbf16>, vector<128x512xbf16>, vector<8x512xf32> -> vector<8x512xf32>
    %34 = arith.addf %31, %33 : vector<8x512xf32>
    %35 = vector.extract_strided_slice %34 {offsets = [0, 0], sizes = [8, 384], strides = [1, 1]} : vector<8x512xf32> to vector<8x384xf32>
    %36 = arith.negf %35 : vector<8x384xf32>
    %37 = math.exp %36 : vector<8x384xf32>
    %cst_18 = arith.constant 1.000000e+00 : f32
    %38 = vector.broadcast %cst_18 : f32 to vector<8x384xf32>
    %39 = arith.addf %38, %37 : vector<8x384xf32>
    %40 = arith.divf %38, %39 : vector<8x384xf32>
    %41 = vector.extract_strided_slice %40 {offsets = [0, 0], sizes = [8, 128], strides = [1, 1]} : vector<8x384xf32> to vector<8x128xf32>
    %42 = vector.extract_strided_slice %40 {offsets = [0, 128], sizes = [8, 128], strides = [1, 1]} : vector<8x384xf32> to vector<8x128xf32>
    %43 = vector.extract_strided_slice %40 {offsets = [0, 256], sizes = [8, 128], strides = [1, 1]} : vector<8x384xf32> to vector<8x128xf32>
    %44 = vector.extract_strided_slice %34 {offsets = [0, 384], sizes = [8, 128], strides = [1, 1]} : vector<8x512xf32> to vector<8x128xf32>
    %45 = math.tanh %44 : vector<8x128xf32>
    %46 = arith.mulf %42, %27 : vector<8x128xf32>
    %47 = arith.mulf %41, %45 : vector<8x128xf32>
    %48 = arith.addf %46, %47 : vector<8x128xf32>
    %49 = math.tanh %48 : vector<8x128xf32>
    %50 = arith.mulf %43, %49 : vector<8x128xf32>
    %c128_19 = arith.constant 128 : index
    %c0_20 = arith.constant 0 : index
    %51 = vector.load %arg1[%c128_19, %c0_20] : memref<256x512xbf16, #tpu.memory_space<vmem>>, vector<128x512xbf16>
    %c16 = arith.constant 16 : index
    %c0_21 = arith.constant 0 : index
    %52 = vector.load %arg4[%c16, %c0_21] : memref<128x512xf32, #tpu.memory_space<vmem>>, vector<8x512xf32>
    %53 = arith.truncf %50 : vector<8x128xf32> to vector<8x128xbf16>
    %cst_22 = arith.constant dense<0.000000e+00> : vector<8x512xf32>
    %54 = tpu.matmul %53, %51, %cst_22 {dimension_numbers = #tpu.dot_dimension_numbers<[1], [0], [0], [1], [0, 0, 1, 1], [], []>} : vector<8x128xbf16>, vector<128x512xbf16>, vector<8x512xf32> -> vector<8x512xf32>
    %55 = arith.addf %52, %54 : vector<8x512xf32>
    %56 = vector.extract_strided_slice %55 {offsets = [0, 0], sizes = [8, 384], strides = [1, 1]} : vector<8x512xf32> to vector<8x384xf32>
    %57 = arith.negf %56 : vector<8x384xf32>
    %58 = math.exp %57 : vector<8x384xf32>
    %cst_23 = arith.constant 1.000000e+00 : f32
    %59 = vector.broadcast %cst_23 : f32 to vector<8x384xf32>
    %60 = arith.addf %59, %58 : vector<8x384xf32>
    %61 = arith.divf %59, %60 : vector<8x384xf32>
    %62 = vector.extract_strided_slice %61 {offsets = [0, 0], sizes = [8, 128], strides = [1, 1]} : vector<8x384xf32> to vector<8x128xf32>
    %63 = vector.extract_strided_slice %61 {offsets = [0, 128], sizes = [8, 128], strides = [1, 1]} : vector<8x384xf32> to vector<8x128xf32>
    %64 = vector.extract_strided_slice %61 {offsets = [0, 256], sizes = [8, 128], strides = [1, 1]} : vector<8x384xf32> to vector<8x128xf32>
    %65 = vector.extract_strided_slice %55 {offsets = [0, 384], sizes = [8, 128], strides = [1, 1]} : vector<8x512xf32> to vector<8x128xf32>
    %66 = math.tanh %65 : vector<8x128xf32>
    %67 = arith.mulf %63, %48 : vector<8x128xf32>
    %68 = arith.mulf %62, %66 : vector<8x128xf32>
    %69 = arith.addf %67, %68 : vector<8x128xf32>
    %70 = math.tanh %69 : vector<8x128xf32>
    %71 = arith.mulf %64, %70 : vector<8x128xf32>
    %c128_24 = arith.constant 128 : index
    %c0_25 = arith.constant 0 : index
    %72 = vector.load %arg1[%c128_24, %c0_25] : memref<256x512xbf16, #tpu.memory_space<vmem>>, vector<128x512xbf16>
    %c24 = arith.constant 24 : index
    %c0_26 = arith.constant 0 : index
    %73 = vector.load %arg4[%c24, %c0_26] : memref<128x512xf32, #tpu.memory_space<vmem>>, vector<8x512xf32>
    %74 = arith.truncf %71 : vector<8x128xf32> to vector<8x128xbf16>
    %cst_27 = arith.constant dense<0.000000e+00> : vector<8x512xf32>
    %75 = tpu.matmul %74, %72, %cst_27 {dimension_numbers = #tpu.dot_dimension_numbers<[1], [0], [0], [1], [0, 0, 1, 1], [], []>} : vector<8x128xbf16>, vector<128x512xbf16>, vector<8x512xf32> -> vector<8x512xf32>
    %76 = arith.addf %73, %75 : vector<8x512xf32>
    %77 = vector.extract_strided_slice %76 {offsets = [0, 0], sizes = [8, 384], strides = [1, 1]} : vector<8x512xf32> to vector<8x384xf32>
    %78 = arith.negf %77 : vector<8x384xf32>
    %79 = math.exp %78 : vector<8x384xf32>
    %cst_28 = arith.constant 1.000000e+00 : f32
    %80 = vector.broadcast %cst_28 : f32 to vector<8x384xf32>
    %81 = arith.addf %80, %79 : vector<8x384xf32>
    %82 = arith.divf %80, %81 : vector<8x384xf32>
    %83 = vector.extract_strided_slice %82 {offsets = [0, 0], sizes = [8, 128], strides = [1, 1]} : vector<8x384xf32> to vector<8x128xf32>
    %84 = vector.extract_strided_slice %82 {offsets = [0, 128], sizes = [8, 128], strides = [1, 1]} : vector<8x384xf32> to vector<8x128xf32>
    %85 = vector.extract_strided_slice %82 {offsets = [0, 256], sizes = [8, 128], strides = [1, 1]} : vector<8x384xf32> to vector<8x128xf32>
    %86 = vector.extract_strided_slice %76 {offsets = [0, 384], sizes = [8, 128], strides = [1, 1]} : vector<8x512xf32> to vector<8x128xf32>
    %87 = math.tanh %86 : vector<8x128xf32>
    %88 = arith.mulf %84, %69 : vector<8x128xf32>
    %89 = arith.mulf %83, %87 : vector<8x128xf32>
    %90 = arith.addf %88, %89 : vector<8x128xf32>
    %91 = math.tanh %90 : vector<8x128xf32>
    %92 = arith.mulf %85, %91 : vector<8x128xf32>
    %c128_29 = arith.constant 128 : index
    %c0_30 = arith.constant 0 : index
    %93 = vector.load %arg1[%c128_29, %c0_30] : memref<256x512xbf16, #tpu.memory_space<vmem>>, vector<128x512xbf16>
    %c32 = arith.constant 32 : index
    %c0_31 = arith.constant 0 : index
    %94 = vector.load %arg4[%c32, %c0_31] : memref<128x512xf32, #tpu.memory_space<vmem>>, vector<8x512xf32>
    %95 = arith.truncf %92 : vector<8x128xf32> to vector<8x128xbf16>
    %cst_32 = arith.constant dense<0.000000e+00> : vector<8x512xf32>
    %96 = tpu.matmul %95, %93, %cst_32 {dimension_numbers = #tpu.dot_dimension_numbers<[1], [0], [0], [1], [0, 0, 1, 1], [], []>} : vector<8x128xbf16>, vector<128x512xbf16>, vector<8x512xf32> -> vector<8x512xf32>
    %97 = arith.addf %94, %96 : vector<8x512xf32>
    %98 = vector.extract_strided_slice %97 {offsets = [0, 0], sizes = [8, 384], strides = [1, 1]} : vector<8x512xf32> to vector<8x384xf32>
    %99 = arith.negf %98 : vector<8x384xf32>
    %100 = math.exp %99 : vector<8x384xf32>
    %cst_33 = arith.constant 1.000000e+00 : f32
    %101 = vector.broadcast %cst_33 : f32 to vector<8x384xf32>
    %102 = arith.addf %101, %100 : vector<8x384xf32>
    %103 = arith.divf %101, %102 : vector<8x384xf32>
    %104 = vector.extract_strided_slice %103 {offsets = [0, 0], sizes = [8, 128], strides = [1, 1]} : vector<8x384xf32> to vector<8x128xf32>
    %105 = vector.extract_strided_slice %103 {offsets = [0, 128], sizes = [8, 128], strides = [1, 1]} : vector<8x384xf32> to vector<8x128xf32>
    %106 = vector.extract_strided_slice %103 {offsets = [0, 256], sizes = [8, 128], strides = [1, 1]} : vector<8x384xf32> to vector<8x128xf32>
    %107 = vector.extract_strided_slice %97 {offsets = [0, 384], sizes = [8, 128], strides = [1, 1]} : vector<8x512xf32> to vector<8x128xf32>
    %108 = math.tanh %107 : vector<8x128xf32>
    %109 = arith.mulf %105, %90 : vector<8x128xf32>
    %110 = arith.mulf %104, %108 : vector<8x128xf32>
    %111 = arith.addf %109, %110 : vector<8x128xf32>
    %112 = math.tanh %111 : vector<8x128xf32>
    %113 = arith.mulf %106, %112 : vector<8x128xf32>
    %c128_34 = arith.constant 128 : index
    %c0_35 = arith.constant 0 : index
    %114 = vector.load %arg1[%c128_34, %c0_35] : memref<256x512xbf16, #tpu.memory_space<vmem>>, vector<128x512xbf16>
    %c40 = arith.constant 40 : index
    %c0_36 = arith.constant 0 : index
    %115 = vector.load %arg4[%c40, %c0_36] : memref<128x512xf32, #tpu.memory_space<vmem>>, vector<8x512xf32>
    %116 = arith.truncf %113 : vector<8x128xf32> to vector<8x128xbf16>
    %cst_37 = arith.constant dense<0.000000e+00> : vector<8x512xf32>
    %117 = tpu.matmul %116, %114, %cst_37 {dimension_numbers = #tpu.dot_dimension_numbers<[1], [0], [0], [1], [0, 0, 1, 1], [], []>} : vector<8x128xbf16>, vector<128x512xbf16>, vector<8x512xf32> -> vector<8x512xf32>
    %118 = arith.addf %115, %117 : vector<8x512xf32>
    %119 = vector.extract_strided_slice %118 {offsets = [0, 0], sizes = [8, 384], strides = [1, 1]} : vector<8x512xf32> to vector<8x384xf32>
    %120 = arith.negf %119 : vector<8x384xf32>
    %121 = math.exp %120 : vector<8x384xf32>
    %cst_38 = arith.constant 1.000000e+00 : f32
    %122 = vector.broadcast %cst_38 : f32 to vector<8x384xf32>
    %123 = arith.addf %122, %121 : vector<8x384xf32>
    %124 = arith.divf %122, %123 : vector<8x384xf32>
    %125 = vector.extract_strided_slice %124 {offsets = [0, 0], sizes = [8, 128], strides = [1, 1]} : vector<8x384xf32> to vector<8x128xf32>
    %126 = vector.extract_strided_slice %124 {offsets = [0, 128], sizes = [8, 128], strides = [1, 1]} : vector<8x384xf32> to vector<8x128xf32>
    %127 = vector.extract_strided_slice %124 {offsets = [0, 256], sizes = [8, 128], strides = [1, 1]} : vector<8x384xf32> to vector<8x128xf32>
    %128 = vector.extract_strided_slice %118 {offsets = [0, 384], sizes = [8, 128], strides = [1, 1]} : vector<8x512xf32> to vector<8x128xf32>
    %129 = math.tanh %128 : vector<8x128xf32>
    %130 = arith.mulf %126, %111 : vector<8x128xf32>
    %131 = arith.mulf %125, %129 : vector<8x128xf32>
    %132 = arith.addf %130, %131 : vector<8x128xf32>
    %133 = math.tanh %132 : vector<8x128xf32>
    %134 = arith.mulf %127, %133 : vector<8x128xf32>
    %c128_39 = arith.constant 128 : index
    %c0_40 = arith.constant 0 : index
    %135 = vector.load %arg1[%c128_39, %c0_40] : memref<256x512xbf16, #tpu.memory_space<vmem>>, vector<128x512xbf16>
    %c48 = arith.constant 48 : index
    %c0_41 = arith.constant 0 : index
    %136 = vector.load %arg4[%c48, %c0_41] : memref<128x512xf32, #tpu.memory_space<vmem>>, vector<8x512xf32>
    %137 = arith.truncf %134 : vector<8x128xf32> to vector<8x128xbf16>
    %cst_42 = arith.constant dense<0.000000e+00> : vector<8x512xf32>
    %138 = tpu.matmul %137, %135, %cst_42 {dimension_numbers = #tpu.dot_dimension_numbers<[1], [0], [0], [1], [0, 0, 1, 1], [], []>} : vector<8x128xbf16>, vector<128x512xbf16>, vector<8x512xf32> -> vector<8x512xf32>
    %139 = arith.addf %136, %138 : vector<8x512xf32>
    %140 = vector.extract_strided_slice %139 {offsets = [0, 0], sizes = [8, 384], strides = [1, 1]} : vector<8x512xf32> to vector<8x384xf32>
    %141 = arith.negf %140 : vector<8x384xf32>
    %142 = math.exp %141 : vector<8x384xf32>
    %cst_43 = arith.constant 1.000000e+00 : f32
    %143 = vector.broadcast %cst_43 : f32 to vector<8x384xf32>
    %144 = arith.addf %143, %142 : vector<8x384xf32>
    %145 = arith.divf %143, %144 : vector<8x384xf32>
    %146 = vector.extract_strided_slice %145 {offsets = [0, 0], sizes = [8, 128], strides = [1, 1]} : vector<8x384xf32> to vector<8x128xf32>
    %147 = vector.extract_strided_slice %145 {offsets = [0, 128], sizes = [8, 128], strides = [1, 1]} : vector<8x384xf32> to vector<8x128xf32>
    %148 = vector.extract_strided_slice %145 {offsets = [0, 256], sizes = [8, 128], strides = [1, 1]} : vector<8x384xf32> to vector<8x128xf32>
    %149 = vector.extract_strided_slice %139 {offsets = [0, 384], sizes = [8, 128], strides = [1, 1]} : vector<8x512xf32> to vector<8x128xf32>
    %150 = math.tanh %149 : vector<8x128xf32>
    %151 = arith.mulf %147, %132 : vector<8x128xf32>
    %152 = arith.mulf %146, %150 : vector<8x128xf32>
    %153 = arith.addf %151, %152 : vector<8x128xf32>
    %154 = math.tanh %153 : vector<8x128xf32>
    %155 = arith.mulf %148, %154 : vector<8x128xf32>
    %c128_44 = arith.constant 128 : index
    %c0_45 = arith.constant 0 : index
    %156 = vector.load %arg1[%c128_44, %c0_45] : memref<256x512xbf16, #tpu.memory_space<vmem>>, vector<128x512xbf16>
    %c56 = arith.constant 56 : index
    %c0_46 = arith.constant 0 : index
    %157 = vector.load %arg4[%c56, %c0_46] : memref<128x512xf32, #tpu.memory_space<vmem>>, vector<8x512xf32>
    %158 = arith.truncf %155 : vector<8x128xf32> to vector<8x128xbf16>
    %cst_47 = arith.constant dense<0.000000e+00> : vector<8x512xf32>
    %159 = tpu.matmul %158, %156, %cst_47 {dimension_numbers = #tpu.dot_dimension_numbers<[1], [0], [0], [1], [0, 0, 1, 1], [], []>} : vector<8x128xbf16>, vector<128x512xbf16>, vector<8x512xf32> -> vector<8x512xf32>
    %160 = arith.addf %157, %159 : vector<8x512xf32>
    %161 = vector.extract_strided_slice %160 {offsets = [0, 0], sizes = [8, 384], strides = [1, 1]} : vector<8x512xf32> to vector<8x384xf32>
    %162 = arith.negf %161 : vector<8x384xf32>
    %163 = math.exp %162 : vector<8x384xf32>
    %cst_48 = arith.constant 1.000000e+00 : f32
    %164 = vector.broadcast %cst_48 : f32 to vector<8x384xf32>
    %165 = arith.addf %164, %163 : vector<8x384xf32>
    %166 = arith.divf %164, %165 : vector<8x384xf32>
    %167 = vector.extract_strided_slice %166 {offsets = [0, 0], sizes = [8, 128], strides = [1, 1]} : vector<8x384xf32> to vector<8x128xf32>
    %168 = vector.extract_strided_slice %166 {offsets = [0, 128], sizes = [8, 128], strides = [1, 1]} : vector<8x384xf32> to vector<8x128xf32>
    %169 = vector.extract_strided_slice %166 {offsets = [0, 256], sizes = [8, 128], strides = [1, 1]} : vector<8x384xf32> to vector<8x128xf32>
    %170 = vector.extract_strided_slice %160 {offsets = [0, 384], sizes = [8, 128], strides = [1, 1]} : vector<8x512xf32> to vector<8x128xf32>
    %171 = math.tanh %170 : vector<8x128xf32>
    %172 = arith.mulf %168, %153 : vector<8x128xf32>
    %173 = arith.mulf %167, %171 : vector<8x128xf32>
    %174 = arith.addf %172, %173 : vector<8x128xf32>
    %175 = math.tanh %174 : vector<8x128xf32>
    %176 = arith.mulf %169, %175 : vector<8x128xf32>
    %c128_49 = arith.constant 128 : index
    %c0_50 = arith.constant 0 : index
    %177 = vector.load %arg1[%c128_49, %c0_50] : memref<256x512xbf16, #tpu.memory_space<vmem>>, vector<128x512xbf16>
    %c64 = arith.constant 64 : index
    %c0_51 = arith.constant 0 : index
    %178 = vector.load %arg4[%c64, %c0_51] : memref<128x512xf32, #tpu.memory_space<vmem>>, vector<8x512xf32>
    %179 = arith.truncf %176 : vector<8x128xf32> to vector<8x128xbf16>
    %cst_52 = arith.constant dense<0.000000e+00> : vector<8x512xf32>
    %180 = tpu.matmul %179, %177, %cst_52 {dimension_numbers = #tpu.dot_dimension_numbers<[1], [0], [0], [1], [0, 0, 1, 1], [], []>} : vector<8x128xbf16>, vector<128x512xbf16>, vector<8x512xf32> -> vector<8x512xf32>
    %181 = arith.addf %178, %180 : vector<8x512xf32>
    %182 = vector.extract_strided_slice %181 {offsets = [0, 0], sizes = [8, 384], strides = [1, 1]} : vector<8x512xf32> to vector<8x384xf32>
    %183 = arith.negf %182 : vector<8x384xf32>
    %184 = math.exp %183 : vector<8x384xf32>
    %cst_53 = arith.constant 1.000000e+00 : f32
    %185 = vector.broadcast %cst_53 : f32 to vector<8x384xf32>
    %186 = arith.addf %185, %184 : vector<8x384xf32>
    %187 = arith.divf %185, %186 : vector<8x384xf32>
    %188 = vector.extract_strided_slice %187 {offsets = [0, 0], sizes = [8, 128], strides = [1, 1]} : vector<8x384xf32> to vector<8x128xf32>
    %189 = vector.extract_strided_slice %187 {offsets = [0, 128], sizes = [8, 128], strides = [1, 1]} : vector<8x384xf32> to vector<8x128xf32>
    %190 = vector.extract_strided_slice %187 {offsets = [0, 256], sizes = [8, 128], strides = [1, 1]} : vector<8x384xf32> to vector<8x128xf32>
    %191 = vector.extract_strided_slice %181 {offsets = [0, 384], sizes = [8, 128], strides = [1, 1]} : vector<8x512xf32> to vector<8x128xf32>
    %192 = math.tanh %191 : vector<8x128xf32>
    %193 = arith.mulf %189, %174 : vector<8x128xf32>
    %194 = arith.mulf %188, %192 : vector<8x128xf32>
    %195 = arith.addf %193, %194 : vector<8x128xf32>
    %196 = math.tanh %195 : vector<8x128xf32>
    %197 = arith.mulf %190, %196 : vector<8x128xf32>
    %cst_54 = arith.constant dense<true> : vector<8x128xi1>
    %198 = arith.xori %8, %cst_54 : vector<8x128xi1>
    %199 = arith.select %198, %195, %174 : vector<8x128xi1>, vector<8x128xf32>
    %200 = arith.select %198, %197, %176 : vector<8x128xi1>, vector<8x128xf32>
    %c128_55 = arith.constant 128 : index
    %c0_56 = arith.constant 0 : index
    %201 = vector.load %arg1[%c128_55, %c0_56] : memref<256x512xbf16, #tpu.memory_space<vmem>>, vector<128x512xbf16>
    %c72 = arith.constant 72 : index
    %c0_57 = arith.constant 0 : index
    %202 = vector.load %arg4[%c72, %c0_57] : memref<128x512xf32, #tpu.memory_space<vmem>>, vector<8x512xf32>
    %203 = arith.truncf %200 : vector<8x128xf32> to vector<8x128xbf16>
    %cst_58 = arith.constant dense<0.000000e+00> : vector<8x512xf32>
    %204 = tpu.matmul %203, %201, %cst_58 {dimension_numbers = #tpu.dot_dimension_numbers<[1], [0], [0], [1], [0, 0, 1, 1], [], []>} : vector<8x128xbf16>, vector<128x512xbf16>, vector<8x512xf32> -> vector<8x512xf32>
    %205 = arith.addf %202, %204 : vector<8x512xf32>
    %206 = vector.extract_strided_slice %205 {offsets = [0, 0], sizes = [8, 384], strides = [1, 1]} : vector<8x512xf32> to vector<8x384xf32>
    %207 = arith.negf %206 : vector<8x384xf32>
    %208 = math.exp %207 : vector<8x384xf32>
    %cst_59 = arith.constant 1.000000e+00 : f32
    %209 = vector.broadcast %cst_59 : f32 to vector<8x384xf32>
    %210 = arith.addf %209, %208 : vector<8x384xf32>
    %211 = arith.divf %209, %210 : vector<8x384xf32>
    %212 = vector.extract_strided_slice %211 {offsets = [0, 0], sizes = [8, 128], strides = [1, 1]} : vector<8x384xf32> to vector<8x128xf32>
    %213 = vector.extract_strided_slice %211 {offsets = [0, 128], sizes = [8, 128], strides = [1, 1]} : vector<8x384xf32> to vector<8x128xf32>
    %214 = vector.extract_strided_slice %211 {offsets = [0, 256], sizes = [8, 128], strides = [1, 1]} : vector<8x384xf32> to vector<8x128xf32>
    %215 = vector.extract_strided_slice %205 {offsets = [0, 384], sizes = [8, 128], strides = [1, 1]} : vector<8x512xf32> to vector<8x128xf32>
    %216 = math.tanh %215 : vector<8x128xf32>
    %217 = arith.mulf %213, %199 : vector<8x128xf32>
    %218 = arith.mulf %212, %216 : vector<8x128xf32>
    %219 = arith.addf %217, %218 : vector<8x128xf32>
    %220 = math.tanh %219 : vector<8x128xf32>
    %221 = arith.mulf %214, %220 : vector<8x128xf32>
    %cst_60 = arith.constant dense<true> : vector<8x128xi1>
    %222 = arith.xori %8, %cst_60 : vector<8x128xi1>
    %223 = arith.select %222, %219, %199 : vector<8x128xi1>, vector<8x128xf32>
    %224 = arith.select %222, %221, %200 : vector<8x128xi1>, vector<8x128xf32>
    %c128_61 = arith.constant 128 : index
    %c0_62 = arith.constant 0 : index
    %225 = vector.load %arg1[%c128_61, %c0_62] : memref<256x512xbf16, #tpu.memory_space<vmem>>, vector<128x512xbf16>
    %c80 = arith.constant 80 : index
    %c0_63 = arith.constant 0 : index
    %226 = vector.load %arg4[%c80, %c0_63] : memref<128x512xf32, #tpu.memory_space<vmem>>, vector<8x512xf32>
    %227 = arith.truncf %224 : vector<8x128xf32> to vector<8x128xbf16>
    %cst_64 = arith.constant dense<0.000000e+00> : vector<8x512xf32>
    %228 = tpu.matmul %227, %225, %cst_64 {dimension_numbers = #tpu.dot_dimension_numbers<[1], [0], [0], [1], [0, 0, 1, 1], [], []>} : vector<8x128xbf16>, vector<128x512xbf16>, vector<8x512xf32> -> vector<8x512xf32>
    %229 = arith.addf %226, %228 : vector<8x512xf32>
    %230 = vector.extract_strided_slice %229 {offsets = [0, 0], sizes = [8, 384], strides = [1, 1]} : vector<8x512xf32> to vector<8x384xf32>
    %231 = arith.negf %230 : vector<8x384xf32>
    %232 = math.exp %231 : vector<8x384xf32>
    %cst_65 = arith.constant 1.000000e+00 : f32
    %233 = vector.broadcast %cst_65 : f32 to vector<8x384xf32>
    %234 = arith.addf %233, %232 : vector<8x384xf32>
    %235 = arith.divf %233, %234 : vector<8x384xf32>
    %236 = vector.extract_strided_slice %235 {offsets = [0, 0], sizes = [8, 128], strides = [1, 1]} : vector<8x384xf32> to vector<8x128xf32>
    %237 = vector.extract_strided_slice %235 {offsets = [0, 128], sizes = [8, 128], strides = [1, 1]} : vector<8x384xf32> to vector<8x128xf32>
    %238 = vector.extract_strided_slice %235 {offsets = [0, 256], sizes = [8, 128], strides = [1, 1]} : vector<8x384xf32> to vector<8x128xf32>
    %239 = vector.extract_strided_slice %229 {offsets = [0, 384], sizes = [8, 128], strides = [1, 1]} : vector<8x512xf32> to vector<8x128xf32>
    %240 = math.tanh %239 : vector<8x128xf32>
    %241 = arith.mulf %237, %223 : vector<8x128xf32>
    %242 = arith.mulf %236, %240 : vector<8x128xf32>
    %243 = arith.addf %241, %242 : vector<8x128xf32>
    %244 = math.tanh %243 : vector<8x128xf32>
    %245 = arith.mulf %238, %244 : vector<8x128xf32>
    %cst_66 = arith.constant dense<true> : vector<8x128xi1>
    %246 = arith.xori %8, %cst_66 : vector<8x128xi1>
    %247 = arith.select %246, %243, %223 : vector<8x128xi1>, vector<8x128xf32>
    %248 = arith.select %246, %245, %224 : vector<8x128xi1>, vector<8x128xf32>
    %c128_67 = arith.constant 128 : index
    %c0_68 = arith.constant 0 : index
    %249 = vector.load %arg1[%c128_67, %c0_68] : memref<256x512xbf16, #tpu.memory_space<vmem>>, vector<128x512xbf16>
    %c88 = arith.constant 88 : index
    %c0_69 = arith.constant 0 : index
    %250 = vector.load %arg4[%c88, %c0_69] : memref<128x512xf32, #tpu.memory_space<vmem>>, vector<8x512xf32>
    %251 = arith.truncf %248 : vector<8x128xf32> to vector<8x128xbf16>
    %cst_70 = arith.constant dense<0.000000e+00> : vector<8x512xf32>
    %252 = tpu.matmul %251, %249, %cst_70 {dimension_numbers = #tpu.dot_dimension_numbers<[1], [0], [0], [1], [0, 0, 1, 1], [], []>} : vector<8x128xbf16>, vector<128x512xbf16>, vector<8x512xf32> -> vector<8x512xf32>
    %253 = arith.addf %250, %252 : vector<8x512xf32>
    %254 = vector.extract_strided_slice %253 {offsets = [0, 0], sizes = [8, 384], strides = [1, 1]} : vector<8x512xf32> to vector<8x384xf32>
    %255 = arith.negf %254 : vector<8x384xf32>
    %256 = math.exp %255 : vector<8x384xf32>
    %cst_71 = arith.constant 1.000000e+00 : f32
    %257 = vector.broadcast %cst_71 : f32 to vector<8x384xf32>
    %258 = arith.addf %257, %256 : vector<8x384xf32>
    %259 = arith.divf %257, %258 : vector<8x384xf32>
    %260 = vector.extract_strided_slice %259 {offsets = [0, 0], sizes = [8, 128], strides = [1, 1]} : vector<8x384xf32> to vector<8x128xf32>
    %261 = vector.extract_strided_slice %259 {offsets = [0, 128], sizes = [8, 128], strides = [1, 1]} : vector<8x384xf32> to vector<8x128xf32>
    %262 = vector.extract_strided_slice %259 {offsets = [0, 256], sizes = [8, 128], strides = [1, 1]} : vector<8x384xf32> to vector<8x128xf32>
    %263 = vector.extract_strided_slice %253 {offsets = [0, 384], sizes = [8, 128], strides = [1, 1]} : vector<8x512xf32> to vector<8x128xf32>
    %264 = math.tanh %263 : vector<8x128xf32>
    %265 = arith.mulf %261, %247 : vector<8x128xf32>
    %266 = arith.mulf %260, %264 : vector<8x128xf32>
    %267 = arith.addf %265, %266 : vector<8x128xf32>
    %268 = math.tanh %267 : vector<8x128xf32>
    %269 = arith.mulf %262, %268 : vector<8x128xf32>
    %cst_72 = arith.constant dense<true> : vector<8x128xi1>
    %270 = arith.xori %8, %cst_72 : vector<8x128xi1>
    %271 = arith.select %270, %267, %247 : vector<8x128xi1>, vector<8x128xf32>
    %272 = arith.select %270, %269, %248 : vector<8x128xi1>, vector<8x128xf32>
    %c128_73 = arith.constant 128 : index
    %c0_74 = arith.constant 0 : index
    %273 = vector.load %arg1[%c128_73, %c0_74] : memref<256x512xbf16, #tpu.memory_space<vmem>>, vector<128x512xbf16>
    %c96 = arith.constant 96 : index
    %c0_75 = arith.constant 0 : index
    %274 = vector.load %arg4[%c96, %c0_75] : memref<128x512xf32, #tpu.memory_space<vmem>>, vector<8x512xf32>
    %275 = arith.truncf %272 : vector<8x128xf32> to vector<8x128xbf16>
    %cst_76 = arith.constant dense<0.000000e+00> : vector<8x512xf32>
    %276 = tpu.matmul %275, %273, %cst_76 {dimension_numbers = #tpu.dot_dimension_numbers<[1], [0], [0], [1], [0, 0, 1, 1], [], []>} : vector<8x128xbf16>, vector<128x512xbf16>, vector<8x512xf32> -> vector<8x512xf32>
    %277 = arith.addf %274, %276 : vector<8x512xf32>
    %278 = vector.extract_strided_slice %277 {offsets = [0, 0], sizes = [8, 384], strides = [1, 1]} : vector<8x512xf32> to vector<8x384xf32>
    %279 = arith.negf %278 : vector<8x384xf32>
    %280 = math.exp %279 : vector<8x384xf32>
    %cst_77 = arith.constant 1.000000e+00 : f32
    %281 = vector.broadcast %cst_77 : f32 to vector<8x384xf32>
    %282 = arith.addf %281, %280 : vector<8x384xf32>
    %283 = arith.divf %281, %282 : vector<8x384xf32>
    %284 = vector.extract_strided_slice %283 {offsets = [0, 0], sizes = [8, 128], strides = [1, 1]} : vector<8x384xf32> to vector<8x128xf32>
    %285 = vector.extract_strided_slice %283 {offsets = [0, 128], sizes = [8, 128], strides = [1, 1]} : vector<8x384xf32> to vector<8x128xf32>
    %286 = vector.extract_strided_slice %283 {offsets = [0, 256], sizes = [8, 128], strides = [1, 1]} : vector<8x384xf32> to vector<8x128xf32>
    %287 = vector.extract_strided_slice %277 {offsets = [0, 384], sizes = [8, 128], strides = [1, 1]} : vector<8x512xf32> to vector<8x128xf32>
    %288 = math.tanh %287 : vector<8x128xf32>
    %289 = arith.mulf %285, %271 : vector<8x128xf32>
    %290 = arith.mulf %284, %288 : vector<8x128xf32>
    %291 = arith.addf %289, %290 : vector<8x128xf32>
    %292 = math.tanh %291 : vector<8x128xf32>
    %293 = arith.mulf %286, %292 : vector<8x128xf32>
    %cst_78 = arith.constant dense<true> : vector<8x128xi1>
    %294 = arith.xori %8, %cst_78 : vector<8x128xi1>
    %295 = arith.select %294, %291, %271 : vector<8x128xi1>, vector<8x128xf32>
    %296 = arith.select %294, %293, %272 : vector<8x128xi1>, vector<8x128xf32>
    %c128_79 = arith.constant 128 : index
    %c0_80 = arith.constant 0 : index
    %297 = vector.load %arg1[%c128_79, %c0_80] : memref<256x512xbf16, #tpu.memory_space<vmem>>, vector<128x512xbf16>
    %c104 = arith.constant 104 : index
    %c0_81 = arith.constant 0 : index
    %298 = vector.load %arg4[%c104, %c0_81] : memref<128x512xf32, #tpu.memory_space<vmem>>, vector<8x512xf32>
    %299 = arith.truncf %296 : vector<8x128xf32> to vector<8x128xbf16>
    %cst_82 = arith.constant dense<0.000000e+00> : vector<8x512xf32>
    %300 = tpu.matmul %299, %297, %cst_82 {dimension_numbers = #tpu.dot_dimension_numbers<[1], [0], [0], [1], [0, 0, 1, 1], [], []>} : vector<8x128xbf16>, vector<128x512xbf16>, vector<8x512xf32> -> vector<8x512xf32>
    %301 = arith.addf %298, %300 : vector<8x512xf32>
    %302 = vector.extract_strided_slice %301 {offsets = [0, 0], sizes = [8, 384], strides = [1, 1]} : vector<8x512xf32> to vector<8x384xf32>
    %303 = arith.negf %302 : vector<8x384xf32>
    %304 = math.exp %303 : vector<8x384xf32>
    %cst_83 = arith.constant 1.000000e+00 : f32
    %305 = vector.broadcast %cst_83 : f32 to vector<8x384xf32>
    %306 = arith.addf %305, %304 : vector<8x384xf32>
    %307 = arith.divf %305, %306 : vector<8x384xf32>
    %308 = vector.extract_strided_slice %307 {offsets = [0, 0], sizes = [8, 128], strides = [1, 1]} : vector<8x384xf32> to vector<8x128xf32>
    %309 = vector.extract_strided_slice %307 {offsets = [0, 128], sizes = [8, 128], strides = [1, 1]} : vector<8x384xf32> to vector<8x128xf32>
    %310 = vector.extract_strided_slice %307 {offsets = [0, 256], sizes = [8, 128], strides = [1, 1]} : vector<8x384xf32> to vector<8x128xf32>
    %311 = vector.extract_strided_slice %301 {offsets = [0, 384], sizes = [8, 128], strides = [1, 1]} : vector<8x512xf32> to vector<8x128xf32>
    %312 = math.tanh %311 : vector<8x128xf32>
    %313 = arith.mulf %309, %295 : vector<8x128xf32>
    %314 = arith.mulf %308, %312 : vector<8x128xf32>
    %315 = arith.addf %313, %314 : vector<8x128xf32>
    %316 = math.tanh %315 : vector<8x128xf32>
    %317 = arith.mulf %310, %316 : vector<8x128xf32>
    %cst_84 = arith.constant dense<true> : vector<8x128xi1>
    %318 = arith.xori %8, %cst_84 : vector<8x128xi1>
    %319 = arith.select %318, %315, %295 : vector<8x128xi1>, vector<8x128xf32>
    %320 = arith.select %318, %317, %296 : vector<8x128xi1>, vector<8x128xf32>
    %c128_85 = arith.constant 128 : index
    %c0_86 = arith.constant 0 : index
    %321 = vector.load %arg1[%c128_85, %c0_86] : memref<256x512xbf16, #tpu.memory_space<vmem>>, vector<128x512xbf16>
    %c112 = arith.constant 112 : index
    %c0_87 = arith.constant 0 : index
    %322 = vector.load %arg4[%c112, %c0_87] : memref<128x512xf32, #tpu.memory_space<vmem>>, vector<8x512xf32>
    %323 = arith.truncf %320 : vector<8x128xf32> to vector<8x128xbf16>
    %cst_88 = arith.constant dense<0.000000e+00> : vector<8x512xf32>
    %324 = tpu.matmul %323, %321, %cst_88 {dimension_numbers = #tpu.dot_dimension_numbers<[1], [0], [0], [1], [0, 0, 1, 1], [], []>} : vector<8x128xbf16>, vector<128x512xbf16>, vector<8x512xf32> -> vector<8x512xf32>
    %325 = arith.addf %322, %324 : vector<8x512xf32>
    %326 = vector.extract_strided_slice %325 {offsets = [0, 0], sizes = [8, 384], strides = [1, 1]} : vector<8x512xf32> to vector<8x384xf32>
    %327 = arith.negf %326 : vector<8x384xf32>
    %328 = math.exp %327 : vector<8x384xf32>
    %cst_89 = arith.constant 1.000000e+00 : f32
    %329 = vector.broadcast %cst_89 : f32 to vector<8x384xf32>
    %330 = arith.addf %329, %328 : vector<8x384xf32>
    %331 = arith.divf %329, %330 : vector<8x384xf32>
    %332 = vector.extract_strided_slice %331 {offsets = [0, 0], sizes = [8, 128], strides = [1, 1]} : vector<8x384xf32> to vector<8x128xf32>
    %333 = vector.extract_strided_slice %331 {offsets = [0, 128], sizes = [8, 128], strides = [1, 1]} : vector<8x384xf32> to vector<8x128xf32>
    %334 = vector.extract_strided_slice %331 {offsets = [0, 256], sizes = [8, 128], strides = [1, 1]} : vector<8x384xf32> to vector<8x128xf32>
    %335 = vector.extract_strided_slice %325 {offsets = [0, 384], sizes = [8, 128], strides = [1, 1]} : vector<8x512xf32> to vector<8x128xf32>
    %336 = math.tanh %335 : vector<8x128xf32>
    %337 = arith.mulf %333, %319 : vector<8x128xf32>
    %338 = arith.mulf %332, %336 : vector<8x128xf32>
    %339 = arith.addf %337, %338 : vector<8x128xf32>
    %340 = math.tanh %339 : vector<8x128xf32>
    %341 = arith.mulf %334, %340 : vector<8x128xf32>
    %cst_90 = arith.constant dense<true> : vector<8x128xi1>
    %342 = arith.xori %8, %cst_90 : vector<8x128xi1>
    %343 = arith.select %342, %339, %319 : vector<8x128xi1>, vector<8x128xf32>
    %344 = arith.select %342, %341, %320 : vector<8x128xi1>, vector<8x128xf32>
    %c128_91 = arith.constant 128 : index
    %c0_92 = arith.constant 0 : index
    %345 = vector.load %arg1[%c128_91, %c0_92] : memref<256x512xbf16, #tpu.memory_space<vmem>>, vector<128x512xbf16>
    %c120 = arith.constant 120 : index
    %c0_93 = arith.constant 0 : index
    %346 = vector.load %arg4[%c120, %c0_93] : memref<128x512xf32, #tpu.memory_space<vmem>>, vector<8x512xf32>
    %347 = arith.truncf %344 : vector<8x128xf32> to vector<8x128xbf16>
    %cst_94 = arith.constant dense<0.000000e+00> : vector<8x512xf32>
    %348 = tpu.matmul %347, %345, %cst_94 {dimension_numbers = #tpu.dot_dimension_numbers<[1], [0], [0], [1], [0, 0, 1, 1], [], []>} : vector<8x128xbf16>, vector<128x512xbf16>, vector<8x512xf32> -> vector<8x512xf32>
    %349 = arith.addf %346, %348 : vector<8x512xf32>
    %350 = vector.extract_strided_slice %349 {offsets = [0, 0], sizes = [8, 384], strides = [1, 1]} : vector<8x512xf32> to vector<8x384xf32>
    %351 = arith.negf %350 : vector<8x384xf32>
    %352 = math.exp %351 : vector<8x384xf32>
    %cst_95 = arith.constant 1.000000e+00 : f32
    %353 = vector.broadcast %cst_95 : f32 to vector<8x384xf32>
    %354 = arith.addf %353, %352 : vector<8x384xf32>
    %355 = arith.divf %353, %354 : vector<8x384xf32>
    %356 = vector.extract_strided_slice %355 {offsets = [0, 0], sizes = [8, 128], strides = [1, 1]} : vector<8x384xf32> to vector<8x128xf32>
    %357 = vector.extract_strided_slice %355 {offsets = [0, 128], sizes = [8, 128], strides = [1, 1]} : vector<8x384xf32> to vector<8x128xf32>
    %358 = vector.extract_strided_slice %355 {offsets = [0, 256], sizes = [8, 128], strides = [1, 1]} : vector<8x384xf32> to vector<8x128xf32>
    %359 = vector.extract_strided_slice %349 {offsets = [0, 384], sizes = [8, 128], strides = [1, 1]} : vector<8x512xf32> to vector<8x128xf32>
    %360 = math.tanh %359 : vector<8x128xf32>
    %361 = arith.mulf %357, %343 : vector<8x128xf32>
    %362 = arith.mulf %356, %360 : vector<8x128xf32>
    %363 = arith.addf %361, %362 : vector<8x128xf32>
    %364 = math.tanh %363 : vector<8x128xf32>
    %365 = arith.mulf %358, %364 : vector<8x128xf32>
    %cst_96 = arith.constant dense<true> : vector<8x128xi1>
    %366 = arith.xori %8, %cst_96 : vector<8x128xi1>
    %367 = arith.select %366, %365, %344 : vector<8x128xi1>, vector<8x128xf32>
    %368 = vector.extract_strided_slice %367 {offsets = [0, 0], sizes = [2, 128], strides = [1, 1]} : vector<8x128xf32> to vector<2x128xf32>
    %c0_97 = arith.constant 0 : index
    %c0_98 = arith.constant 0 : index
    %369 = vector.load %arg3[%c0_97, %c0_98] : memref<2x128xf32, #tpu.memory_space<vmem>>, vector<2x128xf32>
    tpu.vector_store %arg3[%c0_97, %c0_98], %368 {strides = array<i32>} : memref<2x128xf32, #tpu.memory_space<vmem>>, vector<2x128xf32>,
    return
  }
}

</mosaic_0001>

<llo_original>
// kernel: four_directional_lstm.1
$region0: #{four_directional_lstm.1}
  #allocation0 [shape = 'u32[]', space=smem, size = 0x4, offset = 0x4, fixed_abs, tag = 'smem constant byte address 0x4 - core index']
  #allocation1 [shape = 'u32[144,128]{1,0:T(1,128)}', space=vmem, size = 0x12000, scoped, tag = 'internal scratch']
  #allocation2 [shape = 'f32[128,512]{1,0:T(8,128)}', space=vmem, size = 0x40000, scoped, tag = 'scratch operand']
  %s0 = inlined_call_operand.vmem [shape: bf16[128,128], index: 0, kind: input, shape index: {}]
  %s1 = inlined_call_operand.hbm [shape: bf16[256,512], index: 1, kind: input, shape index: {}]
  %s2 = inlined_call_operand.vmem [shape: f32[16,128], index: 2, kind: input, shape index: {}]
  %s3 = inlined_call_operand.hbm [shape: f32[2,128], index: 3, kind: output, shape index: {}]
  %s4 = sld [smem:[#allocation0]]
  $region26: #{four_directional_lstm.1} parent=0
    _
  %s6 = ssub.s32 1, %s4
  %s7 = scalar_select 0, %s6, %s4
  $region1: #{four_directional_lstm.1} parent=0
    #allocation3 [shape = 'u8[262144]{0}', space=vmem, size = 0x40000, scoped, tag = 'input window, operand 1, single buffered']
    #allocation4 [shape = 's32[1]{0}', space=sflag, size = 0x4, scoped, tag = 'scoped memory for four_directional_lstm.1']
    #allocation5 [shape = 's32[1]{0}', space=sflag, size = 0x4, scoped, tag = 'scoped memory for four_directional_lstm.1']
    #allocation6 [shape = 'u8[1024]{0}', space=vmem, size = 0x400, scoped, tag = 'output window, operand 0, single buffered']
    %8 = vsyncpa [#allocation4], 0
    %9 = vsyncpa [#allocation5], 0
    // Predicated region
    $region2: #{four_directional_lstm.1} parent=1 // pred_check
      _
    $region3: #{four_directional_lstm.1} parent=1 // pred_check_branch
      %11 = sbr.rel (0) target = $region5
    $region4: #{four_directional_lstm.1} parent=1 // pred_region
      _
    $region5: #{four_directional_lstm.1} parent=1 // pred_fallthru
      _
    // Predicated region
    $region6: #{four_directional_lstm.1} parent=1 // pred_check
      _
    $region7: #{four_directional_lstm.1} parent=1 // pred_check_branch
      %13 = sbr.rel (0) target = $region9
    $region8: #{four_directional_lstm.1} parent=1 // pred_region
      %s15 = ssub.s32 8192, 8192
      %16 = vsyncadd [#allocation4], %s15
      %s17 = sshll.u32 [#allocation3], 4
      %s18 = int_to_ptr.vmem [resolvable:$true] %s17
      %23 = dma.hbm_to_vmem [thread:$0]  %s1, 8192, %s18, [#allocation4], 256, 256, 16
    $region9: #{four_directional_lstm.1} parent=1 // pred_fallthru
      _
    // Predicated region
    $region10: #{four_directional_lstm.1} parent=1 // pred_check
      _
    $region11: #{four_directional_lstm.1} parent=1 // pred_check_branch
      %25 = sbr.rel (0) target = $region13
    $region12: #{four_directional_lstm.1} parent=1 // pred_region
      _
    $region13: #{four_directional_lstm.1} parent=1 // pred_fallthru
      _
    // Predicated region
    $region14: #{four_directional_lstm.1} parent=1 // pred_check
      _
    $region15: #{four_directional_lstm.1} parent=1 // pred_check_branch
      %27 = sbr.rel (0) target = $region17
    $region16: #{four_directional_lstm.1} parent=1 // pred_region
      %28 = dma.done [#allocation4], 8192
    $region17: #{four_directional_lstm.1} parent=1 // pred_fallthru
      _
    %v30 = vld [vmem:[%s0] sm:$0xf]
    %v31 = vld [vmem:[%s0 + $0x4] sm:$0xf]
    %v32 = vld [vmem:[%s0 + $0x8] sm:$0xf]
    %v33 = vld [vmem:[%s0 + $0xc] sm:$0xf]
    %v34 = vld [vmem:[%s0 + $0x10] sm:$0xf]
    %v35 = vld [vmem:[%s0 + $0x14] sm:$0xf]
    %v36 = vld [vmem:[%s0 + $0x18] sm:$0xf]
    %v37 = vld [vmem:[%s0 + $0x1c] sm:$0xf]
    %v38 = vld [vmem:[%s0 + $0x20] sm:$0xf]
    %v39 = vld [vmem:[%s0 + $0x24] sm:$0xf]
    %v40 = vld [vmem:[%s0 + $0x28] sm:$0xf]
    %v41 = vld [vmem:[%s0 + $0x2c] sm:$0xf]
    %v42 = vld [vmem:[%s0 + $0x30] sm:$0xf]
    %v43 = vld [vmem:[%s0 + $0x34] sm:$0xf]
    %v44 = vld [vmem:[%s0 + $0x38] sm:$0xf]
    %v45 = vld [vmem:[%s0 + $0x3c] sm:$0xf]
    %v46 = vld [vmem:[#allocation3] sm:$0xff]
    %v47 = vld [vmem:[#allocation3 + $0x8] sm:$0xff]
    %v48 = vld [vmem:[#allocation3 + $0x10] sm:$0xff]
    %v49 = vld [vmem:[#allocation3 + $0x18] sm:$0xff]
    %v50 = vld [vmem:[#allocation3 + $0x20] sm:$0xff]
    %v51 = vld [vmem:[#allocation3 + $0x28] sm:$0xff]
    %v52 = vld [vmem:[#allocation3 + $0x30] sm:$0xff]
    %v53 = vld [vmem:[#allocation3 + $0x38] sm:$0xff]
    %v54 = vld [vmem:[#allocation3 + $0x40] sm:$0xff]
    %v55 = vld [vmem:[#allocation3 + $0x48] sm:$0xff]
    %v56 = vld [vmem:[#allocation3 + $0x50] sm:$0xff]
    %v57 = vld [vmem:[#allocation3 + $0x58] sm:$0xff]
    %v58 = vld [vmem:[#allocation3 + $0x60] sm:$0xff]
    %v59 = vld [vmem:[#allocation3 + $0x68] sm:$0xff]
    %v60 = vld [vmem:[#allocation3 + $0x70] sm:$0xff]
    %v61 = vld [vmem:[#allocation3 + $0x78] sm:$0xff]
    %v62 = vld [vmem:[#allocation3 + $0x80] sm:$0xff]
    %v63 = vld [vmem:[#allocation3 + $0x88] sm:$0xff]
    %v64 = vld [vmem:[#allocation3 + $0x90] sm:$0xff]
    %v65 = vld [vmem:[#allocation3 + $0x98] sm:$0xff]
    %v66 = vld [vmem:[#allocation3 + $0xa0] sm:$0xff]
    %v67 = vld [vmem:[#allocation3 + $0xa8] sm:$0xff]
    %v68 = vld [vmem:[#allocation3 + $0xb0] sm:$0xff]
    %v69 = vld [vmem:[#allocation3 + $0xb8] sm:$0xff]
    %v70 = vld [vmem:[#allocation3 + $0xc0] sm:$0xff]
    %v71 = vld [vmem:[#allocation3 + $0xc8] sm:$0xff]
    %v72 = vld [vmem:[#allocation3 + $0xd0] sm:$0xff]
    %v73 = vld [vmem:[#allocation3 + $0xd8] sm:$0xff]
    %v74 = vld [vmem:[#allocation3 + $0xe0] sm:$0xff]
    %v75 = vld [vmem:[#allocation3 + $0xe8] sm:$0xff]
    %v76 = vld [vmem:[#allocation3 + $0xf0] sm:$0xff]
    %v77 = vld [vmem:[#allocation3 + $0xf8] sm:$0xff]
    %v94 = vunpack.c.l.b16 %v30
    %v95 = vunpack.c.l.b16 %v31
    %v96 = vunpack.c.l.b16 %v32
    %v97 = vunpack.c.l.b16 %v33
    %v98 = vunpack.c.l.b16 %v34
    %v99 = vunpack.c.l.b16 %v35
    %v100 = vunpack.c.l.b16 %v36
    %v101 = vunpack.c.l.b16 %v37
    %v102 = vunpack.c.l.b16 %v38
    %v103 = vunpack.c.l.b16 %v39
    %v104 = vunpack.c.l.b16 %v40
    %v105 = vunpack.c.l.b16 %v41
    %v106 = vunpack.c.l.b16 %v42
    %v107 = vunpack.c.l.b16 %v43
    %v108 = vunpack.c.l.b16 %v44
    %v109 = vunpack.c.l.b16 %v45
    %v110 = vpack.c.b16 %v95, %v94
    %v111 = vpack.c.b16 %v97, %v96
    %v112 = vpack.c.b16 %v99, %v98
    %v113 = vpack.c.b16 %v101, %v100
    %v114 = vpack.c.b16 %v103, %v102
    %v115 = vpack.c.b16 %v105, %v104
    %v116 = vpack.c.b16 %v107, %v106
    %v117 = vpack.c.b16 %v109, %v108
    %v158 = vunpack.c.l.b16 %v46
    %v159 = vunpack.c.h.b16 %v46
    %v160 = vunpack.c.l.b16 %v47
    %v161 = vunpack.c.h.b16 %v47
    %v162 = vunpack.c.l.b16 %v48
    %v163 = vunpack.c.h.b16 %v48
    %v164 = vunpack.c.l.b16 %v49
    %v165 = vunpack.c.h.b16 %v49
    %v166 = vunpack.c.l.b16 %v50
    %v167 = vunpack.c.h.b16 %v50
    %v168 = vunpack.c.l.b16 %v51
    %v169 = vunpack.c.h.b16 %v51
    %v170 = vunpack.c.l.b16 %v52
    %v171 = vunpack.c.h.b16 %v52
    %v172 = vunpack.c.l.b16 %v53
    %v173 = vunpack.c.h.b16 %v53
    %v174 = vunpack.c.l.b16 %v54
    %v175 = vunpack.c.h.b16 %v54
    %v176 = vunpack.c.l.b16 %v55
    %v177 = vunpack.c.h.b16 %v55
    %v178 = vunpack.c.l.b16 %v56
    %v179 = vunpack.c.h.b16 %v56
    %v180 = vunpack.c.l.b16 %v57
    %v181 = vunpack.c.h.b16 %v57
    %v182 = vunpack.c.l.b16 %v58
    %v183 = vunpack.c.h.b16 %v58
    %v184 = vunpack.c.l.b16 %v59
    %v185 = vunpack.c.h.b16 %v59
    %v186 = vunpack.c.l.b16 %v60
    %v187 = vunpack.c.h.b16 %v60
    %v188 = vunpack.c.l.b16 %v61
    %v189 = vunpack.c.h.b16 %v61
    %v190 = vunpack.c.l.b16 %v62
    %v191 = vunpack.c.h.b16 %v62
    %v192 = vunpack.c.l.b16 %v63
    %v193 = vunpack.c.h.b16 %v63
    %v194 = vunpack.c.l.b16 %v64
    %v195 = vunpack.c.h.b16 %v64
    %v196 = vunpack.c.l.b16 %v65
    %v197 = vunpack.c.h.b16 %v65
    %v198 = vunpack.c.l.b16 %v66
    %v199 = vunpack.c.h.b16 %v66
    %v200 = vunpack.c.l.b16 %v67
    %v201 = vunpack.c.h.b16 %v67
    %v202 = vunpack.c.l.b16 %v68
    %v203 = vunpack.c.h.b16 %v68
    %v204 = vunpack.c.l.b16 %v69
    %v205 = vunpack.c.h.b16 %v69
    %v206 = vunpack.c.l.b16 %v70
    %v207 = vunpack.c.h.b16 %v70
    %v208 = vunpack.c.l.b16 %v71
    %v209 = vunpack.c.h.b16 %v71
    %v210 = vunpack.c.l.b16 %v72
    %v211 = vunpack.c.h.b16 %v72
    %v212 = vunpack.c.l.b16 %v73
    %v213 = vunpack.c.h.b16 %v73
    %v214 = vunpack.c.l.b16 %v74
    %v215 = vunpack.c.h.b16 %v74
    %v216 = vunpack.c.l.b16 %v75
    %v217 = vunpack.c.h.b16 %v75
    %v218 = vunpack.c.l.b16 %v76
    %v219 = vunpack.c.h.b16 %v76
    %v220 = vunpack.c.l.b16 %v77
    %v221 = vunpack.c.h.b16 %v77
    %v222 = vpack.c.b16 %v162, %v158
    %v223 = vpack.c.b16 %v163, %v159
    %v224 = vpack.c.b16 %v164, %v160
    %v225 = vpack.c.b16 %v165, %v161
    %v226 = vpack.c.b16 %v170, %v166
    %v227 = vpack.c.b16 %v171, %v167
    %v228 = vpack.c.b16 %v172, %v168
    %v229 = vpack.c.b16 %v173, %v169
    %v230 = vpack.c.b16 %v178, %v174
    %v231 = vpack.c.b16 %v179, %v175
    %v232 = vpack.c.b16 %v180, %v176
    %v233 = vpack.c.b16 %v181, %v177
    %v234 = vpack.c.b16 %v186, %v182
    %v235 = vpack.c.b16 %v187, %v183
    %v236 = vpack.c.b16 %v188, %v184
    %v237 = vpack.c.b16 %v189, %v185
    %v238 = vpack.c.b16 %v194, %v190
    %v239 = vpack.c.b16 %v195, %v191
    %v240 = vpack.c.b16 %v196, %v192
    %v241 = vpack.c.b16 %v197, %v193
    %v242 = vpack.c.b16 %v202, %v198
    %v243 = vpack.c.b16 %v203, %v199
    %v244 = vpack.c.b16 %v204, %v200
    %v245 = vpack.c.b16 %v205, %v201
    %v246 = vpack.c.b16 %v210, %v206
    %v247 = vpack.c.b16 %v211, %v207
    %v248 = vpack.c.b16 %v212, %v208
    %v249 = vpack.c.b16 %v213, %v209
    %v250 = vpack.c.b16 %v218, %v214
    %v251 = vpack.c.b16 %v219, %v215
    %v252 = vpack.c.b16 %v220, %v216
    %v253 = vpack.c.b16 %v221, %v217
    %286 = vmatprep.subr.bf16.mxu0 %v223
    %287 = vmatpush1.bf16.msra.mxu0 %v222
    %288 = vmatprep.subr.bf16.mxu0 %v227
    %289 = vmatpush1.bf16.msra.mxu0 %v226
    %290 = vmatprep.subr.bf16.mxu0 %v231
    %291 = vmatpush1.bf16.msra.mxu0 %v230
    %292 = vmatprep.subr.bf16.mxu0 %v235
    %293 = vmatpush1.bf16.msra.mxu0 %v234
    %294 = vmatprep.subr.bf16.mxu0 %v239
    %295 = vmatpush1.bf16.msra.mxu0 %v238
    %296 = vmatprep.subr.bf16.mxu0 %v243
    %297 = vmatpush1.bf16.msra.mxu0 %v242
    %298 = vmatprep.subr.bf16.mxu0 %v247
    %299 = vmatpush1.bf16.msra.mxu0 %v246
    %300 = vmatprep.subr.bf16.mxu0 %v251
    %301 = vmatpush1.bf16.msra.mxu0 %v250
    %302 = vmatprep.subr.bf16.mxu0 0
    %303 = vmatpush1.bf16.msra.mxu0 0
    %304 = vmatprep.subr.bf16.mxu0 0
    %305 = vmatpush1.bf16.msra.mxu0 0
    %306 = vmatprep.subr.bf16.mxu0 0
    %307 = vmatpush1.bf16.msra.mxu0 0
    %308 = vmatprep.subr.bf16.mxu0 0
    %309 = vmatpush1.bf16.msra.mxu0 0
    %310 = vmatprep.subr.bf16.mxu0 0
    %311 = vmatpush1.bf16.msra.mxu0 0
    %312 = vmatprep.subr.bf16.mxu0 0
    %313 = vmatpush1.bf16.msra.mxu0 0
    %314 = vmatprep.subr.bf16.mxu0 0
    %315 = vmatpush1.bf16.msra.mxu0 0
    %316 = vmatprep.subr.bf16.mxu0 0
    %317 = vmatpush1.bf16.msra.mxu0 0
    %318 = vmatprep.mubr.bf16.mxu0 0
    %319 = vmatmul.mubr.bf16.gmra.mrb[0].mxu0 %v110
    %v320 = vpop.f32.mrb[0].mxu0
    %v321 = vadd.f32 0.0, %v320
    %v322 = vpop.f32.mrb[0].mxu0
    %v323 = vadd.f32 0.0, %v322
    %v324 = vpop.f32.mrb[0].mxu0
    %v325 = vadd.f32 0.0, %v324
    %v326 = vpop.f32.mrb[0].mxu0
    %v327 = vadd.f32 0.0, %v326
    %328 = vmatprep.mubr.bf16.mxu0 0
    %329 = vmatmul.mubr.bf16.gmra.mrb[0].mxu0 %v111
    %v330 = vpop.f32.mrb[0].mxu0
    %v331 = vadd.f32 0.0, %v330
    %v332 = vpop.f32.mrb[0].mxu0
    %v333 = vadd.f32 0.0, %v332
    %v334 = vpop.f32.mrb[0].mxu0
    %v335 = vadd.f32 0.0, %v334
    %v336 = vpop.f32.mrb[0].mxu0
    %v337 = vadd.f32 0.0, %v336
    %338 = vmatprep.mubr.bf16.mxu0 0
    %339 = vmatmul.mubr.bf16.gmra.mrb[0].mxu0 %v112
    %v340 = vpop.f32.mrb[0].mxu0
    %v341 = vadd.f32 0.0, %v340
    %v342 = vpop.f32.mrb[0].mxu0
    %v343 = vadd.f32 0.0, %v342
    %v344 = vpop.f32.mrb[0].mxu0
    %v345 = vadd.f32 0.0, %v344
    %v346 = vpop.f32.mrb[0].mxu0
    %v347 = vadd.f32 0.0, %v346
    %348 = vmatprep.mubr.bf16.mxu0 0
    %349 = vmatmul.mubr.bf16.gmra.mrb[0].mxu0 %v113
    %v350 = vpop.f32.mrb[0].mxu0
    %v351 = vadd.f32 0.0, %v350
    %v352 = vpop.f32.mrb[0].mxu0
    %v353 = vadd.f32 0.0, %v352
    %v354 = vpop.f32.mrb[0].mxu0
    %v355 = vadd.f32 0.0, %v354
    %v356 = vpop.f32.mrb[0].mxu0
    %v357 = vadd.f32 0.0, %v356
    %358 = vmatprep.mubr.bf16.mxu0 0
    %359 = vmatmul.mubr.bf16.gmra.mrb[0].mxu0 %v114
    %v360 = vpop.f32.mrb[0].mxu0
    %v361 = vadd.f32 0.0, %v360
    %v362 = vpop.f32.mrb[0].mxu0
    %v363 = vadd.f32 0.0, %v362
    %v364 = vpop.f32.mrb[0].mxu0
    %v365 = vadd.f32 0.0, %v364
    %v366 = vpop.f32.mrb[0].mxu0
    %v367 = vadd.f32 0.0, %v366
    %368 = vmatprep.mubr.bf16.mxu0 0
    %369 = vmatmul.mubr.bf16.gmra.mrb[0].mxu0 %v115
    %v370 = vpop.f32.mrb[0].mxu0
    %v371 = vadd.f32 0.0, %v370
    %v372 = vpop.f32.mrb[0].mxu0
    %v373 = vadd.f32 0.0, %v372
    %v374 = vpop.f32.mrb[0].mxu0
    %v375 = vadd.f32 0.0, %v374
    %v376 = vpop.f32.mrb[0].mxu0
    %v377 = vadd.f32 0.0, %v376
    %378 = vmatprep.mubr.bf16.mxu0 0
    %379 = vmatmul.mubr.bf16.gmra.mrb[0].mxu0 %v116
    %v380 = vpop.f32.mrb[0].mxu0
    %v381 = vadd.f32 0.0, %v380
    %v382 = vpop.f32.mrb[0].mxu0
    %v383 = vadd.f32 0.0, %v382
    %v384 = vpop.f32.mrb[0].mxu0
    %v385 = vadd.f32 0.0, %v384
    %v386 = vpop.f32.mrb[0].mxu0
    %v387 = vadd.f32 0.0, %v386
    %388 = vmatprep.mubr.bf16.mxu0 0
    %389 = vmatmul.mubr.bf16.gmra.mrb[0].mxu0 %v117
    %v390 = vpop.f32.mrb[0].mxu0
    %v391 = vadd.f32 0.0, %v390
    %v392 = vpop.f32.mrb[0].mxu0
    %v393 = vadd.f32 0.0, %v392
    %v394 = vpop.f32.mrb[0].mxu0
    %v395 = vadd.f32 0.0, %v394
    %v396 = vpop.f32.mrb[0].mxu0
    %v397 = vadd.f32 0.0, %v396
    %398 = vdwg.mxu0
    %399 = vmatprep.subr.bf16.mxu0 %v225
    %400 = vmatpush1.bf16.msra.mxu0 %v224
    %401 = vmatprep.subr.bf16.mxu0 %v229
    %402 = vmatpush1.bf16.msra.mxu0 %v228
    %403 = vmatprep.subr.bf16.mxu0 %v233
    %404 = vmatpush1.bf16.msra.mxu0 %v232
    %405 = vmatprep.subr.bf16.mxu0 %v237
    %406 = vmatpush1.bf16.msra.mxu0 %v236
    %407 = vmatprep.subr.bf16.mxu0 %v241
    %408 = vmatpush1.bf16.msra.mxu0 %v240
    %409 = vmatprep.subr.bf16.mxu0 %v245
    %410 = vmatpush1.bf16.msra.mxu0 %v244
    %411 = vmatprep.subr.bf16.mxu0 %v249
    %412 = vmatpush1.bf16.msra.mxu0 %v248
    %413 = vmatprep.subr.bf16.mxu0 %v253
    %414 = vmatpush1.bf16.msra.mxu0 %v252
    %415 = vmatprep.subr.bf16.mxu0 0
    %416 = vmatpush1.bf16.msra.mxu0 0
    %417 = vmatprep.subr.bf16.mxu0 0
    %418 = vmatpush1.bf16.msra.mxu0 0
    %419 = vmatprep.subr.bf16.mxu0 0
    %420 = vmatpush1.bf16.msra.mxu0 0
    %421 = vmatprep.subr.bf16.mxu0 0
    %422 = vmatpush1.bf16.msra.mxu0 0
    %423 = vmatprep.subr.bf16.mxu0 0
    %424 = vmatpush1.bf16.msra.mxu0 0
    %425 = vmatprep.subr.bf16.mxu0 0
    %426 = vmatpush1.bf16.msra.mxu0 0
    %427 = vmatprep.subr.bf16.mxu0 0
    %428 = vmatpush1.bf16.msra.mxu0 0
    %429 = vmatprep.subr.bf16.mxu0 0
    %430 = vmatpush1.bf16.msra.mxu0 0
    %431 = vmatprep.mubr.bf16.mxu0 0
    %432 = vmatmul.mubr.bf16.gmra.mrb[0].mxu0 %v110
    %v433 = vpop.f32.mrb[0].mxu0
    %v434 = vadd.f32 0.0, %v433
    %v435 = vpop.f32.mrb[0].mxu0
    %v436 = vadd.f32 0.0, %v435
    %v437 = vpop.f32.mrb[0].mxu0
    %v438 = vadd.f32 0.0, %v437
    %v439 = vpop.f32.mrb[0].mxu0
    %v440 = vadd.f32 0.0, %v439
    %441 = vmatprep.mubr.bf16.mxu0 0
    %442 = vmatmul.mubr.bf16.gmra.mrb[0].mxu0 %v111
    %v443 = vpop.f32.mrb[0].mxu0
    %v444 = vadd.f32 0.0, %v443
    %v445 = vpop.f32.mrb[0].mxu0
    %v446 = vadd.f32 0.0, %v445
    %v447 = vpop.f32.mrb[0].mxu0
    %v448 = vadd.f32 0.0, %v447
    %v449 = vpop.f32.mrb[0].mxu0
    %v450 = vadd.f32 0.0, %v449
    %451 = vmatprep.mubr.bf16.mxu0 0
    %452 = vmatmul.mubr.bf16.gmra.mrb[0].mxu0 %v112
    %v453 = vpop.f32.mrb[0].mxu0
    %v454 = vadd.f32 0.0, %v453
    %v455 = vpop.f32.mrb[0].mxu0
    %v456 = vadd.f32 0.0, %v455
    %v457 = vpop.f32.mrb[0].mxu0
    %v458 = vadd.f32 0.0, %v457
    %v459 = vpop.f32.mrb[0].mxu0
    %v460 = vadd.f32 0.0, %v459
    %461 = vmatprep.mubr.bf16.mxu0 0
    %462 = vmatmul.mubr.bf16.gmra.mrb[0].mxu0 %v113
    %v463 = vpop.f32.mrb[0].mxu0
    %v464 = vadd.f32 0.0, %v463
    %v465 = vpop.f32.mrb[0].mxu0
    %v466 = vadd.f32 0.0, %v465
    %v467 = vpop.f32.mrb[0].mxu0
    %v468 = vadd.f32 0.0, %v467
    %v469 = vpop.f32.mrb[0].mxu0
    %v470 = vadd.f32 0.0, %v469
    %471 = vmatprep.mubr.bf16.mxu0 0
    %472 = vmatmul.mubr.bf16.gmra.mrb[0].mxu0 %v114
    %v473 = vpop.f32.mrb[0].mxu0
    %v474 = vadd.f32 0.0, %v473
    %v475 = vpop.f32.mrb[0].mxu0
    %v476 = vadd.f32 0.0, %v475
    %v477 = vpop.f32.mrb[0].mxu0
    %v478 = vadd.f32 0.0, %v477
    %v479 = vpop.f32.mrb[0].mxu0
    %v480 = vadd.f32 0.0, %v479
    %481 = vmatprep.mubr.bf16.mxu0 0
    %482 = vmatmul.mubr.bf16.gmra.mrb[0].mxu0 %v115
    %v483 = vpop.f32.mrb[0].mxu0
    %v484 = vadd.f32 0.0, %v483
    %v485 = vpop.f32.mrb[0].mxu0
    %v486 = vadd.f32 0.0, %v485
    %v487 = vpop.f32.mrb[0].mxu0
    %v488 = vadd.f32 0.0, %v487
    %v489 = vpop.f32.mrb[0].mxu0
    %v490 = vadd.f32 0.0, %v489
    %491 = vmatprep.mubr.bf16.mxu0 0
    %492 = vmatmul.mubr.bf16.gmra.mrb[0].mxu0 %v116
    %v493 = vpop.f32.mrb[0].mxu0
    %v494 = vadd.f32 0.0, %v493
    %v495 = vpop.f32.mrb[0].mxu0
    %v496 = vadd.f32 0.0, %v495
    %v497 = vpop.f32.mrb[0].mxu0
    %v498 = vadd.f32 0.0, %v497
    %v499 = vpop.f32.mrb[0].mxu0
    %v500 = vadd.f32 0.0, %v499
    %501 = vmatprep.mubr.bf16.mxu0 0
    %502 = vmatmul.mubr.bf16.gmra.mrb[0].mxu0 %v117
    %v503 = vpop.f32.mrb[0].mxu0
    %v504 = vadd.f32 0.0, %v503
    %v505 = vpop.f32.mrb[0].mxu0
    %v506 = vadd.f32 0.0, %v505
    %v507 = vpop.f32.mrb[0].mxu0
    %v508 = vadd.f32 0.0, %v507
    %v509 = vpop.f32.mrb[0].mxu0
    %v510 = vadd.f32 0.0, %v509
    %511 = vdwg.mxu0
    %512 = vst [vmem:[#allocation2] sm:$0xff] %v321
    %513 = vst [vmem:[#allocation2 + $0x8] sm:$0xff] %v323
    %514 = vst [vmem:[#allocation2 + $0x10] sm:$0xff] %v434
    %515 = vst [vmem:[#allocation2 + $0x18] sm:$0xff] %v436
    %516 = vst [vmem:[#allocation2 + $0x20] sm:$0xff] %v325
    %517 = vst [vmem:[#allocation2 + $0x28] sm:$0xff] %v327
    %518 = vst [vmem:[#allocation2 + $0x30] sm:$0xff] %v438
    %519 = vst [vmem:[#allocation2 + $0x38] sm:$0xff] %v440
    %520 = vst [vmem:[#allocation2 + $0x40] sm:$0xff] %v331
    %521 = vst [vmem:[#allocation2 + $0x48] sm:$0xff] %v333
    %522 = vst [vmem:[#allocation2 + $0x50] sm:$0xff] %v444
    %523 = vst [vmem:[#allocation2 + $0x58] sm:$0xff] %v446
    %524 = vst [vmem:[#allocation2 + $0x60] sm:$0xff] %v335
    %525 = vst [vmem:[#allocation2 + $0x68] sm:$0xff] %v337
    %526 = vst [vmem:[#allocation2 + $0x70] sm:$0xff] %v448
    %527 = vst [vmem:[#allocation2 + $0x78] sm:$0xff] %v450
    %528 = vst [vmem:[#allocation2 + $0x80] sm:$0xff] %v341
    %529 = vst [vmem:[#allocation2 + $0x88] sm:$0xff] %v343
    %530 = vst [vmem:[#allocation2 + $0x90] sm:$0xff] %v454
    %531 = vst [vmem:[#allocation2 + $0x98] sm:$0xff] %v456
    %532 = vst [vmem:[#allocation2 + $0xa0] sm:$0xff] %v345
    %533 = vst [vmem:[#allocation2 + $0xa8] sm:$0xff] %v347
    %534 = vst [vmem:[#allocation2 + $0xb0] sm:$0xff] %v458
    %535 = vst [vmem:[#allocation2 + $0xb8] sm:$0xff] %v460
    %536 = vst [vmem:[#allocation2 + $0xc0] sm:$0xff] %v351
    %537 = vst [vmem:[#allocation2 + $0xc8] sm:$0xff] %v353
    %538 = vst [vmem:[#allocation2 + $0xd0] sm:$0xff] %v464
    %539 = vst [vmem:[#allocation2 + $0xd8] sm:$0xff] %v466
    %540 = vst [vmem:[#allocation2 + $0xe0] sm:$0xff] %v355
    %541 = vst [vmem:[#allocation2 + $0xe8] sm:$0xff] %v357
    %542 = vst [vmem:[#allocation2 + $0xf0] sm:$0xff] %v468
    %543 = vst [vmem:[#allocation2 + $0xf8] sm:$0xff] %v470
    %544 = vst [vmem:[#allocation2 + $0x100] sm:$0xff] %v361
    %545 = vst [vmem:[#allocation2 + $0x108] sm:$0xff] %v363
    %546 = vst [vmem:[#allocation2 + $0x110] sm:$0xff] %v474
    %547 = vst [vmem:[#allocation2 + $0x118] sm:$0xff] %v476
    %548 = vst [vmem:[#allocation2 + $0x120] sm:$0xff] %v365
    %549 = vst [vmem:[#allocation2 + $0x128] sm:$0xff] %v367
    %550 = vst [vmem:[#allocation2 + $0x130] sm:$0xff] %v478
    %551 = vst [vmem:[#allocation2 + $0x138] sm:$0xff] %v480
    %552 = vst [vmem:[#allocation2 + $0x140] sm:$0xff] %v371
    %553 = vst [vmem:[#allocation2 + $0x148] sm:$0xff] %v373
    %554 = vst [vmem:[#allocation2 + $0x150] sm:$0xff] %v484
    %555 = vst [vmem:[#allocation2 + $0x158] sm:$0xff] %v486
    %556 = vst [vmem:[#allocation2 + $0x160] sm:$0xff] %v375
    %557 = vst [vmem:[#allocation2 + $0x168] sm:$0xff] %v377
    %558 = vst [vmem:[#allocation2 + $0x170] sm:$0xff] %v488
    %559 = vst [vmem:[#allocation2 + $0x178] sm:$0xff] %v490
    %560 = vst [vmem:[#allocation2 + $0x180] sm:$0xff] %v381
    %561 = vst [vmem:[#allocation2 + $0x188] sm:$0xff] %v383
    %562 = vst [vmem:[#allocation2 + $0x190] sm:$0xff] %v494
    %563 = vst [vmem:[#allocation2 + $0x198] sm:$0xff] %v496
    %564 = vst [vmem:[#allocation2 + $0x1a0] sm:$0xff] %v385
    %565 = vst [vmem:[#allocation2 + $0x1a8] sm:$0xff] %v387
    %566 = vst [vmem:[#allocation2 + $0x1b0] sm:$0xff] %v498
    %567 = vst [vmem:[#allocation2 + $0x1b8] sm:$0xff] %v500
    %568 = vst [vmem:[#allocation2 + $0x1c0] sm:$0xff] %v391
    %569 = vst [vmem:[#allocation2 + $0x1c8] sm:$0xff] %v393
    %570 = vst [vmem:[#allocation2 + $0x1d0] sm:$0xff] %v504
    %571 = vst [vmem:[#allocation2 + $0x1d8] sm:$0xff] %v506
    %572 = vst [vmem:[#allocation2 + $0x1e0] sm:$0xff] %v395
    %573 = vst [vmem:[#allocation2 + $0x1e8] sm:$0xff] %v397
    %574 = vst [vmem:[#allocation2 + $0x1f0] sm:$0xff] %v508
    %575 = vst [vmem:[#allocation2 + $0x1f8] sm:$0xff] %v510
    %v576 = vld [vmem:[%s2] sm:$0xff]
    %v577 = vld [vmem:[%s2 + $0x8] sm:$0xff]
    %v578 = vlaneseq
    %v579 = vand.u32 %v578, 127
    %vm580 = vcmp.lt.s32.totalorder %v579, 64
    %v581 = vld [vmem:[#allocation3 + $0x100] sm:$0xff]
    %v582 = vld [vmem:[#allocation3 + $0x108] sm:$0xff]
    %v583 = vld [vmem:[#allocation3 + $0x110] sm:$0xff]
    %v584 = vld [vmem:[#allocation3 + $0x118] sm:$0xff]
    %v585 = vld [vmem:[#allocation3 + $0x120] sm:$0xff]
    %v586 = vld [vmem:[#allocation3 + $0x128] sm:$0xff]
    %v587 = vld [vmem:[#allocation3 + $0x130] sm:$0xff]
    %v588 = vld [vmem:[#allocation3 + $0x138] sm:$0xff]
    %v589 = vld [vmem:[#allocation3 + $0x140] sm:$0xff]
    %v590 = vld [vmem:[#allocation3 + $0x148] sm:$0xff]
    %v591 = vld [vmem:[#allocation3 + $0x150] sm:$0xff]
    %v592 = vld [vmem:[#allocation3 + $0x158] sm:$0xff]
    %v593 = vld [vmem:[#allocation3 + $0x160] sm:$0xff]
    %v594 = vld [vmem:[#allocation3 + $0x168] sm:$0xff]
    %v595 = vld [vmem:[#allocation3 + $0x170] sm:$0xff]
    %v596 = vld [vmem:[#allocation3 + $0x178] sm:$0xff]
    %v597 = vld [vmem:[#allocation3 + $0x180] sm:$0xff]
    %v598 = vld [vmem:[#allocation3 + $0x188] sm:$0xff]
    %v599 = vld [vmem:[#allocation3 + $0x190] sm:$0xff]
    %v600 = vld [vmem:[#allocation3 + $0x198] sm:$0xff]
    %v601 = vld [vmem:[#allocation3 + $0x1a0] sm:$0xff]
    %v602 = vld [vmem:[#allocation3 + $0x1a8] sm:$0xff]
    %v603 = vld [vmem:[#allocation3 + $0x1b0] sm:$0xff]
    %v604 = vld [vmem:[#allocation3 + $0x1b8] sm:$0xff]
    %v605 = vld [vmem:[#allocation3 + $0x1c0] sm:$0xff]
    %v606 = vld [vmem:[#allocation3 + $0x1c8] sm:$0xff]
    %v607 = vld [vmem:[#allocation3 + $0x1d0] sm:$0xff]
    %v608 = vld [vmem:[#allocation3 + $0x1d8] sm:$0xff]
    %v609 = vld [vmem:[#allocation3 + $0x1e0] sm:$0xff]
    %v610 = vld [vmem:[#allocation3 + $0x1e8] sm:$0xff]
    %v611 = vld [vmem:[#allocation3 + $0x1f0] sm:$0xff]
    %v612 = vld [vmem:[#allocation3 + $0x1f8] sm:$0xff]
    %v613 = vld [vmem:[#allocation2] sm:$0xff]
    %v614 = vld [vmem:[#allocation2 + $0x8] sm:$0xff]
    %v615 = vld [vmem:[#allocation2 + $0x10] sm:$0xff]
    %v616 = vld [vmem:[#allocation2 + $0x18] sm:$0xff]
    %v617 = vpack.c.bf16 %v576, %v576
    %v650 = vunpack.c.l.b16 %v581
    %v651 = vunpack.c.h.b16 %v581
    %v652 = vunpack.c.l.b16 %v582
    %v653 = vunpack.c.h.b16 %v582
    %v654 = vunpack.c.l.b16 %v583
    %v655 = vunpack.c.h.b16 %v583
    %v656 = vunpack.c.l.b16 %v584
    %v657 = vunpack.c.h.b16 %v584
    %v658 = vunpack.c.l.b16 %v585
    %v659 = vunpack.c.h.b16 %v585
    %v660 = vunpack.c.l.b16 %v586
    %v661 = vunpack.c.h.b16 %v586
    %v662 = vunpack.c.l.b16 %v587
    %v663 = vunpack.c.h.b16 %v587
    %v664 = vunpack.c.l.b16 %v588
    %v665 = vunpack.c.h.b16 %v588
    %v666 = vunpack.c.l.b16 %v589
    %v667 = vunpack.c.h.b16 %v589
    %v668 = vunpack.c.l.b16 %v590
    %v669 = vunpack.c.h.b16 %v590
    %v670 = vunpack.c.l.b16 %v591
    %v671 = vunpack.c.h.b16 %v591
    %v672 = vunpack.c.l.b16 %v592
    %v673 = vunpack.c.h.b16 %v592
    %v674 = vunpack.c.l.b16 %v593
    %v675 = vunpack.c.h.b16 %v593
    %v676 = vunpack.c.l.b16 %v594
    %v677 = vunpack.c.h.b16 %v594
    %v678 = vunpack.c.l.b16 %v595
    %v679 = vunpack.c.h.b16 %v595
    %v680 = vunpack.c.l.b16 %v596
    %v681 = vunpack.c.h.b16 %v596
    %v682 = vunpack.c.l.b16 %v597
    %v683 = vunpack.c.h.b16 %v597
    %v684 = vunpack.c.l.b16 %v598
    %v685 = vunpack.c.h.b16 %v598
    %v686 = vunpack.c.l.b16 %v599
    %v687 = vunpack.c.h.b16 %v599
    %v688 = vunpack.c.l.b16 %v600
    %v689 = vunpack.c.h.b16 %v600
    %v690 = vunpack.c.l.b16 %v601
    %v691 = vunpack.c.h.b16 %v601
    %v692 = vunpack.c.l.b16 %v602
    %v693 = vunpack.c.h.b16 %v602
    %v694 = vunpack.c.l.b16 %v603
    %v695 = vunpack.c.h.b16 %v603
    %v696 = vunpack.c.l.b16 %v604
    %v697 = vunpack.c.h.b16 %v604
    %v698 = vunpack.c.l.b16 %v605
    %v699 = vunpack.c.h.b16 %v605
    %v700 = vunpack.c.l.b16 %v606
    %v701 = vunpack.c.h.b16 %v606
    %v702 = vunpack.c.l.b16 %v607
    %v703 = vunpack.c.h.b16 %v607
    %v704 = vunpack.c.l.b16 %v608
    %v705 = vunpack.c.h.b16 %v608
    %v706 = vunpack.c.l.b16 %v609
    %v707 = vunpack.c.h.b16 %v609
    %v708 = vunpack.c.l.b16 %v610
    %v709 = vunpack.c.h.b16 %v610
    %v710 = vunpack.c.l.b16 %v611
    %v711 = vunpack.c.h.b16 %v611
    %v712 = vunpack.c.l.b16 %v612
    %v713 = vunpack.c.h.b16 %v612
    %v714 = vpack.c.b16 %v654, %v650
    %v715 = vpack.c.b16 %v655, %v651
    %v716 = vpack.c.b16 %v656, %v652
    %v717 = vpack.c.b16 %v657, %v653
    %v718 = vpack.c.b16 %v662, %v658
    %v719 = vpack.c.b16 %v663, %v659
    %v720 = vpack.c.b16 %v664, %v660
    %v721 = vpack.c.b16 %v665, %v661
    %v722 = vpack.c.b16 %v670, %v666
    %v723 = vpack.c.b16 %v671, %v667
    %v724 = vpack.c.b16 %v672, %v668
    %v725 = vpack.c.b16 %v673, %v669
    %v726 = vpack.c.b16 %v678, %v674
    %v727 = vpack.c.b16 %v679, %v675
    %v728 = vpack.c.b16 %v680, %v676
    %v729 = vpack.c.b16 %v681, %v677
    %v730 = vpack.c.b16 %v686, %v682
    %v731 = vpack.c.b16 %v687, %v683
    %v732 = vpack.c.b16 %v688, %v684
    %v733 = vpack.c.b16 %v689, %v685
    %v734 = vpack.c.b16 %v694, %v690
    %v735 = vpack.c.b16 %v695, %v691
    %v736 = vpack.c.b16 %v696, %v692
    %v737 = vpack.c.b16 %v697, %v693
    %v738 = vpack.c.b16 %v702, %v698
    %v739 = vpack.c.b16 %v703, %v699
    %v740 = vpack.c.b16 %v704, %v700
    %v741 = vpack.c.b16 %v705, %v701
    %v742 = vpack.c.b16 %v710, %v706
    %v743 = vpack.c.b16 %v711, %v707
    %v744 = vpack.c.b16 %v712, %v708
    %v745 = vpack.c.b16 %v713, %v709
    %778 = vmatprep.subr.bf16.mxu0 %v715
    %779 = vmatpush1.bf16.msra.mxu0 %v714
    %780 = vmatprep.subr.bf16.mxu0 %v719
    %781 = vmatpush1.bf16.msra.mxu0 %v718
    %782 = vmatprep.subr.bf16.mxu0 %v723
    %783 = vmatpush1.bf16.msra.mxu0 %v722
    %784 = vmatprep.subr.bf16.mxu0 %v727
    %785 = vmatpush1.bf16.msra.mxu0 %v726
    %786 = vmatprep.subr.bf16.mxu0 %v731
    %787 = vmatpush1.bf16.msra.mxu0 %v730
    %788 = vmatprep.subr.bf16.mxu0 %v735
    %789 = vmatpush1.bf16.msra.mxu0 %v734
    %790 = vmatprep.subr.bf16.mxu0 %v739
    %791 = vmatpush1.bf16.msra.mxu0 %v738
    %792 = vmatprep.subr.bf16.mxu0 %v743
    %793 = vmatpush1.bf16.msra.mxu0 %v742
    %794 = vmatprep.subr.bf16.mxu0 0
    %795 = vmatpush1.bf16.msra.mxu0 0
    %796 = vmatprep.subr.bf16.mxu0 0
    %797 = vmatpush1.bf16.msra.mxu0 0
    %798 = vmatprep.subr.bf16.mxu0 0
    %799 = vmatpush1.bf16.msra.mxu0 0
    %800 = vmatprep.subr.bf16.mxu0 0
    %801 = vmatpush1.bf16.msra.mxu0 0
    %802 = vmatprep.subr.bf16.mxu0 0
    %803 = vmatpush1.bf16.msra.mxu0 0
    %804 = vmatprep.subr.bf16.mxu0 0
    %805 = vmatpush1.bf16.msra.mxu0 0
    %806 = vmatprep.subr.bf16.mxu0 0
    %807 = vmatpush1.bf16.msra.mxu0 0
    %808 = vmatprep.subr.bf16.mxu0 0
    %809 = vmatpush1.bf16.msra.mxu0 0
    %810 = vmatprep.mubr.bf16.mxu0 0
    %811 = vmatmul.mubr.bf16.gmra.mrb[0].mxu0 %v617
    %v812 = vpop.f32.mrb[0].mxu0
    %v813 = vadd.f32 0.0, %v812
    %v814 = vpop.f32.mrb[0].mxu0
    %v815 = vadd.f32 0.0, %v814
    %v816 = vpop.f32.mrb[0].mxu0
    %v817 = vpop.f32.mrb[0].mxu0
    %818 = vdwg.mxu0
    %819 = vmatprep.subr.bf16.mxu0 %v717
    %820 = vmatpush1.bf16.msra.mxu0 %v716
    %821 = vmatprep.subr.bf16.mxu0 %v721
    %822 = vmatpush1.bf16.msra.mxu0 %v720
    %823 = vmatprep.subr.bf16.mxu0 %v725
    %824 = vmatpush1.bf16.msra.mxu0 %v724
    %825 = vmatprep.subr.bf16.mxu0 %v729
    %826 = vmatpush1.bf16.msra.mxu0 %v728
    %827 = vmatprep.subr.bf16.mxu0 %v733
    %828 = vmatpush1.bf16.msra.mxu0 %v732
    %829 = vmatprep.subr.bf16.mxu0 %v737
    %830 = vmatpush1.bf16.msra.mxu0 %v736
    %831 = vmatprep.subr.bf16.mxu0 %v741
    %832 = vmatpush1.bf16.msra.mxu0 %v740
    %833 = vmatprep.subr.bf16.mxu0 %v745
    %834 = vmatpush1.bf16.msra.mxu0 %v744
    %835 = vmatprep.subr.bf16.mxu0 0
    %836 = vmatpush1.bf16.msra.mxu0 0
    %837 = vmatprep.subr.bf16.mxu0 0
    %838 = vmatpush1.bf16.msra.mxu0 0
    %839 = vmatprep.subr.bf16.mxu0 0
    %840 = vmatpush1.bf16.msra.mxu0 0
    %841 = vmatprep.subr.bf16.mxu0 0
    %842 = vmatpush1.bf16.msra.mxu0 0
    %843 = vmatprep.subr.bf16.mxu0 0
    %844 = vmatpush1.bf16.msra.mxu0 0
    %845 = vmatprep.subr.bf16.mxu0 0
    %846 = vmatpush1.bf16.msra.mxu0 0
    %847 = vmatprep.subr.bf16.mxu0 0
    %848 = vmatpush1.bf16.msra.mxu0 0
    %849 = vmatprep.subr.bf16.mxu0 0
    %850 = vmatpush1.bf16.msra.mxu0 0
    %851 = vmatprep.mubr.bf16.mxu0 0
    %852 = vmatmul.mubr.bf16.gmra.mrb[0].mxu0 %v617
    %v853 = vpop.f32.mrb[0].mxu0
    %v854 = vadd.f32 0.0, %v853
    %v855 = vpop.f32.mrb[0].mxu0
    %v856 = vadd.f32 0.0, %v855
    %v857 = vpop.f32.mrb[0].mxu0
    %v858 = vpop.f32.mrb[0].mxu0
    %859 = vdwg.mxu0
    %v860 = vadd.f32 %v613, %v813
    %v861 = vadd.f32 %v614, %v815
    %v862 = vadd.f32 %v615, %v854
    %v863 = vadd.f32 %v616, %v856
    %v864 = vxor.u32 %v860, 2147483648
    %v865 = vxor.u32 %v861, 2147483648
    %v866 = vxor.u32 %v862, 2147483648
    %v867 = vmul.f32 %v864, 1.442695
    %v868 = vpow.pop %v867
    %v869 = vmul.f32 %v865, 1.442695
    %v870 = vpow.pop %v869
    %v871 = vmul.f32 %v866, 1.442695
    %v872 = vpow.pop %v871
    %v873 = vadd.f32 %v868, 1.0
    %v874 = vadd.f32 %v870, 1.0
    %v875 = vadd.f32 %v872, 1.0
    %v876 = vrcp.pop %v873
    %v877 = vmul.f32 1.0, %v876
    %v878 = vrcp.pop %v874
    %v879 = vmul.f32 1.0, %v878
    %v880 = vrcp.pop %v875
    %v881 = vmul.f32 1.0, %v880
    %v882 = vtanh.pop %v863
    %v883 = vmul.f32 %v879, %v577
    %v884 = vmul.f32 %v877, %v882
    %v885 = vadd.f32 %v883, %v884
    %v886 = vtanh.pop %v885
    %v887 = vmul.f32 %v881, %v886
    %v888 = vld [vmem:[#allocation2 + $0x20] sm:$0xff]
    %v889 = vld [vmem:[#allocation2 + $0x28] sm:$0xff]
    %v890 = vld [vmem:[#allocation2 + $0x30] sm:$0xff]
    %v891 = vld [vmem:[#allocation2 + $0x38] sm:$0xff]
    %v892 = vpack.c.bf16 %v887, %v887
    %893 = vmatprep.subr.bf16.mxu0 %v715
    %894 = vmatpush1.bf16.msra.mxu0 %v714
    %895 = vmatprep.subr.bf16.mxu0 %v719
    %896 = vmatpush1.bf16.msra.mxu0 %v718
    %897 = vmatprep.subr.bf16.mxu0 %v723
    %898 = vmatpush1.bf16.msra.mxu0 %v722
    %899 = vmatprep.subr.bf16.mxu0 %v727
    %900 = vmatpush1.bf16.msra.mxu0 %v726
    %901 = vmatprep.subr.bf16.mxu0 %v731
    %902 = vmatpush1.bf16.msra.mxu0 %v730
    %903 = vmatprep.subr.bf16.mxu0 %v735
    %904 = vmatpush1.bf16.msra.mxu0 %v734
    %905 = vmatprep.subr.bf16.mxu0 %v739
    %906 = vmatpush1.bf16.msra.mxu0 %v738
    %907 = vmatprep.subr.bf16.mxu0 %v743
    %908 = vmatpush1.bf16.msra.mxu0 %v742
    %909 = vmatprep.subr.bf16.mxu0 0
    %910 = vmatpush1.bf16.msra.mxu0 0
    %911 = vmatprep.subr.bf16.mxu0 0
    %912 = vmatpush1.bf16.msra.mxu0 0
    %913 = vmatprep.subr.bf16.mxu0 0
    %914 = vmatpush1.bf16.msra.mxu0 0
    %915 = vmatprep.subr.bf16.mxu0 0
    %916 = vmatpush1.bf16.msra.mxu0 0
    %917 = vmatprep.subr.bf16.mxu0 0
    %918 = vmatpush1.bf16.msra.mxu0 0
    %919 = vmatprep.subr.bf16.mxu0 0
    %920 = vmatpush1.bf16.msra.mxu0 0
    %921 = vmatprep.subr.bf16.mxu0 0
    %922 = vmatpush1.bf16.msra.mxu0 0
    %923 = vmatprep.subr.bf16.mxu0 0
    %924 = vmatpush1.bf16.msra.mxu0 0
    %925 = vmatprep.mubr.bf16.mxu0 0
    %926 = vmatmul.mubr.bf16.gmra.mrb[0].mxu0 %v892
    %v927 = vpop.f32.mrb[0].mxu0
    %v928 = vadd.f32 0.0, %v927
    %v929 = vpop.f32.mrb[0].mxu0
    %v930 = vadd.f32 0.0, %v929
    %v931 = vpop.f32.mrb[0].mxu0
    %v932 = vpop.f32.mrb[0].mxu0
    %933 = vdwg.mxu0
    %934 = vmatprep.subr.bf16.mxu0 %v717
    %935 = vmatpush1.bf16.msra.mxu0 %v716
    %936 = vmatprep.subr.bf16.mxu0 %v721
    %937 = vmatpush1.bf16.msra.mxu0 %v720
    %938 = vmatprep.subr.bf16.mxu0 %v725
    %939 = vmatpush1.bf16.msra.mxu0 %v724
    %940 = vmatprep.subr.bf16.mxu0 %v729
    %941 = vmatpush1.bf16.msra.mxu0 %v728
    %942 = vmatprep.subr.bf16.mxu0 %v733
    %943 = vmatpush1.bf16.msra.mxu0 %v732
    %944 = vmatprep.subr.bf16.mxu0 %v737
    %945 = vmatpush1.bf16.msra.mxu0 %v736
    %946 = vmatprep.subr.bf16.mxu0 %v741
    %947 = vmatpush1.bf16.msra.mxu0 %v740
    %948 = vmatprep.subr.bf16.mxu0 %v745
    %949 = vmatpush1.bf16.msra.mxu0 %v744
    %950 = vmatprep.subr.bf16.mxu0 0
    %951 = vmatpush1.bf16.msra.mxu0 0
    %952 = vmatprep.subr.bf16.mxu0 0
    %953 = vmatpush1.bf16.msra.mxu0 0
    %954 = vmatprep.subr.bf16.mxu0 0
    %955 = vmatpush1.bf16.msra.mxu0 0
    %956 = vmatprep.subr.bf16.mxu0 0
    %957 = vmatpush1.bf16.msra.mxu0 0
    %958 = vmatprep.subr.bf16.mxu0 0
    %959 = vmatpush1.bf16.msra.mxu0 0
    %960 = vmatprep.subr.bf16.mxu0 0
    %961 = vmatpush1.bf16.msra.mxu0 0
    %962 = vmatprep.subr.bf16.mxu0 0
    %963 = vmatpush1.bf16.msra.mxu0 0
    %964 = vmatprep.subr.bf16.mxu0 0
    %965 = vmatpush1.bf16.msra.mxu0 0
    %966 = vmatprep.mubr.bf16.mxu0 0
    %967 = vmatmul.mubr.bf16.gmra.mrb[0].mxu0 %v892
    %v968 = vpop.f32.mrb[0].mxu0
    %v969 = vadd.f32 0.0, %v968
    %v970 = vpop.f32.mrb[0].mxu0
    %v971 = vadd.f32 0.0, %v970
    %v972 = vpop.f32.mrb[0].mxu0
    %v973 = vpop.f32.mrb[0].mxu0
    %974 = vdwg.mxu0
    %v975 = vadd.f32 %v888, %v928
    %v976 = vadd.f32 %v889, %v930
    %v977 = vadd.f32 %v890, %v969
    %v978 = vadd.f32 %v891, %v971
    %v979 = vxor.u32 %v975, 2147483648
    %v980 = vxor.u32 %v976, 2147483648
    %v981 = vxor.u32 %v977, 2147483648
    %v982 = vmul.f32 %v979, 1.442695
    %v983 = vpow.pop %v982
    %v984 = vmul.f32 %v980, 1.442695
    %v985 = vpow.pop %v984
    %v986 = vmul.f32 %v981, 1.442695
    %v987 = vpow.pop %v986
    %v988 = vadd.f32 %v983, 1.0
    %v989 = vadd.f32 %v985, 1.0
    %v990 = vadd.f32 %v987, 1.0
    %v991 = vrcp.pop %v988
    %v992 = vmul.f32 1.0, %v991
    %v993 = vrcp.pop %v989
    %v994 = vmul.f32 1.0, %v993
    %v995 = vrcp.pop %v990
    %v996 = vmul.f32 1.0, %v995
    %v997 = vtanh.pop %v978
    %v998 = vmul.f32 %v994, %v885
    %v999 = vmul.f32 %v992, %v997
    %v1000 = vadd.f32 %v998, %v999
    %v1001 = vtanh.pop %v1000
    %v1002 = vmul.f32 %v996, %v1001
    %v1003 = vld [vmem:[#allocation2 + $0x40] sm:$0xff]
    %v1004 = vld [vmem:[#allocation2 + $0x48] sm:$0xff]
    %v1005 = vld [vmem:[#allocation2 + $0x50] sm:$0xff]
    %v1006 = vld [vmem:[#allocation2 + $0x58] sm:$0xff]
    %v1007 = vpack.c.bf16 %v1002, %v1002
    %1008 = vmatprep.subr.bf16.mxu0 %v715
    %1009 = vmatpush1.bf16.msra.mxu0 %v714
    %1010 = vmatprep.subr.bf16.mxu0 %v719
    %1011 = vmatpush1.bf16.msra.mxu0 %v718
    %1012 = vmatprep.subr.bf16.mxu0 %v723
    %1013 = vmatpush1.bf16.msra.mxu0 %v722
    %1014 = vmatprep.subr.bf16.mxu0 %v727
    %1015 = vmatpush1.bf16.msra.mxu0 %v726
    %1016 = vmatprep.subr.bf16.mxu0 %v731
    %1017 = vmatpush1.bf16.msra.mxu0 %v730
    %1018 = vmatprep.subr.bf16.mxu0 %v735
    %1019 = vmatpush1.bf16.msra.mxu0 %v734
    %1020 = vmatprep.subr.bf16.mxu0 %v739
    %1021 = vmatpush1.bf16.msra.mxu0 %v738
    %1022 = vmatprep.subr.bf16.mxu0 %v743
    %1023 = vmatpush1.bf16.msra.mxu0 %v742
    %1024 = vmatprep.subr.bf16.mxu0 0
    %1025 = vmatpush1.bf16.msra.mxu0 0
    %1026 = vmatprep.subr.bf16.mxu0 0
    %1027 = vmatpush1.bf16.msra.mxu0 0
    %1028 = vmatprep.subr.bf16.mxu0 0
    %1029 = vmatpush1.bf16.msra.mxu0 0
    %1030 = vmatprep.subr.bf16.mxu0 0
    %1031 = vmatpush1.bf16.msra.mxu0 0
    %1032 = vmatprep.subr.bf16.mxu0 0
    %1033 = vmatpush1.bf16.msra.mxu0 0
    %1034 = vmatprep.subr.bf16.mxu0 0
    %1035 = vmatpush1.bf16.msra.mxu0 0
    %1036 = vmatprep.subr.bf16.mxu0 0
    %1037 = vmatpush1.bf16.msra.mxu0 0
    %1038 = vmatprep.subr.bf16.mxu0 0
    %1039 = vmatpush1.bf16.msra.mxu0 0
    %1040 = vmatprep.mubr.bf16.mxu0 0
    %1041 = vmatmul.mubr.bf16.gmra.mrb[0].mxu0 %v1007
    %v1042 = vpop.f32.mrb[0].mxu0
    %v1043 = vadd.f32 0.0, %v1042
    %v1044 = vpop.f32.mrb[0].mxu0
    %v1045 = vadd.f32 0.0, %v1044
    %v1046 = vpop.f32.mrb[0].mxu0
    %v1047 = vpop.f32.mrb[0].mxu0
    %1048 = vdwg.mxu0
    %1049 = vmatprep.subr.bf16.mxu0 %v717
    %1050 = vmatpush1.bf16.msra.mxu0 %v716
    %1051 = vmatprep.subr.bf16.mxu0 %v721
    %1052 = vmatpush1.bf16.msra.mxu0 %v720
    %1053 = vmatprep.subr.bf16.mxu0 %v725
    %1054 = vmatpush1.bf16.msra.mxu0 %v724
    %1055 = vmatprep.subr.bf16.mxu0 %v729
    %1056 = vmatpush1.bf16.msra.mxu0 %v728
    %1057 = vmatprep.subr.bf16.mxu0 %v733
    %1058 = vmatpush1.bf16.msra.mxu0 %v732
    %1059 = vmatprep.subr.bf16.mxu0 %v737
    %1060 = vmatpush1.bf16.msra.mxu0 %v736
    %1061 = vmatprep.subr.bf16.mxu0 %v741
    %1062 = vmatpush1.bf16.msra.mxu0 %v740
    %1063 = vmatprep.subr.bf16.mxu0 %v745
    %1064 = vmatpush1.bf16.msra.mxu0 %v744
    %1065 = vmatprep.subr.bf16.mxu0 0
    %1066 = vmatpush1.bf16.msra.mxu0 0
    %1067 = vmatprep.subr.bf16.mxu0 0
    %1068 = vmatpush1.bf16.msra.mxu0 0
    %1069 = vmatprep.subr.bf16.mxu0 0
    %1070 = vmatpush1.bf16.msra.mxu0 0
    %1071 = vmatprep.subr.bf16.mxu0 0
    %1072 = vmatpush1.bf16.msra.mxu0 0
    %1073 = vmatprep.subr.bf16.mxu0 0
    %1074 = vmatpush1.bf16.msra.mxu0 0
    %1075 = vmatprep.subr.bf16.mxu0 0
    %1076 = vmatpush1.bf16.msra.mxu0 0
    %1077 = vmatprep.subr.bf16.mxu0 0
    %1078 = vmatpush1.bf16.msra.mxu0 0
    %1079 = vmatprep.subr.bf16.mxu0 0
    %1080 = vmatpush1.bf16.msra.mxu0 0
    %1081 = vmatprep.mubr.bf16.mxu0 0
    %1082 = vmatmul.mubr.bf16.gmra.mrb[0].mxu0 %v1007
    %v1083 = vpop.f32.mrb[0].mxu0
    %v1084 = vadd.f32 0.0, %v1083
    %v1085 = vpop.f32.mrb[0].mxu0
    %v1086 = vadd.f32 0.0, %v1085
    %v1087 = vpop.f32.mrb[0].mxu0
    %v1088 = vpop.f32.mrb[0].mxu0
    %1089 = vdwg.mxu0
    %v1090 = vadd.f32 %v1003, %v1043
    %v1091 = vadd.f32 %v1004, %v1045
    %v1092 = vadd.f32 %v1005, %v1084
    %v1093 = vadd.f32 %v1006, %v1086
    %v1094 = vxor.u32 %v1090, 2147483648
    %v1095 = vxor.u32 %v1091, 2147483648
    %v1096 = vxor.u32 %v1092, 2147483648
    %v1097 = vmul.f32 %v1094, 1.442695
    %v1098 = vpow.pop %v1097
    %v1099 = vmul.f32 %v1095, 1.442695
    %v1100 = vpow.pop %v1099
    %v1101 = vmul.f32 %v1096, 1.442695
    %v1102 = vpow.pop %v1101
    %v1103 = vadd.f32 %v1098, 1.0
    %v1104 = vadd.f32 %v1100, 1.0
    %v1105 = vadd.f32 %v1102, 1.0
    %v1106 = vrcp.pop %v1103
    %v1107 = vmul.f32 1.0, %v1106
    %v1108 = vrcp.pop %v1104
    %v1109 = vmul.f32 1.0, %v1108
    %v1110 = vrcp.pop %v1105
    %v1111 = vmul.f32 1.0, %v1110
    %v1112 = vtanh.pop %v1093
    %v1113 = vmul.f32 %v1109, %v1000
    %v1114 = vmul.f32 %v1107, %v1112
    %v1115 = vadd.f32 %v1113, %v1114
    %v1116 = vtanh.pop %v1115
    %v1117 = vmul.f32 %v1111, %v1116
    %v1118 = vld [vmem:[#allocation2 + $0x60] sm:$0xff]
    %v1119 = vld [vmem:[#allocation2 + $0x68] sm:$0xff]
    %v1120 = vld [vmem:[#allocation2 + $0x70] sm:$0xff]
    %v1121 = vld [vmem:[#allocation2 + $0x78] sm:$0xff]
    %v1122 = vpack.c.bf16 %v1117, %v1117
    %1123 = vmatprep.subr.bf16.mxu0 %v715
    %1124 = vmatpush1.bf16.msra.mxu0 %v714
    %1125 = vmatprep.subr.bf16.mxu0 %v719
    %1126 = vmatpush1.bf16.msra.mxu0 %v718
    %1127 = vmatprep.subr.bf16.mxu0 %v723
    %1128 = vmatpush1.bf16.msra.mxu0 %v722
    %1129 = vmatprep.subr.bf16.mxu0 %v727
    %1130 = vmatpush1.bf16.msra.mxu0 %v726
    %1131 = vmatprep.subr.bf16.mxu0 %v731
    %1132 = vmatpush1.bf16.msra.mxu0 %v730
    %1133 = vmatprep.subr.bf16.mxu0 %v735
    %1134 = vmatpush1.bf16.msra.mxu0 %v734
    %1135 = vmatprep.subr.bf16.mxu0 %v739
    %1136 = vmatpush1.bf16.msra.mxu0 %v738
    %1137 = vmatprep.subr.bf16.mxu0 %v743
    %1138 = vmatpush1.bf16.msra.mxu0 %v742
    %1139 = vmatprep.subr.bf16.mxu0 0
    %1140 = vmatpush1.bf16.msra.mxu0 0
    %1141 = vmatprep.subr.bf16.mxu0 0
    %1142 = vmatpush1.bf16.msra.mxu0 0
    %1143 = vmatprep.subr.bf16.mxu0 0
    %1144 = vmatpush1.bf16.msra.mxu0 0
    %1145 = vmatprep.subr.bf16.mxu0 0
    %1146 = vmatpush1.bf16.msra.mxu0 0
    %1147 = vmatprep.subr.bf16.mxu0 0
    %1148 = vmatpush1.bf16.msra.mxu0 0
    %1149 = vmatprep.subr.bf16.mxu0 0
    %1150 = vmatpush1.bf16.msra.mxu0 0
    %1151 = vmatprep.subr.bf16.mxu0 0
    %1152 = vmatpush1.bf16.msra.mxu0 0
    %1153 = vmatprep.subr.bf16.mxu0 0
    %1154 = vmatpush1.bf16.msra.mxu0 0
    %1155 = vmatprep.mubr.bf16.mxu0 0
    %1156 = vmatmul.mubr.bf16.gmra.mrb[0].mxu0 %v1122
    %v1157 = vpop.f32.mrb[0].mxu0
    %v1158 = vadd.f32 0.0, %v1157
    %v1159 = vpop.f32.mrb[0].mxu0
    %v1160 = vadd.f32 0.0, %v1159
    %v1161 = vpop.f32.mrb[0].mxu0
    %v1162 = vpop.f32.mrb[0].mxu0
    %1163 = vdwg.mxu0
    %1164 = vmatprep.subr.bf16.mxu0 %v717
    %1165 = vmatpush1.bf16.msra.mxu0 %v716
    %1166 = vmatprep.subr.bf16.mxu0 %v721
    %1167 = vmatpush1.bf16.msra.mxu0 %v720
    %1168 = vmatprep.subr.bf16.mxu0 %v725
    %1169 = vmatpush1.bf16.msra.mxu0 %v724
    %1170 = vmatprep.subr.bf16.mxu0 %v729
    %1171 = vmatpush1.bf16.msra.mxu0 %v728
    %1172 = vmatprep.subr.bf16.mxu0 %v733
    %1173 = vmatpush1.bf16.msra.mxu0 %v732
    %1174 = vmatprep.subr.bf16.mxu0 %v737
    %1175 = vmatpush1.bf16.msra.mxu0 %v736
    %1176 = vmatprep.subr.bf16.mxu0 %v741
    %1177 = vmatpush1.bf16.msra.mxu0 %v740
    %1178 = vmatprep.subr.bf16.mxu0 %v745
    %1179 = vmatpush1.bf16.msra.mxu0 %v744
    %1180 = vmatprep.subr.bf16.mxu0 0
    %1181 = vmatpush1.bf16.msra.mxu0 0
    %1182 = vmatprep.subr.bf16.mxu0 0
    %1183 = vmatpush1.bf16.msra.mxu0 0
    %1184 = vmatprep.subr.bf16.mxu0 0
    %1185 = vmatpush1.bf16.msra.mxu0 0
    %1186 = vmatprep.subr.bf16.mxu0 0
    %1187 = vmatpush1.bf16.msra.mxu0 0
    %1188 = vmatprep.subr.bf16.mxu0 0
    %1189 = vmatpush1.bf16.msra.mxu0 0
    %1190 = vmatprep.subr.bf16.mxu0 0
    %1191 = vmatpush1.bf16.msra.mxu0 0
    %1192 = vmatprep.subr.bf16.mxu0 0
    %1193 = vmatpush1.bf16.msra.mxu0 0
    %1194 = vmatprep.subr.bf16.mxu0 0
    %1195 = vmatpush1.bf16.msra.mxu0 0
    %1196 = vmatprep.mubr.bf16.mxu0 0
    %1197 = vmatmul.mubr.bf16.gmra.mrb[0].mxu0 %v1122
    %v1198 = vpop.f32.mrb[0].mxu0
    %v1199 = vadd.f32 0.0, %v1198
    %v1200 = vpop.f32.mrb[0].mxu0
    %v1201 = vadd.f32 0.0, %v1200
    %v1202 = vpop.f32.mrb[0].mxu0
    %v1203 = vpop.f32.mrb[0].mxu0
    %1204 = vdwg.mxu0
    %v1205 = vadd.f32 %v1118, %v1158
    %v1206 = vadd.f32 %v1119, %v1160
    %v1207 = vadd.f32 %v1120, %v1199
    %v1208 = vadd.f32 %v1121, %v1201
    %v1209 = vxor.u32 %v1205, 2147483648
    %v1210 = vxor.u32 %v1206, 2147483648
    %v1211 = vxor.u32 %v1207, 2147483648
    %v1212 = vmul.f32 %v1209, 1.442695
    %v1213 = vpow.pop %v1212
    %v1214 = vmul.f32 %v1210, 1.442695
    %v1215 = vpow.pop %v1214
    %v1216 = vmul.f32 %v1211, 1.442695
    %v1217 = vpow.pop %v1216
    %v1218 = vadd.f32 %v1213, 1.0
    %v1219 = vadd.f32 %v1215, 1.0
    %v1220 = vadd.f32 %v1217, 1.0
    %v1221 = vrcp.pop %v1218
    %v1222 = vmul.f32 1.0, %v1221
    %v1223 = vrcp.pop %v1219
    %v1224 = vmul.f32 1.0, %v1223
    %v1225 = vrcp.pop %v1220
    %v1226 = vmul.f32 1.0, %v1225
    %v1227 = vtanh.pop %v1208
    %v1228 = vmul.f32 %v1224, %v1115
    %v1229 = vmul.f32 %v1222, %v1227
    %v1230 = vadd.f32 %v1228, %v1229
    %v1231 = vtanh.pop %v1230
    %v1232 = vmul.f32 %v1226, %v1231
    %v1233 = vld [vmem:[#allocation2 + $0x80] sm:$0xff]
    %v1234 = vld [vmem:[#allocation2 + $0x88] sm:$0xff]
    %v1235 = vld [vmem:[#allocation2 + $0x90] sm:$0xff]
    %v1236 = vld [vmem:[#allocation2 + $0x98] sm:$0xff]
    %v1237 = vpack.c.bf16 %v1232, %v1232
    %1238 = vmatprep.subr.bf16.mxu0 %v715
    %1239 = vmatpush1.bf16.msra.mxu0 %v714
    %1240 = vmatprep.subr.bf16.mxu0 %v719
    %1241 = vmatpush1.bf16.msra.mxu0 %v718
    %1242 = vmatprep.subr.bf16.mxu0 %v723
    %1243 = vmatpush1.bf16.msra.mxu0 %v722
    %1244 = vmatprep.subr.bf16.mxu0 %v727
    %1245 = vmatpush1.bf16.msra.mxu0 %v726
    %1246 = vmatprep.subr.bf16.mxu0 %v731
    %1247 = vmatpush1.bf16.msra.mxu0 %v730
    %1248 = vmatprep.subr.bf16.mxu0 %v735
    %1249 = vmatpush1.bf16.msra.mxu0 %v734
    %1250 = vmatprep.subr.bf16.mxu0 %v739
    %1251 = vmatpush1.bf16.msra.mxu0 %v738
    %1252 = vmatprep.subr.bf16.mxu0 %v743
    %1253 = vmatpush1.bf16.msra.mxu0 %v742
    %1254 = vmatprep.subr.bf16.mxu0 0
    %1255 = vmatpush1.bf16.msra.mxu0 0
    %1256 = vmatprep.subr.bf16.mxu0 0
    %1257 = vmatpush1.bf16.msra.mxu0 0
    %1258 = vmatprep.subr.bf16.mxu0 0
    %1259 = vmatpush1.bf16.msra.mxu0 0
    %1260 = vmatprep.subr.bf16.mxu0 0
    %1261 = vmatpush1.bf16.msra.mxu0 0
    %1262 = vmatprep.subr.bf16.mxu0 0
    %1263 = vmatpush1.bf16.msra.mxu0 0
    %1264 = vmatprep.subr.bf16.mxu0 0
    %1265 = vmatpush1.bf16.msra.mxu0 0
    %1266 = vmatprep.subr.bf16.mxu0 0
    %1267 = vmatpush1.bf16.msra.mxu0 0
    %1268 = vmatprep.subr.bf16.mxu0 0
    %1269 = vmatpush1.bf16.msra.mxu0 0
    %1270 = vmatprep.mubr.bf16.mxu0 0
    %1271 = vmatmul.mubr.bf16.gmra.mrb[0].mxu0 %v1237
    %v1272 = vpop.f32.mrb[0].mxu0
    %v1273 = vadd.f32 0.0, %v1272
    %v1274 = vpop.f32.mrb[0].mxu0
    %v1275 = vadd.f32 0.0, %v1274
    %v1276 = vpop.f32.mrb[0].mxu0
    %v1277 = vpop.f32.mrb[0].mxu0
    %1278 = vdwg.mxu0
    %1279 = vmatprep.subr.bf16.mxu0 %v717
    %1280 = vmatpush1.bf16.msra.mxu0 %v716
    %1281 = vmatprep.subr.bf16.mxu0 %v721
    %1282 = vmatpush1.bf16.msra.mxu0 %v720
    %1283 = vmatprep.subr.bf16.mxu0 %v725
    %1284 = vmatpush1.bf16.msra.mxu0 %v724
    %1285 = vmatprep.subr.bf16.mxu0 %v729
    %1286 = vmatpush1.bf16.msra.mxu0 %v728
    %1287 = vmatprep.subr.bf16.mxu0 %v733
    %1288 = vmatpush1.bf16.msra.mxu0 %v732
    %1289 = vmatprep.subr.bf16.mxu0 %v737
    %1290 = vmatpush1.bf16.msra.mxu0 %v736
    %1291 = vmatprep.subr.bf16.mxu0 %v741
    %1292 = vmatpush1.bf16.msra.mxu0 %v740
    %1293 = vmatprep.subr.bf16.mxu0 %v745
    %1294 = vmatpush1.bf16.msra.mxu0 %v744
    %1295 = vmatprep.subr.bf16.mxu0 0
    %1296 = vmatpush1.bf16.msra.mxu0 0
    %1297 = vmatprep.subr.bf16.mxu0 0
    %1298 = vmatpush1.bf16.msra.mxu0 0
    %1299 = vmatprep.subr.bf16.mxu0 0
    %1300 = vmatpush1.bf16.msra.mxu0 0
    %1301 = vmatprep.subr.bf16.mxu0 0
    %1302 = vmatpush1.bf16.msra.mxu0 0
    %1303 = vmatprep.subr.bf16.mxu0 0
    %1304 = vmatpush1.bf16.msra.mxu0 0
    %1305 = vmatprep.subr.bf16.mxu0 0
    %1306 = vmatpush1.bf16.msra.mxu0 0
    %1307 = vmatprep.subr.bf16.mxu0 0
    %1308 = vmatpush1.bf16.msra.mxu0 0
    %1309 = vmatprep.subr.bf16.mxu0 0
    %1310 = vmatpush1.bf16.msra.mxu0 0
    %1311 = vmatprep.mubr.bf16.mxu0 0
    %1312 = vmatmul.mubr.bf16.gmra.mrb[0].mxu0 %v1237
    %v1313 = vpop.f32.mrb[0].mxu0
    %v1314 = vadd.f32 0.0, %v1313
    %v1315 = vpop.f32.mrb[0].mxu0
    %v1316 = vadd.f32 0.0, %v1315
    %v1317 = vpop.f32.mrb[0].mxu0
    %v1318 = vpop.f32.mrb[0].mxu0
    %1319 = vdwg.mxu0
    %v1320 = vadd.f32 %v1233, %v1273
    %v1321 = vadd.f32 %v1234, %v1275
    %v1322 = vadd.f32 %v1235, %v1314
    %v1323 = vadd.f32 %v1236, %v1316
    %v1324 = vxor.u32 %v1320, 2147483648
    %v1325 = vxor.u32 %v1321, 2147483648
    %v1326 = vxor.u32 %v1322, 2147483648
    %v1327 = vmul.f32 %v1324, 1.442695
    %v1328 = vpow.pop %v1327
    %v1329 = vmul.f32 %v1325, 1.442695
    %v1330 = vpow.pop %v1329
    %v1331 = vmul.f32 %v1326, 1.442695
    %v1332 = vpow.pop %v1331
    %v1333 = vadd.f32 %v1328, 1.0
    %v1334 = vadd.f32 %v1330, 1.0
    %v1335 = vadd.f32 %v1332, 1.0
    %v1336 = vrcp.pop %v1333
    %v1337 = vmul.f32 1.0, %v1336
    %v1338 = vrcp.pop %v1334
    %v1339 = vmul.f32 1.0, %v1338
    %v1340 = vrcp.pop %v1335
    %v1341 = vmul.f32 1.0, %v1340
    %v1342 = vtanh.pop %v1323
    %v1343 = vmul.f32 %v1339, %v1230
    %v1344 = vmul.f32 %v1337, %v1342
    %v1345 = vadd.f32 %v1343, %v1344
    %v1346 = vtanh.pop %v1345
    %v1347 = vmul.f32 %v1341, %v1346
    %v1348 = vld [vmem:[#allocation2 + $0xa0] sm:$0xff]
    %v1349 = vld [vmem:[#allocation2 + $0xa8] sm:$0xff]
    %v1350 = vld [vmem:[#allocation2 + $0xb0] sm:$0xff]
    %v1351 = vld [vmem:[#allocation2 + $0xb8] sm:$0xff]
    %v1352 = vpack.c.bf16 %v1347, %v1347
    %1353 = vmatprep.subr.bf16.mxu0 %v715
    %1354 = vmatpush1.bf16.msra.mxu0 %v714
    %1355 = vmatprep.subr.bf16.mxu0 %v719
    %1356 = vmatpush1.bf16.msra.mxu0 %v718
    %1357 = vmatprep.subr.bf16.mxu0 %v723
    %1358 = vmatpush1.bf16.msra.mxu0 %v722
    %1359 = vmatprep.subr.bf16.mxu0 %v727
    %1360 = vmatpush1.bf16.msra.mxu0 %v726
    %1361 = vmatprep.subr.bf16.mxu0 %v731
    %1362 = vmatpush1.bf16.msra.mxu0 %v730
    %1363 = vmatprep.subr.bf16.mxu0 %v735
    %1364 = vmatpush1.bf16.msra.mxu0 %v734
    %1365 = vmatprep.subr.bf16.mxu0 %v739
    %1366 = vmatpush1.bf16.msra.mxu0 %v738
    %1367 = vmatprep.subr.bf16.mxu0 %v743
    %1368 = vmatpush1.bf16.msra.mxu0 %v742
    %1369 = vmatprep.subr.bf16.mxu0 0
    %1370 = vmatpush1.bf16.msra.mxu0 0
    %1371 = vmatprep.subr.bf16.mxu0 0
    %1372 = vmatpush1.bf16.msra.mxu0 0
    %1373 = vmatprep.subr.bf16.mxu0 0
    %1374 = vmatpush1.bf16.msra.mxu0 0
    %1375 = vmatprep.subr.bf16.mxu0 0
    %1376 = vmatpush1.bf16.msra.mxu0 0
    %1377 = vmatprep.subr.bf16.mxu0 0
    %1378 = vmatpush1.bf16.msra.mxu0 0
    %1379 = vmatprep.subr.bf16.mxu0 0
    %1380 = vmatpush1.bf16.msra.mxu0 0
    %1381 = vmatprep.subr.bf16.mxu0 0
    %1382 = vmatpush1.bf16.msra.mxu0 0
    %1383 = vmatprep.subr.bf16.mxu0 0
    %1384 = vmatpush1.bf16.msra.mxu0 0
    %1385 = vmatprep.mubr.bf16.mxu0 0
    %1386 = vmatmul.mubr.bf16.gmra.mrb[0].mxu0 %v1352
    %v1387 = vpop.f32.mrb[0].mxu0
    %v1388 = vadd.f32 0.0, %v1387
    %v1389 = vpop.f32.mrb[0].mxu0
    %v1390 = vadd.f32 0.0, %v1389
    %v1391 = vpop.f32.mrb[0].mxu0
    %v1392 = vpop.f32.mrb[0].mxu0
    %1393 = vdwg.mxu0
    %1394 = vmatprep.subr.bf16.mxu0 %v717
    %1395 = vmatpush1.bf16.msra.mxu0 %v716
    %1396 = vmatprep.subr.bf16.mxu0 %v721
    %1397 = vmatpush1.bf16.msra.mxu0 %v720
    %1398 = vmatprep.subr.bf16.mxu0 %v725
    %1399 = vmatpush1.bf16.msra.mxu0 %v724
    %1400 = vmatprep.subr.bf16.mxu0 %v729
    %1401 = vmatpush1.bf16.msra.mxu0 %v728
    %1402 = vmatprep.subr.bf16.mxu0 %v733
    %1403 = vmatpush1.bf16.msra.mxu0 %v732
    %1404 = vmatprep.subr.bf16.mxu0 %v737
    %1405 = vmatpush1.bf16.msra.mxu0 %v736
    %1406 = vmatprep.subr.bf16.mxu0 %v741
    %1407 = vmatpush1.bf16.msra.mxu0 %v740
    %1408 = vmatprep.subr.bf16.mxu0 %v745
    %1409 = vmatpush1.bf16.msra.mxu0 %v744
    %1410 = vmatprep.subr.bf16.mxu0 0
    %1411 = vmatpush1.bf16.msra.mxu0 0
    %1412 = vmatprep.subr.bf16.mxu0 0
    %1413 = vmatpush1.bf16.msra.mxu0 0
    %1414 = vmatprep.subr.bf16.mxu0 0
    %1415 = vmatpush1.bf16.msra.mxu0 0
    %1416 = vmatprep.subr.bf16.mxu0 0
    %1417 = vmatpush1.bf16.msra.mxu0 0
    %1418 = vmatprep.subr.bf16.mxu0 0
    %1419 = vmatpush1.bf16.msra.mxu0 0
    %1420 = vmatprep.subr.bf16.mxu0 0
    %1421 = vmatpush1.bf16.msra.mxu0 0
    %1422 = vmatprep.subr.bf16.mxu0 0
    %1423 = vmatpush1.bf16.msra.mxu0 0
    %1424 = vmatprep.subr.bf16.mxu0 0
    %1425 = vmatpush1.bf16.msra.mxu0 0
    %1426 = vmatprep.mubr.bf16.mxu0 0
    %1427 = vmatmul.mubr.bf16.gmra.mrb[0].mxu0 %v1352
    %v1428 = vpop.f32.mrb[0].mxu0
    %v1429 = vadd.f32 0.0, %v1428
    %v1430 = vpop.f32.mrb[0].mxu0
    %v1431 = vadd.f32 0.0, %v1430
    %v1432 = vpop.f32.mrb[0].mxu0
    %v1433 = vpop.f32.mrb[0].mxu0
    %1434 = vdwg.mxu0
    %v1435 = vadd.f32 %v1348, %v1388
    %v1436 = vadd.f32 %v1349, %v1390
    %v1437 = vadd.f32 %v1350, %v1429
    %v1438 = vadd.f32 %v1351, %v1431
    %v1439 = vxor.u32 %v1435, 2147483648
    %v1440 = vxor.u32 %v1436, 2147483648
    %v1441 = vxor.u32 %v1437, 2147483648
    %v1442 = vmul.f32 %v1439, 1.442695
    %v1443 = vpow.pop %v1442
    %v1444 = vmul.f32 %v1440, 1.442695
    %v1445 = vpow.pop %v1444
    %v1446 = vmul.f32 %v1441, 1.442695
    %v1447 = vpow.pop %v1446
    %v1448 = vadd.f32 %v1443, 1.0
    %v1449 = vadd.f32 %v1445, 1.0
    %v1450 = vadd.f32 %v1447, 1.0
    %v1451 = vrcp.pop %v1448
    %v1452 = vmul.f32 1.0, %v1451
    %v1453 = vrcp.pop %v1449
    %v1454 = vmul.f32 1.0, %v1453
    %v1455 = vrcp.pop %v1450
    %v1456 = vmul.f32 1.0, %v1455
    %v1457 = vtanh.pop %v1438
    %v1458 = vmul.f32 %v1454, %v1345
    %v1459 = vmul.f32 %v1452, %v1457
    %v1460 = vadd.f32 %v1458, %v1459
    %v1461 = vtanh.pop %v1460
    %v1462 = vmul.f32 %v1456, %v1461
    %v1463 = vld [vmem:[#allocation2 + $0xc0] sm:$0xff]
    %v1464 = vld [vmem:[#allocation2 + $0xc8] sm:$0xff]
    %v1465 = vld [vmem:[#allocation2 + $0xd0] sm:$0xff]
    %v1466 = vld [vmem:[#allocation2 + $0xd8] sm:$0xff]
    %v1467 = vpack.c.bf16 %v1462, %v1462
    %1468 = vmatprep.subr.bf16.mxu0 %v715
    %1469 = vmatpush1.bf16.msra.mxu0 %v714
    %1470 = vmatprep.subr.bf16.mxu0 %v719
    %1471 = vmatpush1.bf16.msra.mxu0 %v718
    %1472 = vmatprep.subr.bf16.mxu0 %v723
    %1473 = vmatpush1.bf16.msra.mxu0 %v722
    %1474 = vmatprep.subr.bf16.mxu0 %v727
    %1475 = vmatpush1.bf16.msra.mxu0 %v726
    %1476 = vmatprep.subr.bf16.mxu0 %v731
    %1477 = vmatpush1.bf16.msra.mxu0 %v730
    %1478 = vmatprep.subr.bf16.mxu0 %v735
    %1479 = vmatpush1.bf16.msra.mxu0 %v734
    %1480 = vmatprep.subr.bf16.mxu0 %v739
    %1481 = vmatpush1.bf16.msra.mxu0 %v738
    %1482 = vmatprep.subr.bf16.mxu0 %v743
    %1483 = vmatpush1.bf16.msra.mxu0 %v742
    %1484 = vmatprep.subr.bf16.mxu0 0
    %1485 = vmatpush1.bf16.msra.mxu0 0
    %1486 = vmatprep.subr.bf16.mxu0 0
    %1487 = vmatpush1.bf16.msra.mxu0 0
    %1488 = vmatprep.subr.bf16.mxu0 0
    %1489 = vmatpush1.bf16.msra.mxu0 0
    %1490 = vmatprep.subr.bf16.mxu0 0
    %1491 = vmatpush1.bf16.msra.mxu0 0
    %1492 = vmatprep.subr.bf16.mxu0 0
    %1493 = vmatpush1.bf16.msra.mxu0 0
    %1494 = vmatprep.subr.bf16.mxu0 0
    %1495 = vmatpush1.bf16.msra.mxu0 0
    %1496 = vmatprep.subr.bf16.mxu0 0
    %1497 = vmatpush1.bf16.msra.mxu0 0
    %1498 = vmatprep.subr.bf16.mxu0 0
    %1499 = vmatpush1.bf16.msra.mxu0 0
    %1500 = vmatprep.mubr.bf16.mxu0 0
    %1501 = vmatmul.mubr.bf16.gmra.mrb[0].mxu0 %v1467
    %v1502 = vpop.f32.mrb[0].mxu0
    %v1503 = vadd.f32 0.0, %v1502
    %v1504 = vpop.f32.mrb[0].mxu0
    %v1505 = vadd.f32 0.0, %v1504
    %v1506 = vpop.f32.mrb[0].mxu0
    %v1507 = vpop.f32.mrb[0].mxu0
    %1508 = vdwg.mxu0
    %1509 = vmatprep.subr.bf16.mxu0 %v717
    %1510 = vmatpush1.bf16.msra.mxu0 %v716
    %1511 = vmatprep.subr.bf16.mxu0 %v721
    %1512 = vmatpush1.bf16.msra.mxu0 %v720
    %1513 = vmatprep.subr.bf16.mxu0 %v725
    %1514 = vmatpush1.bf16.msra.mxu0 %v724
    %1515 = vmatprep.subr.bf16.mxu0 %v729
    %1516 = vmatpush1.bf16.msra.mxu0 %v728
    %1517 = vmatprep.subr.bf16.mxu0 %v733
    %1518 = vmatpush1.bf16.msra.mxu0 %v732
    %1519 = vmatprep.subr.bf16.mxu0 %v737
    %1520 = vmatpush1.bf16.msra.mxu0 %v736
    %1521 = vmatprep.subr.bf16.mxu0 %v741
    %1522 = vmatpush1.bf16.msra.mxu0 %v740
    %1523 = vmatprep.subr.bf16.mxu0 %v745
    %1524 = vmatpush1.bf16.msra.mxu0 %v744
    %1525 = vmatprep.subr.bf16.mxu0 0
    %1526 = vmatpush1.bf16.msra.mxu0 0
    %1527 = vmatprep.subr.bf16.mxu0 0
    %1528 = vmatpush1.bf16.msra.mxu0 0
    %1529 = vmatprep.subr.bf16.mxu0 0
    %1530 = vmatpush1.bf16.msra.mxu0 0
    %1531 = vmatprep.subr.bf16.mxu0 0
    %1532 = vmatpush1.bf16.msra.mxu0 0
    %1533 = vmatprep.subr.bf16.mxu0 0
    %1534 = vmatpush1.bf16.msra.mxu0 0
    %1535 = vmatprep.subr.bf16.mxu0 0
    %1536 = vmatpush1.bf16.msra.mxu0 0
    %1537 = vmatprep.subr.bf16.mxu0 0
    %1538 = vmatpush1.bf16.msra.mxu0 0
    %1539 = vmatprep.subr.bf16.mxu0 0
    %1540 = vmatpush1.bf16.msra.mxu0 0
    %1541 = vmatprep.mubr.bf16.mxu0 0
    %1542 = vmatmul.mubr.bf16.gmra.mrb[0].mxu0 %v1467
    %v1543 = vpop.f32.mrb[0].mxu0
    %v1544 = vadd.f32 0.0, %v1543
    %v1545 = vpop.f32.mrb[0].mxu0
    %v1546 = vadd.f32 0.0, %v1545
    %v1547 = vpop.f32.mrb[0].mxu0
    %v1548 = vpop.f32.mrb[0].mxu0
    %1549 = vdwg.mxu0
    %v1550 = vadd.f32 %v1463, %v1503
    %v1551 = vadd.f32 %v1464, %v1505
    %v1552 = vadd.f32 %v1465, %v1544
    %v1553 = vadd.f32 %v1466, %v1546
    %v1554 = vxor.u32 %v1550, 2147483648
    %v1555 = vxor.u32 %v1551, 2147483648
    %v1556 = vxor.u32 %v1552, 2147483648
    %v1557 = vmul.f32 %v1554, 1.442695
    %v1558 = vpow.pop %v1557
    %v1559 = vmul.f32 %v1555, 1.442695
    %v1560 = vpow.pop %v1559
    %v1561 = vmul.f32 %v1556, 1.442695
    %v1562 = vpow.pop %v1561
    %v1563 = vadd.f32 %v1558, 1.0
    %v1564 = vadd.f32 %v1560, 1.0
    %v1565 = vadd.f32 %v1562, 1.0
    %v1566 = vrcp.pop %v1563
    %v1567 = vmul.f32 1.0, %v1566
    %v1568 = vrcp.pop %v1564
    %v1569 = vmul.f32 1.0, %v1568
    %v1570 = vrcp.pop %v1565
    %v1571 = vmul.f32 1.0, %v1570
    %v1572 = vtanh.pop %v1553
    %v1573 = vmul.f32 %v1569, %v1460
    %v1574 = vmul.f32 %v1567, %v1572
    %v1575 = vadd.f32 %v1573, %v1574
    %v1576 = vtanh.pop %v1575
    %v1577 = vmul.f32 %v1571, %v1576
    %v1578 = vld [vmem:[#allocation2 + $0xe0] sm:$0xff]
    %v1579 = vld [vmem:[#allocation2 + $0xe8] sm:$0xff]
    %v1580 = vld [vmem:[#allocation2 + $0xf0] sm:$0xff]
    %v1581 = vld [vmem:[#allocation2 + $0xf8] sm:$0xff]
    %v1582 = vpack.c.bf16 %v1577, %v1577
    %1583 = vmatprep.subr.bf16.mxu0 %v715
    %1584 = vmatpush1.bf16.msra.mxu0 %v714
    %1585 = vmatprep.subr.bf16.mxu0 %v719
    %1586 = vmatpush1.bf16.msra.mxu0 %v718
    %1587 = vmatprep.subr.bf16.mxu0 %v723
    %1588 = vmatpush1.bf16.msra.mxu0 %v722
    %1589 = vmatprep.subr.bf16.mxu0 %v727
    %1590 = vmatpush1.bf16.msra.mxu0 %v726
    %1591 = vmatprep.subr.bf16.mxu0 %v731
    %1592 = vmatpush1.bf16.msra.mxu0 %v730
    %1593 = vmatprep.subr.bf16.mxu0 %v735
    %1594 = vmatpush1.bf16.msra.mxu0 %v734
    %1595 = vmatprep.subr.bf16.mxu0 %v739
    %1596 = vmatpush1.bf16.msra.mxu0 %v738
    %1597 = vmatprep.subr.bf16.mxu0 %v743
    %1598 = vmatpush1.bf16.msra.mxu0 %v742
    %1599 = vmatprep.subr.bf16.mxu0 0
    %1600 = vmatpush1.bf16.msra.mxu0 0
    %1601 = vmatprep.subr.bf16.mxu0 0
    %1602 = vmatpush1.bf16.msra.mxu0 0
    %1603 = vmatprep.subr.bf16.mxu0 0
    %1604 = vmatpush1.bf16.msra.mxu0 0
    %1605 = vmatprep.subr.bf16.mxu0 0
    %1606 = vmatpush1.bf16.msra.mxu0 0
    %1607 = vmatprep.subr.bf16.mxu0 0
    %1608 = vmatpush1.bf16.msra.mxu0 0
    %1609 = vmatprep.subr.bf16.mxu0 0
    %1610 = vmatpush1.bf16.msra.mxu0 0
    %1611 = vmatprep.subr.bf16.mxu0 0
    %1612 = vmatpush1.bf16.msra.mxu0 0
    %1613 = vmatprep.subr.bf16.mxu0 0
    %1614 = vmatpush1.bf16.msra.mxu0 0
    %1615 = vmatprep.mubr.bf16.mxu0 0
    %1616 = vmatmul.mubr.bf16.gmra.mrb[0].mxu0 %v1582
    %v1617 = vpop.f32.mrb[0].mxu0
    %v1618 = vadd.f32 0.0, %v1617
    %v1619 = vpop.f32.mrb[0].mxu0
    %v1620 = vadd.f32 0.0, %v1619
    %v1621 = vpop.f32.mrb[0].mxu0
    %v1622 = vpop.f32.mrb[0].mxu0
    %1623 = vdwg.mxu0
    %1624 = vmatprep.subr.bf16.mxu0 %v717
    %1625 = vmatpush1.bf16.msra.mxu0 %v716
    %1626 = vmatprep.subr.bf16.mxu0 %v721
    %1627 = vmatpush1.bf16.msra.mxu0 %v720
    %1628 = vmatprep.subr.bf16.mxu0 %v725
    %1629 = vmatpush1.bf16.msra.mxu0 %v724
    %1630 = vmatprep.subr.bf16.mxu0 %v729
    %1631 = vmatpush1.bf16.msra.mxu0 %v728
    %1632 = vmatprep.subr.bf16.mxu0 %v733
    %1633 = vmatpush1.bf16.msra.mxu0 %v732
    %1634 = vmatprep.subr.bf16.mxu0 %v737
    %1635 = vmatpush1.bf16.msra.mxu0 %v736
    %1636 = vmatprep.subr.bf16.mxu0 %v741
    %1637 = vmatpush1.bf16.msra.mxu0 %v740
    %1638 = vmatprep.subr.bf16.mxu0 %v745
    %1639 = vmatpush1.bf16.msra.mxu0 %v744
    %1640 = vmatprep.subr.bf16.mxu0 0
    %1641 = vmatpush1.bf16.msra.mxu0 0
    %1642 = vmatprep.subr.bf16.mxu0 0
    %1643 = vmatpush1.bf16.msra.mxu0 0
    %1644 = vmatprep.subr.bf16.mxu0 0
    %1645 = vmatpush1.bf16.msra.mxu0 0
    %1646 = vmatprep.subr.bf16.mxu0 0
    %1647 = vmatpush1.bf16.msra.mxu0 0
    %1648 = vmatprep.subr.bf16.mxu0 0
    %1649 = vmatpush1.bf16.msra.mxu0 0
    %1650 = vmatprep.subr.bf16.mxu0 0
    %1651 = vmatpush1.bf16.msra.mxu0 0
    %1652 = vmatprep.subr.bf16.mxu0 0
    %1653 = vmatpush1.bf16.msra.mxu0 0
    %1654 = vmatprep.subr.bf16.mxu0 0
    %1655 = vmatpush1.bf16.msra.mxu0 0
    %1656 = vmatprep.mubr.bf16.mxu0 0
    %1657 = vmatmul.mubr.bf16.gmra.mrb[0].mxu0 %v1582
    %v1658 = vpop.f32.mrb[0].mxu0
    %v1659 = vadd.f32 0.0, %v1658
    %v1660 = vpop.f32.mrb[0].mxu0
    %v1661 = vadd.f32 0.0, %v1660
    %v1662 = vpop.f32.mrb[0].mxu0
    %v1663 = vpop.f32.mrb[0].mxu0
    %1664 = vdwg.mxu0
    %v1665 = vadd.f32 %v1578, %v1618
    %v1666 = vadd.f32 %v1579, %v1620
    %v1667 = vadd.f32 %v1580, %v1659
    %v1668 = vadd.f32 %v1581, %v1661
    %v1669 = vxor.u32 %v1665, 2147483648
    %v1670 = vxor.u32 %v1666, 2147483648
    %v1671 = vxor.u32 %v1667, 2147483648
    %v1672 = vmul.f32 %v1669, 1.442695
    %v1673 = vpow.pop %v1672
    %v1674 = vmul.f32 %v1670, 1.442695
    %v1675 = vpow.pop %v1674
    %v1676 = vmul.f32 %v1671, 1.442695
    %v1677 = vpow.pop %v1676
    %v1678 = vadd.f32 %v1673, 1.0
    %v1679 = vadd.f32 %v1675, 1.0
    %v1680 = vadd.f32 %v1677, 1.0
    %v1681 = vrcp.pop %v1678
    %v1682 = vmul.f32 1.0, %v1681
    %v1683 = vrcp.pop %v1679
    %v1684 = vmul.f32 1.0, %v1683
    %v1685 = vrcp.pop %v1680
    %v1686 = vmul.f32 1.0, %v1685
    %v1687 = vtanh.pop %v1668
    %v1688 = vmul.f32 %v1684, %v1575
    %v1689 = vmul.f32 %v1682, %v1687
    %v1690 = vadd.f32 %v1688, %v1689
    %v1691 = vtanh.pop %v1690
    %v1692 = vmul.f32 %v1686, %v1691
    %v1693 = vld [vmem:[#allocation2 + $0x100] sm:$0xff]
    %v1694 = vld [vmem:[#allocation2 + $0x108] sm:$0xff]
    %v1695 = vld [vmem:[#allocation2 + $0x110] sm:$0xff]
    %v1696 = vld [vmem:[#allocation2 + $0x118] sm:$0xff]
    %v1697 = vpack.c.bf16 %v1692, %v1692
    %1698 = vmatprep.subr.bf16.mxu0 %v715
    %1699 = vmatpush1.bf16.msra.mxu0 %v714
    %1700 = vmatprep.subr.bf16.mxu0 %v719
    %1701 = vmatpush1.bf16.msra.mxu0 %v718
    %1702 = vmatprep.subr.bf16.mxu0 %v723
    %1703 = vmatpush1.bf16.msra.mxu0 %v722
    %1704 = vmatprep.subr.bf16.mxu0 %v727
    %1705 = vmatpush1.bf16.msra.mxu0 %v726
    %1706 = vmatprep.subr.bf16.mxu0 %v731
    %1707 = vmatpush1.bf16.msra.mxu0 %v730
    %1708 = vmatprep.subr.bf16.mxu0 %v735
    %1709 = vmatpush1.bf16.msra.mxu0 %v734
    %1710 = vmatprep.subr.bf16.mxu0 %v739
    %1711 = vmatpush1.bf16.msra.mxu0 %v738
    %1712 = vmatprep.subr.bf16.mxu0 %v743
    %1713 = vmatpush1.bf16.msra.mxu0 %v742
    %1714 = vmatprep.subr.bf16.mxu0 0
    %1715 = vmatpush1.bf16.msra.mxu0 0
    %1716 = vmatprep.subr.bf16.mxu0 0
    %1717 = vmatpush1.bf16.msra.mxu0 0
    %1718 = vmatprep.subr.bf16.mxu0 0
    %1719 = vmatpush1.bf16.msra.mxu0 0
    %1720 = vmatprep.subr.bf16.mxu0 0
    %1721 = vmatpush1.bf16.msra.mxu0 0
    %1722 = vmatprep.subr.bf16.mxu0 0
    %1723 = vmatpush1.bf16.msra.mxu0 0
    %1724 = vmatprep.subr.bf16.mxu0 0
    %1725 = vmatpush1.bf16.msra.mxu0 0
    %1726 = vmatprep.subr.bf16.mxu0 0
    %1727 = vmatpush1.bf16.msra.mxu0 0
    %1728 = vmatprep.subr.bf16.mxu0 0
    %1729 = vmatpush1.bf16.msra.mxu0 0
    %1730 = vmatprep.mubr.bf16.mxu0 0
    %1731 = vmatmul.mubr.bf16.gmra.mrb[0].mxu0 %v1697
    %v1732 = vpop.f32.mrb[0].mxu0
    %v1733 = vadd.f32 0.0, %v1732
    %v1734 = vpop.f32.mrb[0].mxu0
    %v1735 = vadd.f32 0.0, %v1734
    %v1736 = vpop.f32.mrb[0].mxu0
    %v1737 = vpop.f32.mrb[0].mxu0
    %1738 = vdwg.mxu0
    %1739 = vmatprep.subr.bf16.mxu0 %v717
    %1740 = vmatpush1.bf16.msra.mxu0 %v716
    %1741 = vmatprep.subr.bf16.mxu0 %v721
    %1742 = vmatpush1.bf16.msra.mxu0 %v720
    %1743 = vmatprep.subr.bf16.mxu0 %v725
    %1744 = vmatpush1.bf16.msra.mxu0 %v724
    %1745 = vmatprep.subr.bf16.mxu0 %v729
    %1746 = vmatpush1.bf16.msra.mxu0 %v728
    %1747 = vmatprep.subr.bf16.mxu0 %v733
    %1748 = vmatpush1.bf16.msra.mxu0 %v732
    %1749 = vmatprep.subr.bf16.mxu0 %v737
    %1750 = vmatpush1.bf16.msra.mxu0 %v736
    %1751 = vmatprep.subr.bf16.mxu0 %v741
    %1752 = vmatpush1.bf16.msra.mxu0 %v740
    %1753 = vmatprep.subr.bf16.mxu0 %v745
    %1754 = vmatpush1.bf16.msra.mxu0 %v744
    %1755 = vmatprep.subr.bf16.mxu0 0
    %1756 = vmatpush1.bf16.msra.mxu0 0
    %1757 = vmatprep.subr.bf16.mxu0 0
    %1758 = vmatpush1.bf16.msra.mxu0 0
    %1759 = vmatprep.subr.bf16.mxu0 0
    %1760 = vmatpush1.bf16.msra.mxu0 0
    %1761 = vmatprep.subr.bf16.mxu0 0
    %1762 = vmatpush1.bf16.msra.mxu0 0
    %1763 = vmatprep.subr.bf16.mxu0 0
    %1764 = vmatpush1.bf16.msra.mxu0 0
    %1765 = vmatprep.subr.bf16.mxu0 0
    %1766 = vmatpush1.bf16.msra.mxu0 0
    %1767 = vmatprep.subr.bf16.mxu0 0
    %1768 = vmatpush1.bf16.msra.mxu0 0
    %1769 = vmatprep.subr.bf16.mxu0 0
    %1770 = vmatpush1.bf16.msra.mxu0 0
    %1771 = vmatprep.mubr.bf16.mxu0 0
    %1772 = vmatmul.mubr.bf16.gmra.mrb[0].mxu0 %v1697
    %v1773 = vpop.f32.mrb[0].mxu0
    %v1774 = vadd.f32 0.0, %v1773
    %v1775 = vpop.f32.mrb[0].mxu0
    %v1776 = vadd.f32 0.0, %v1775
    %v1777 = vpop.f32.mrb[0].mxu0
    %v1778 = vpop.f32.mrb[0].mxu0
    %1779 = vdwg.mxu0
    %v1780 = vadd.f32 %v1693, %v1733
    %v1781 = vadd.f32 %v1694, %v1735
    %v1782 = vadd.f32 %v1695, %v1774
    %v1783 = vadd.f32 %v1696, %v1776
    %v1784 = vxor.u32 %v1780, 2147483648
    %v1785 = vxor.u32 %v1781, 2147483648
    %v1786 = vxor.u32 %v1782, 2147483648
    %v1787 = vmul.f32 %v1784, 1.442695
    %v1788 = vpow.pop %v1787
    %v1789 = vmul.f32 %v1785, 1.442695
    %v1790 = vpow.pop %v1789
    %v1791 = vmul.f32 %v1786, 1.442695
    %v1792 = vpow.pop %v1791
    %v1793 = vadd.f32 %v1788, 1.0
    %v1794 = vadd.f32 %v1790, 1.0
    %v1795 = vadd.f32 %v1792, 1.0
    %v1796 = vrcp.pop %v1793
    %v1797 = vmul.f32 1.0, %v1796
    %v1798 = vrcp.pop %v1794
    %v1799 = vmul.f32 1.0, %v1798
    %v1800 = vrcp.pop %v1795
    %v1801 = vmul.f32 1.0, %v1800
    %v1802 = vtanh.pop %v1783
    %v1803 = vmul.f32 %v1799, %v1690
    %v1804 = vmul.f32 %v1797, %v1802
    %v1805 = vadd.f32 %v1803, %v1804
    %v1806 = vtanh.pop %v1805
    %v1807 = vmul.f32 %v1801, %v1806
    %vm1808 = vmxor %vm580, 1
    %v1809 = vsel %vm1808, %v1805, %v1690
    %v1810 = vsel %vm1808, %v1807, %v1692
    %v1811 = vld [vmem:[#allocation2 + $0x120] sm:$0xff]
    %v1812 = vld [vmem:[#allocation2 + $0x128] sm:$0xff]
    %v1813 = vld [vmem:[#allocation2 + $0x130] sm:$0xff]
    %v1814 = vld [vmem:[#allocation2 + $0x138] sm:$0xff]
    %v1815 = vpack.c.bf16 %v1810, %v1810
    %1816 = vmatprep.subr.bf16.mxu0 %v715
    %1817 = vmatpush1.bf16.msra.mxu0 %v714
    %1818 = vmatprep.subr.bf16.mxu0 %v719
    %1819 = vmatpush1.bf16.msra.mxu0 %v718
    %1820 = vmatprep.subr.bf16.mxu0 %v723
    %1821 = vmatpush1.bf16.msra.mxu0 %v722
    %1822 = vmatprep.subr.bf16.mxu0 %v727
    %1823 = vmatpush1.bf16.msra.mxu0 %v726
    %1824 = vmatprep.subr.bf16.mxu0 %v731
    %1825 = vmatpush1.bf16.msra.mxu0 %v730
    %1826 = vmatprep.subr.bf16.mxu0 %v735
    %1827 = vmatpush1.bf16.msra.mxu0 %v734
    %1828 = vmatprep.subr.bf16.mxu0 %v739
    %1829 = vmatpush1.bf16.msra.mxu0 %v738
    %1830 = vmatprep.subr.bf16.mxu0 %v743
    %1831 = vmatpush1.bf16.msra.mxu0 %v742
    %1832 = vmatprep.subr.bf16.mxu0 0
    %1833 = vmatpush1.bf16.msra.mxu0 0
    %1834 = vmatprep.subr.bf16.mxu0 0
    %1835 = vmatpush1.bf16.msra.mxu0 0
    %1836 = vmatprep.subr.bf16.mxu0 0
    %1837 = vmatpush1.bf16.msra.mxu0 0
    %1838 = vmatprep.subr.bf16.mxu0 0
    %1839 = vmatpush1.bf16.msra.mxu0 0
    %1840 = vmatprep.subr.bf16.mxu0 0
    %1841 = vmatpush1.bf16.msra.mxu0 0
    %1842 = vmatprep.subr.bf16.mxu0 0
    %1843 = vmatpush1.bf16.msra.mxu0 0
    %1844 = vmatprep.subr.bf16.mxu0 0
    %1845 = vmatpush1.bf16.msra.mxu0 0
    %1846 = vmatprep.subr.bf16.mxu0 0
    %1847 = vmatpush1.bf16.msra.mxu0 0
    %1848 = vmatprep.mubr.bf16.mxu0 0
    %1849 = vmatmul.mubr.bf16.gmra.mrb[0].mxu0 %v1815
    %v1850 = vpop.f32.mrb[0].mxu0
    %v1851 = vadd.f32 0.0, %v1850
    %v1852 = vpop.f32.mrb[0].mxu0
    %v1853 = vadd.f32 0.0, %v1852
    %v1854 = vpop.f32.mrb[0].mxu0
    %v1855 = vpop.f32.mrb[0].mxu0
    %1856 = vdwg.mxu0
    %1857 = vmatprep.subr.bf16.mxu0 %v717
    %1858 = vmatpush1.bf16.msra.mxu0 %v716
    %1859 = vmatprep.subr.bf16.mxu0 %v721
    %1860 = vmatpush1.bf16.msra.mxu0 %v720
    %1861 = vmatprep.subr.bf16.mxu0 %v725
    %1862 = vmatpush1.bf16.msra.mxu0 %v724
    %1863 = vmatprep.subr.bf16.mxu0 %v729
    %1864 = vmatpush1.bf16.msra.mxu0 %v728
    %1865 = vmatprep.subr.bf16.mxu0 %v733
    %1866 = vmatpush1.bf16.msra.mxu0 %v732
    %1867 = vmatprep.subr.bf16.mxu0 %v737
    %1868 = vmatpush1.bf16.msra.mxu0 %v736
    %1869 = vmatprep.subr.bf16.mxu0 %v741
    %1870 = vmatpush1.bf16.msra.mxu0 %v740
    %1871 = vmatprep.subr.bf16.mxu0 %v745
    %1872 = vmatpush1.bf16.msra.mxu0 %v744
    %1873 = vmatprep.subr.bf16.mxu0 0
    %1874 = vmatpush1.bf16.msra.mxu0 0
    %1875 = vmatprep.subr.bf16.mxu0 0
    %1876 = vmatpush1.bf16.msra.mxu0 0
    %1877 = vmatprep.subr.bf16.mxu0 0
    %1878 = vmatpush1.bf16.msra.mxu0 0
    %1879 = vmatprep.subr.bf16.mxu0 0
    %1880 = vmatpush1.bf16.msra.mxu0 0
    %1881 = vmatprep.subr.bf16.mxu0 0
    %1882 = vmatpush1.bf16.msra.mxu0 0
    %1883 = vmatprep.subr.bf16.mxu0 0
    %1884 = vmatpush1.bf16.msra.mxu0 0
    %1885 = vmatprep.subr.bf16.mxu0 0
    %1886 = vmatpush1.bf16.msra.mxu0 0
    %1887 = vmatprep.subr.bf16.mxu0 0
    %1888 = vmatpush1.bf16.msra.mxu0 0
    %1889 = vmatprep.mubr.bf16.mxu0 0
    %1890 = vmatmul.mubr.bf16.gmra.mrb[0].mxu0 %v1815
    %v1891 = vpop.f32.mrb[0].mxu0
    %v1892 = vadd.f32 0.0, %v1891
    %v1893 = vpop.f32.mrb[0].mxu0
    %v1894 = vadd.f32 0.0, %v1893
    %v1895 = vpop.f32.mrb[0].mxu0
    %v1896 = vpop.f32.mrb[0].mxu0
    %1897 = vdwg.mxu0
    %v1898 = vadd.f32 %v1811, %v1851
    %v1899 = vadd.f32 %v1812, %v1853
    %v1900 = vadd.f32 %v1813, %v1892
    %v1901 = vadd.f32 %v1814, %v1894
    %v1902 = vxor.u32 %v1898, 2147483648
    %v1903 = vxor.u32 %v1899, 2147483648
    %v1904 = vxor.u32 %v1900, 2147483648
    %v1905 = vmul.f32 %v1902, 1.442695
    %v1906 = vpow.pop %v1905
    %v1907 = vmul.f32 %v1903, 1.442695
    %v1908 = vpow.pop %v1907
    %v1909 = vmul.f32 %v1904, 1.442695
    %v1910 = vpow.pop %v1909
    %v1911 = vadd.f32 %v1906, 1.0
    %v1912 = vadd.f32 %v1908, 1.0
    %v1913 = vadd.f32 %v1910, 1.0
    %v1914 = vrcp.pop %v1911
    %v1915 = vmul.f32 1.0, %v1914
    %v1916 = vrcp.pop %v1912
    %v1917 = vmul.f32 1.0, %v1916
    %v1918 = vrcp.pop %v1913
    %v1919 = vmul.f32 1.0, %v1918
    %v1920 = vtanh.pop %v1901
    %v1921 = vmul.f32 %v1917, %v1809
    %v1922 = vmul.f32 %v1915, %v1920
    %v1923 = vadd.f32 %v1921, %v1922
    %v1924 = vtanh.pop %v1923
    %v1925 = vmul.f32 %v1919, %v1924
    %v1926 = vsel %vm1808, %v1923, %v1690
    %v1927 = vsel %vm1808, %v1925, %v1692
    %v1928 = vld [vmem:[#allocation2 + $0x140] sm:$0xff]
    %v1929 = vld [vmem:[#allocation2 + $0x148] sm:$0xff]
    %v1930 = vld [vmem:[#allocation2 + $0x150] sm:$0xff]
    %v1931 = vld [vmem:[#allocation2 + $0x158] sm:$0xff]
    %v1932 = vpack.c.bf16 %v1927, %v1927
    %1933 = vmatprep.subr.bf16.mxu0 %v715
    %1934 = vmatpush1.bf16.msra.mxu0 %v714
    %1935 = vmatprep.subr.bf16.mxu0 %v719
    %1936 = vmatpush1.bf16.msra.mxu0 %v718
    %1937 = vmatprep.subr.bf16.mxu0 %v723
    %1938 = vmatpush1.bf16.msra.mxu0 %v722
    %1939 = vmatprep.subr.bf16.mxu0 %v727
    %1940 = vmatpush1.bf16.msra.mxu0 %v726
    %1941 = vmatprep.subr.bf16.mxu0 %v731
    %1942 = vmatpush1.bf16.msra.mxu0 %v730
    %1943 = vmatprep.subr.bf16.mxu0 %v735
    %1944 = vmatpush1.bf16.msra.mxu0 %v734
    %1945 = vmatprep.subr.bf16.mxu0 %v739
    %1946 = vmatpush1.bf16.msra.mxu0 %v738
    %1947 = vmatprep.subr.bf16.mxu0 %v743
    %1948 = vmatpush1.bf16.msra.mxu0 %v742
    %1949 = vmatprep.subr.bf16.mxu0 0
    %1950 = vmatpush1.bf16.msra.mxu0 0
    %1951 = vmatprep.subr.bf16.mxu0 0
    %1952 = vmatpush1.bf16.msra.mxu0 0
    %1953 = vmatprep.subr.bf16.mxu0 0
    %1954 = vmatpush1.bf16.msra.mxu0 0
    %1955 = vmatprep.subr.bf16.mxu0 0
    %1956 = vmatpush1.bf16.msra.mxu0 0
    %1957 = vmatprep.subr.bf16.mxu0 0
    %1958 = vmatpush1.bf16.msra.mxu0 0
    %1959 = vmatprep.subr.bf16.mxu0 0
    %1960 = vmatpush1.bf16.msra.mxu0 0
    %1961 = vmatprep.subr.bf16.mxu0 0
    %1962 = vmatpush1.bf16.msra.mxu0 0
    %1963 = vmatprep.subr.bf16.mxu0 0
    %1964 = vmatpush1.bf16.msra.mxu0 0
    %1965 = vmatprep.mubr.bf16.mxu0 0
    %1966 = vmatmul.mubr.bf16.gmra.mrb[0].mxu0 %v1932
    %v1967 = vpop.f32.mrb[0].mxu0
    %v1968 = vadd.f32 0.0, %v1967
    %v1969 = vpop.f32.mrb[0].mxu0
    %v1970 = vadd.f32 0.0, %v1969
    %v1971 = vpop.f32.mrb[0].mxu0
    %v1972 = vpop.f32.mrb[0].mxu0
    %1973 = vdwg.mxu0
    %1974 = vmatprep.subr.bf16.mxu0 %v717
    %1975 = vmatpush1.bf16.msra.mxu0 %v716
    %1976 = vmatprep.subr.bf16.mxu0 %v721
    %1977 = vmatpush1.bf16.msra.mxu0 %v720
    %1978 = vmatprep.subr.bf16.mxu0 %v725
    %1979 = vmatpush1.bf16.msra.mxu0 %v724
    %1980 = vmatprep.subr.bf16.mxu0 %v729
    %1981 = vmatpush1.bf16.msra.mxu0 %v728
    %1982 = vmatprep.subr.bf16.mxu0 %v733
    %1983 = vmatpush1.bf16.msra.mxu0 %v732
    %1984 = vmatprep.subr.bf16.mxu0 %v737
    %1985 = vmatpush1.bf16.msra.mxu0 %v736
    %1986 = vmatprep.subr.bf16.mxu0 %v741
    %1987 = vmatpush1.bf16.msra.mxu0 %v740
    %1988 = vmatprep.subr.bf16.mxu0 %v745
    %1989 = vmatpush1.bf16.msra.mxu0 %v744
    %1990 = vmatprep.subr.bf16.mxu0 0
    %1991 = vmatpush1.bf16.msra.mxu0 0
    %1992 = vmatprep.subr.bf16.mxu0 0
    %1993 = vmatpush1.bf16.msra.mxu0 0
    %1994 = vmatprep.subr.bf16.mxu0 0
    %1995 = vmatpush1.bf16.msra.mxu0 0
    %1996 = vmatprep.subr.bf16.mxu0 0
    %1997 = vmatpush1.bf16.msra.mxu0 0
    %1998 = vmatprep.subr.bf16.mxu0 0
    %1999 = vmatpush1.bf16.msra.mxu0 0
    %2000 = vmatprep.subr.bf16.mxu0 0
    %2001 = vmatpush1.bf16.msra.mxu0 0
    %2002 = vmatprep.subr.bf16.mxu0 0
    %2003 = vmatpush1.bf16.msra.mxu0 0
    %2004 = vmatprep.subr.bf16.mxu0 0
    %2005 = vmatpush1.bf16.msra.mxu0 0
    %2006 = vmatprep.mubr.bf16.mxu0 0
    %2007 = vmatmul.mubr.bf16.gmra.mrb[0].mxu0 %v1932
    %v2008 = vpop.f32.mrb[0].mxu0
    %v2009 = vadd.f32 0.0, %v2008
    %v2010 = vpop.f32.mrb[0].mxu0
    %v2011 = vadd.f32 0.0, %v2010
    %v2012 = vpop.f32.mrb[0].mxu0
    %v2013 = vpop.f32.mrb[0].mxu0
    %2014 = vdwg.mxu0
    %v2015 = vadd.f32 %v1928, %v1968
    %v2016 = vadd.f32 %v1929, %v1970
    %v2017 = vadd.f32 %v1930, %v2009
    %v2018 = vadd.f32 %v1931, %v2011
    %v2019 = vxor.u32 %v2015, 2147483648
    %v2020 = vxor.u32 %v2016, 2147483648
    %v2021 = vxor.u32 %v2017, 2147483648
    %v2022 = vmul.f32 %v2019, 1.442695
    %v2023 = vpow.pop %v2022
    %v2024 = vmul.f32 %v2020, 1.442695
    %v2025 = vpow.pop %v2024
    %v2026 = vmul.f32 %v2021, 1.442695
    %v2027 = vpow.pop %v2026
    %v2028 = vadd.f32 %v2023, 1.0
    %v2029 = vadd.f32 %v2025, 1.0
    %v2030 = vadd.f32 %v2027, 1.0
    %v2031 = vrcp.pop %v2028
    %v2032 = vmul.f32 1.0, %v2031
    %v2033 = vrcp.pop %v2029
    %v2034 = vmul.f32 1.0, %v2033
    %v2035 = vrcp.pop %v2030
    %v2036 = vmul.f32 1.0, %v2035
    %v2037 = vtanh.pop %v2018
    %v2038 = vmul.f32 %v2034, %v1926
    %v2039 = vmul.f32 %v2032, %v2037
    %v2040 = vadd.f32 %v2038, %v2039
    %v2041 = vtanh.pop %v2040
    %v2042 = vmul.f32 %v2036, %v2041
    %v2043 = vsel %vm1808, %v2040, %v1690
    %v2044 = vsel %vm1808, %v2042, %v1692
    %v2045 = vld [vmem:[#allocation2 + $0x160] sm:$0xff]
    %v2046 = vld [vmem:[#allocation2 + $0x168] sm:$0xff]
    %v2047 = vld [vmem:[#allocation2 + $0x170] sm:$0xff]
    %v2048 = vld [vmem:[#allocation2 + $0x178] sm:$0xff]
    %v2049 = vpack.c.bf16 %v2044, %v2044
    %2050 = vmatprep.subr.bf16.mxu0 %v715
    %2051 = vmatpush1.bf16.msra.mxu0 %v714
    %2052 = vmatprep.subr.bf16.mxu0 %v719
    %2053 = vmatpush1.bf16.msra.mxu0 %v718
    %2054 = vmatprep.subr.bf16.mxu0 %v723
    %2055 = vmatpush1.bf16.msra.mxu0 %v722
    %2056 = vmatprep.subr.bf16.mxu0 %v727
    %2057 = vmatpush1.bf16.msra.mxu0 %v726
    %2058 = vmatprep.subr.bf16.mxu0 %v731
    %2059 = vmatpush1.bf16.msra.mxu0 %v730
    %2060 = vmatprep.subr.bf16.mxu0 %v735
    %2061 = vmatpush1.bf16.msra.mxu0 %v734
    %2062 = vmatprep.subr.bf16.mxu0 %v739
    %2063 = vmatpush1.bf16.msra.mxu0 %v738
    %2064 = vmatprep.subr.bf16.mxu0 %v743
    %2065 = vmatpush1.bf16.msra.mxu0 %v742
    %2066 = vmatprep.subr.bf16.mxu0 0
    %2067 = vmatpush1.bf16.msra.mxu0 0
    %2068 = vmatprep.subr.bf16.mxu0 0
    %2069 = vmatpush1.bf16.msra.mxu0 0
    %2070 = vmatprep.subr.bf16.mxu0 0
    %2071 = vmatpush1.bf16.msra.mxu0 0
    %2072 = vmatprep.subr.bf16.mxu0 0
    %2073 = vmatpush1.bf16.msra.mxu0 0
    %2074 = vmatprep.subr.bf16.mxu0 0
    %2075 = vmatpush1.bf16.msra.mxu0 0
    %2076 = vmatprep.subr.bf16.mxu0 0
    %2077 = vmatpush1.bf16.msra.mxu0 0
    %2078 = vmatprep.subr.bf16.mxu0 0
    %2079 = vmatpush1.bf16.msra.mxu0 0
    %2080 = vmatprep.subr.bf16.mxu0 0
    %2081 = vmatpush1.bf16.msra.mxu0 0
    %2082 = vmatprep.mubr.bf16.mxu0 0
    %2083 = vmatmul.mubr.bf16.gmra.mrb[0].mxu0 %v2049
    %v2084 = vpop.f32.mrb[0].mxu0
    %v2085 = vadd.f32 0.0, %v2084
    %v2086 = vpop.f32.mrb[0].mxu0
    %v2087 = vadd.f32 0.0, %v2086
    %v2088 = vpop.f32.mrb[0].mxu0
    %v2089 = vpop.f32.mrb[0].mxu0
    %2090 = vdwg.mxu0
    %2091 = vmatprep.subr.bf16.mxu0 %v717
    %2092 = vmatpush1.bf16.msra.mxu0 %v716
    %2093 = vmatprep.subr.bf16.mxu0 %v721
    %2094 = vmatpush1.bf16.msra.mxu0 %v720
    %2095 = vmatprep.subr.bf16.mxu0 %v725
    %2096 = vmatpush1.bf16.msra.mxu0 %v724
    %2097 = vmatprep.subr.bf16.mxu0 %v729
    %2098 = vmatpush1.bf16.msra.mxu0 %v728
    %2099 = vmatprep.subr.bf16.mxu0 %v733
    %2100 = vmatpush1.bf16.msra.mxu0 %v732
    %2101 = vmatprep.subr.bf16.mxu0 %v737
    %2102 = vmatpush1.bf16.msra.mxu0 %v736
    %2103 = vmatprep.subr.bf16.mxu0 %v741
    %2104 = vmatpush1.bf16.msra.mxu0 %v740
    %2105 = vmatprep.subr.bf16.mxu0 %v745
    %2106 = vmatpush1.bf16.msra.mxu0 %v744
    %2107 = vmatprep.subr.bf16.mxu0 0
    %2108 = vmatpush1.bf16.msra.mxu0 0
    %2109 = vmatprep.subr.bf16.mxu0 0
    %2110 = vmatpush1.bf16.msra.mxu0 0
    %2111 = vmatprep.subr.bf16.mxu0 0
    %2112 = vmatpush1.bf16.msra.mxu0 0
    %2113 = vmatprep.subr.bf16.mxu0 0
    %2114 = vmatpush1.bf16.msra.mxu0 0
    %2115 = vmatprep.subr.bf16.mxu0 0
    %2116 = vmatpush1.bf16.msra.mxu0 0
    %2117 = vmatprep.subr.bf16.mxu0 0
    %2118 = vmatpush1.bf16.msra.mxu0 0
    %2119 = vmatprep.subr.bf16.mxu0 0
    %2120 = vmatpush1.bf16.msra.mxu0 0
    %2121 = vmatprep.subr.bf16.mxu0 0
    %2122 = vmatpush1.bf16.msra.mxu0 0
    %2123 = vmatprep.mubr.bf16.mxu0 0
    %2124 = vmatmul.mubr.bf16.gmra.mrb[0].mxu0 %v2049
    %v2125 = vpop.f32.mrb[0].mxu0
    %v2126 = vadd.f32 0.0, %v2125
    %v2127 = vpop.f32.mrb[0].mxu0
    %v2128 = vadd.f32 0.0, %v2127
    %v2129 = vpop.f32.mrb[0].mxu0
    %v2130 = vpop.f32.mrb[0].mxu0
    %2131 = vdwg.mxu0
    %v2132 = vadd.f32 %v2045, %v2085
    %v2133 = vadd.f32 %v2046, %v2087
    %v2134 = vadd.f32 %v2047, %v2126
    %v2135 = vadd.f32 %v2048, %v2128
    %v2136 = vxor.u32 %v2132, 2147483648
    %v2137 = vxor.u32 %v2133, 2147483648
    %v2138 = vxor.u32 %v2134, 2147483648
    %v2139 = vmul.f32 %v2136, 1.442695
    %v2140 = vpow.pop %v2139
    %v2141 = vmul.f32 %v2137, 1.442695
    %v2142 = vpow.pop %v2141
    %v2143 = vmul.f32 %v2138, 1.442695
    %v2144 = vpow.pop %v2143
    %v2145 = vadd.f32 %v2140, 1.0
    %v2146 = vadd.f32 %v2142, 1.0
    %v2147 = vadd.f32 %v2144, 1.0
    %v2148 = vrcp.pop %v2145
    %v2149 = vmul.f32 1.0, %v2148
    %v2150 = vrcp.pop %v2146
    %v2151 = vmul.f32 1.0, %v2150
    %v2152 = vrcp.pop %v2147
    %v2153 = vmul.f32 1.0, %v2152
    %v2154 = vtanh.pop %v2135
    %v2155 = vmul.f32 %v2151, %v2043
    %v2156 = vmul.f32 %v2149, %v2154
    %v2157 = vadd.f32 %v2155, %v2156
    %v2158 = vtanh.pop %v2157
    %v2159 = vmul.f32 %v2153, %v2158
    %v2160 = vsel %vm1808, %v2157, %v1690
    %v2161 = vsel %vm1808, %v2159, %v1692
    %v2162 = vld [vmem:[#allocation2 + $0x180] sm:$0xff]
    %v2163 = vld [vmem:[#allocation2 + $0x188] sm:$0xff]
    %v2164 = vld [vmem:[#allocation2 + $0x190] sm:$0xff]
    %v2165 = vld [vmem:[#allocation2 + $0x198] sm:$0xff]
    %v2166 = vpack.c.bf16 %v2161, %v2161
    %2167 = vmatprep.subr.bf16.mxu0 %v715
    %2168 = vmatpush1.bf16.msra.mxu0 %v714
    %2169 = vmatprep.subr.bf16.mxu0 %v719
    %2170 = vmatpush1.bf16.msra.mxu0 %v718
    %2171 = vmatprep.subr.bf16.mxu0 %v723
    %2172 = vmatpush1.bf16.msra.mxu0 %v722
    %2173 = vmatprep.subr.bf16.mxu0 %v727
    %2174 = vmatpush1.bf16.msra.mxu0 %v726
    %2175 = vmatprep.subr.bf16.mxu0 %v731
    %2176 = vmatpush1.bf16.msra.mxu0 %v730
    %2177 = vmatprep.subr.bf16.mxu0 %v735
    %2178 = vmatpush1.bf16.msra.mxu0 %v734
    %2179 = vmatprep.subr.bf16.mxu0 %v739
    %2180 = vmatpush1.bf16.msra.mxu0 %v738
    %2181 = vmatprep.subr.bf16.mxu0 %v743
    %2182 = vmatpush1.bf16.msra.mxu0 %v742
    %2183 = vmatprep.subr.bf16.mxu0 0
    %2184 = vmatpush1.bf16.msra.mxu0 0
    %2185 = vmatprep.subr.bf16.mxu0 0
    %2186 = vmatpush1.bf16.msra.mxu0 0
    %2187 = vmatprep.subr.bf16.mxu0 0
    %2188 = vmatpush1.bf16.msra.mxu0 0
    %2189 = vmatprep.subr.bf16.mxu0 0
    %2190 = vmatpush1.bf16.msra.mxu0 0
    %2191 = vmatprep.subr.bf16.mxu0 0
    %2192 = vmatpush1.bf16.msra.mxu0 0
    %2193 = vmatprep.subr.bf16.mxu0 0
    %2194 = vmatpush1.bf16.msra.mxu0 0
    %2195 = vmatprep.subr.bf16.mxu0 0
    %2196 = vmatpush1.bf16.msra.mxu0 0
    %2197 = vmatprep.subr.bf16.mxu0 0
    %2198 = vmatpush1.bf16.msra.mxu0 0
    %2199 = vmatprep.mubr.bf16.mxu0 0
    %2200 = vmatmul.mubr.bf16.gmra.mrb[0].mxu0 %v2166
    %v2201 = vpop.f32.mrb[0].mxu0
    %v2202 = vadd.f32 0.0, %v2201
    %v2203 = vpop.f32.mrb[0].mxu0
    %v2204 = vadd.f32 0.0, %v2203
    %v2205 = vpop.f32.mrb[0].mxu0
    %v2206 = vpop.f32.mrb[0].mxu0
    %2207 = vdwg.mxu0
    %2208 = vmatprep.subr.bf16.mxu0 %v717
    %2209 = vmatpush1.bf16.msra.mxu0 %v716
    %2210 = vmatprep.subr.bf16.mxu0 %v721
    %2211 = vmatpush1.bf16.msra.mxu0 %v720
    %2212 = vmatprep.subr.bf16.mxu0 %v725
    %2213 = vmatpush1.bf16.msra.mxu0 %v724
    %2214 = vmatprep.subr.bf16.mxu0 %v729
    %2215 = vmatpush1.bf16.msra.mxu0 %v728
    %2216 = vmatprep.subr.bf16.mxu0 %v733
    %2217 = vmatpush1.bf16.msra.mxu0 %v732
    %2218 = vmatprep.subr.bf16.mxu0 %v737
    %2219 = vmatpush1.bf16.msra.mxu0 %v736
    %2220 = vmatprep.subr.bf16.mxu0 %v741
    %2221 = vmatpush1.bf16.msra.mxu0 %v740
    %2222 = vmatprep.subr.bf16.mxu0 %v745
    %2223 = vmatpush1.bf16.msra.mxu0 %v744
    %2224 = vmatprep.subr.bf16.mxu0 0
    %2225 = vmatpush1.bf16.msra.mxu0 0
    %2226 = vmatprep.subr.bf16.mxu0 0
    %2227 = vmatpush1.bf16.msra.mxu0 0
    %2228 = vmatprep.subr.bf16.mxu0 0
    %2229 = vmatpush1.bf16.msra.mxu0 0
    %2230 = vmatprep.subr.bf16.mxu0 0
    %2231 = vmatpush1.bf16.msra.mxu0 0
    %2232 = vmatprep.subr.bf16.mxu0 0
    %2233 = vmatpush1.bf16.msra.mxu0 0
    %2234 = vmatprep.subr.bf16.mxu0 0
    %2235 = vmatpush1.bf16.msra.mxu0 0
    %2236 = vmatprep.subr.bf16.mxu0 0
    %2237 = vmatpush1.bf16.msra.mxu0 0
    %2238 = vmatprep.subr.bf16.mxu0 0
    %2239 = vmatpush1.bf16.msra.mxu0 0
    %2240 = vmatprep.mubr.bf16.mxu0 0
    %2241 = vmatmul.mubr.bf16.gmra.mrb[0].mxu0 %v2166
    %v2242 = vpop.f32.mrb[0].mxu0
    %v2243 = vadd.f32 0.0, %v2242
    %v2244 = vpop.f32.mrb[0].mxu0
    %v2245 = vadd.f32 0.0, %v2244
    %v2246 = vpop.f32.mrb[0].mxu0
    %v2247 = vpop.f32.mrb[0].mxu0
    %2248 = vdwg.mxu0
    %v2249 = vadd.f32 %v2162, %v2202
    %v2250 = vadd.f32 %v2163, %v2204
    %v2251 = vadd.f32 %v2164, %v2243
    %v2252 = vadd.f32 %v2165, %v2245
    %v2253 = vxor.u32 %v2249, 2147483648
    %v2254 = vxor.u32 %v2250, 2147483648
    %v2255 = vxor.u32 %v2251, 2147483648
    %v2256 = vmul.f32 %v2253, 1.442695
    %v2257 = vpow.pop %v2256
    %v2258 = vmul.f32 %v2254, 1.442695
    %v2259 = vpow.pop %v2258
    %v2260 = vmul.f32 %v2255, 1.442695
    %v2261 = vpow.pop %v2260
    %v2262 = vadd.f32 %v2257, 1.0
    %v2263 = vadd.f32 %v2259, 1.0
    %v2264 = vadd.f32 %v2261, 1.0
    %v2265 = vrcp.pop %v2262
    %v2266 = vmul.f32 1.0, %v2265
    %v2267 = vrcp.pop %v2263
    %v2268 = vmul.f32 1.0, %v2267
    %v2269 = vrcp.pop %v2264
    %v2270 = vmul.f32 1.0, %v2269
    %v2271 = vtanh.pop %v2252
    %v2272 = vmul.f32 %v2268, %v2160
    %v2273 = vmul.f32 %v2266, %v2271
    %v2274 = vadd.f32 %v2272, %v2273
    %v2275 = vtanh.pop %v2274
    %v2276 = vmul.f32 %v2270, %v2275
    %v2277 = vsel %vm1808, %v2274, %v1690
    %v2278 = vsel %vm1808, %v2276, %v1692
    %v2279 = vld [vmem:[#allocation2 + $0x1a0] sm:$0xff]
    %v2280 = vld [vmem:[#allocation2 + $0x1a8] sm:$0xff]
    %v2281 = vld [vmem:[#allocation2 + $0x1b0] sm:$0xff]
    %v2282 = vld [vmem:[#allocation2 + $0x1b8] sm:$0xff]
    %v2283 = vpack.c.bf16 %v2278, %v2278
    %2284 = vmatprep.subr.bf16.mxu0 %v715
    %2285 = vmatpush1.bf16.msra.mxu0 %v714
    %2286 = vmatprep.subr.bf16.mxu0 %v719
    %2287 = vmatpush1.bf16.msra.mxu0 %v718
    %2288 = vmatprep.subr.bf16.mxu0 %v723
    %2289 = vmatpush1.bf16.msra.mxu0 %v722
    %2290 = vmatprep.subr.bf16.mxu0 %v727
    %2291 = vmatpush1.bf16.msra.mxu0 %v726
    %2292 = vmatprep.subr.bf16.mxu0 %v731
    %2293 = vmatpush1.bf16.msra.mxu0 %v730
    %2294 = vmatprep.subr.bf16.mxu0 %v735
    %2295 = vmatpush1.bf16.msra.mxu0 %v734
    %2296 = vmatprep.subr.bf16.mxu0 %v739
    %2297 = vmatpush1.bf16.msra.mxu0 %v738
    %2298 = vmatprep.subr.bf16.mxu0 %v743
    %2299 = vmatpush1.bf16.msra.mxu0 %v742
    %2300 = vmatprep.subr.bf16.mxu0 0
    %2301 = vmatpush1.bf16.msra.mxu0 0
    %2302 = vmatprep.subr.bf16.mxu0 0
    %2303 = vmatpush1.bf16.msra.mxu0 0
    %2304 = vmatprep.subr.bf16.mxu0 0
    %2305 = vmatpush1.bf16.msra.mxu0 0
    %2306 = vmatprep.subr.bf16.mxu0 0
    %2307 = vmatpush1.bf16.msra.mxu0 0
    %2308 = vmatprep.subr.bf16.mxu0 0
    %2309 = vmatpush1.bf16.msra.mxu0 0
    %2310 = vmatprep.subr.bf16.mxu0 0
    %2311 = vmatpush1.bf16.msra.mxu0 0
    %2312 = vmatprep.subr.bf16.mxu0 0
    %2313 = vmatpush1.bf16.msra.mxu0 0
    %2314 = vmatprep.subr.bf16.mxu0 0
    %2315 = vmatpush1.bf16.msra.mxu0 0
    %2316 = vmatprep.mubr.bf16.mxu0 0
    %2317 = vmatmul.mubr.bf16.gmra.mrb[0].mxu0 %v2283
    %v2318 = vpop.f32.mrb[0].mxu0
    %v2319 = vadd.f32 0.0, %v2318
    %v2320 = vpop.f32.mrb[0].mxu0
    %v2321 = vadd.f32 0.0, %v2320
    %v2322 = vpop.f32.mrb[0].mxu0
    %v2323 = vpop.f32.mrb[0].mxu0
    %2324 = vdwg.mxu0
    %2325 = vmatprep.subr.bf16.mxu0 %v717
    %2326 = vmatpush1.bf16.msra.mxu0 %v716
    %2327 = vmatprep.subr.bf16.mxu0 %v721
    %2328 = vmatpush1.bf16.msra.mxu0 %v720
    %2329 = vmatprep.subr.bf16.mxu0 %v725
    %2330 = vmatpush1.bf16.msra.mxu0 %v724
    %2331 = vmatprep.subr.bf16.mxu0 %v729
    %2332 = vmatpush1.bf16.msra.mxu0 %v728
    %2333 = vmatprep.subr.bf16.mxu0 %v733
    %2334 = vmatpush1.bf16.msra.mxu0 %v732
    %2335 = vmatprep.subr.bf16.mxu0 %v737
    %2336 = vmatpush1.bf16.msra.mxu0 %v736
    %2337 = vmatprep.subr.bf16.mxu0 %v741
    %2338 = vmatpush1.bf16.msra.mxu0 %v740
    %2339 = vmatprep.subr.bf16.mxu0 %v745
    %2340 = vmatpush1.bf16.msra.mxu0 %v744
    %2341 = vmatprep.subr.bf16.mxu0 0
    %2342 = vmatpush1.bf16.msra.mxu0 0
    %2343 = vmatprep.subr.bf16.mxu0 0
    %2344 = vmatpush1.bf16.msra.mxu0 0
    %2345 = vmatprep.subr.bf16.mxu0 0
    %2346 = vmatpush1.bf16.msra.mxu0 0
    %2347 = vmatprep.subr.bf16.mxu0 0
    %2348 = vmatpush1.bf16.msra.mxu0 0
    %2349 = vmatprep.subr.bf16.mxu0 0
    %2350 = vmatpush1.bf16.msra.mxu0 0
    %2351 = vmatprep.subr.bf16.mxu0 0
    %2352 = vmatpush1.bf16.msra.mxu0 0
    %2353 = vmatprep.subr.bf16.mxu0 0
    %2354 = vmatpush1.bf16.msra.mxu0 0
    %2355 = vmatprep.subr.bf16.mxu0 0
    %2356 = vmatpush1.bf16.msra.mxu0 0
    %2357 = vmatprep.mubr.bf16.mxu0 0
    %2358 = vmatmul.mubr.bf16.gmra.mrb[0].mxu0 %v2283
    %v2359 = vpop.f32.mrb[0].mxu0
    %v2360 = vadd.f32 0.0, %v2359
    %v2361 = vpop.f32.mrb[0].mxu0
    %v2362 = vadd.f32 0.0, %v2361
    %v2363 = vpop.f32.mrb[0].mxu0
    %v2364 = vpop.f32.mrb[0].mxu0
    %2365 = vdwg.mxu0
    %v2366 = vadd.f32 %v2279, %v2319
    %v2367 = vadd.f32 %v2280, %v2321
    %v2368 = vadd.f32 %v2281, %v2360
    %v2369 = vadd.f32 %v2282, %v2362
    %v2370 = vxor.u32 %v2366, 2147483648
    %v2371 = vxor.u32 %v2367, 2147483648
    %v2372 = vxor.u32 %v2368, 2147483648
    %v2373 = vmul.f32 %v2370, 1.442695
    %v2374 = vpow.pop %v2373
    %v2375 = vmul.f32 %v2371, 1.442695
    %v2376 = vpow.pop %v2375
    %v2377 = vmul.f32 %v2372, 1.442695
    %v2378 = vpow.pop %v2377
    %v2379 = vadd.f32 %v2374, 1.0
    %v2380 = vadd.f32 %v2376, 1.0
    %v2381 = vadd.f32 %v2378, 1.0
    %v2382 = vrcp.pop %v2379
    %v2383 = vmul.f32 1.0, %v2382
    %v2384 = vrcp.pop %v2380
    %v2385 = vmul.f32 1.0, %v2384
    %v2386 = vrcp.pop %v2381
    %v2387 = vmul.f32 1.0, %v2386
    %v2388 = vtanh.pop %v2369
    %v2389 = vmul.f32 %v2385, %v2277
    %v2390 = vmul.f32 %v2383, %v2388
    %v2391 = vadd.f32 %v2389, %v2390
    %v2392 = vtanh.pop %v2391
    %v2393 = vmul.f32 %v2387, %v2392
    %v2394 = vsel %vm1808, %v2391, %v1690
    %v2395 = vsel %vm1808, %v2393, %v1692
    %v2396 = vld [vmem:[#allocation2 + $0x1c0] sm:$0xff]
    %v2397 = vld [vmem:[#allocation2 + $0x1c8] sm:$0xff]
    %v2398 = vld [vmem:[#allocation2 + $0x1d0] sm:$0xff]
    %v2399 = vld [vmem:[#allocation2 + $0x1d8] sm:$0xff]
    %v2400 = vpack.c.bf16 %v2395, %v2395
    %2401 = vmatprep.subr.bf16.mxu0 %v715
    %2402 = vmatpush1.bf16.msra.mxu0 %v714
    %2403 = vmatprep.subr.bf16.mxu0 %v719
    %2404 = vmatpush1.bf16.msra.mxu0 %v718
    %2405 = vmatprep.subr.bf16.mxu0 %v723
    %2406 = vmatpush1.bf16.msra.mxu0 %v722
    %2407 = vmatprep.subr.bf16.mxu0 %v727
    %2408 = vmatpush1.bf16.msra.mxu0 %v726
    %2409 = vmatprep.subr.bf16.mxu0 %v731
    %2410 = vmatpush1.bf16.msra.mxu0 %v730
    %2411 = vmatprep.subr.bf16.mxu0 %v735
    %2412 = vmatpush1.bf16.msra.mxu0 %v734
    %2413 = vmatprep.subr.bf16.mxu0 %v739
    %2414 = vmatpush1.bf16.msra.mxu0 %v738
    %2415 = vmatprep.subr.bf16.mxu0 %v743
    %2416 = vmatpush1.bf16.msra.mxu0 %v742
    %2417 = vmatprep.subr.bf16.mxu0 0
    %2418 = vmatpush1.bf16.msra.mxu0 0
    %2419 = vmatprep.subr.bf16.mxu0 0
    %2420 = vmatpush1.bf16.msra.mxu0 0
    %2421 = vmatprep.subr.bf16.mxu0 0
    %2422 = vmatpush1.bf16.msra.mxu0 0
    %2423 = vmatprep.subr.bf16.mxu0 0
    %2424 = vmatpush1.bf16.msra.mxu0 0
    %2425 = vmatprep.subr.bf16.mxu0 0
    %2426 = vmatpush1.bf16.msra.mxu0 0
    %2427 = vmatprep.subr.bf16.mxu0 0
    %2428 = vmatpush1.bf16.msra.mxu0 0
    %2429 = vmatprep.subr.bf16.mxu0 0
    %2430 = vmatpush1.bf16.msra.mxu0 0
    %2431 = vmatprep.subr.bf16.mxu0 0
    %2432 = vmatpush1.bf16.msra.mxu0 0
    %2433 = vmatprep.mubr.bf16.mxu0 0
    %2434 = vmatmul.mubr.bf16.gmra.mrb[0].mxu0 %v2400
    %v2435 = vpop.f32.mrb[0].mxu0
    %v2436 = vadd.f32 0.0, %v2435
    %v2437 = vpop.f32.mrb[0].mxu0
    %v2438 = vadd.f32 0.0, %v2437
    %v2439 = vpop.f32.mrb[0].mxu0
    %v2440 = vpop.f32.mrb[0].mxu0
    %2441 = vdwg.mxu0
    %2442 = vmatprep.subr.bf16.mxu0 %v717
    %2443 = vmatpush1.bf16.msra.mxu0 %v716
    %2444 = vmatprep.subr.bf16.mxu0 %v721
    %2445 = vmatpush1.bf16.msra.mxu0 %v720
    %2446 = vmatprep.subr.bf16.mxu0 %v725
    %2447 = vmatpush1.bf16.msra.mxu0 %v724
    %2448 = vmatprep.subr.bf16.mxu0 %v729
    %2449 = vmatpush1.bf16.msra.mxu0 %v728
    %2450 = vmatprep.subr.bf16.mxu0 %v733
    %2451 = vmatpush1.bf16.msra.mxu0 %v732
    %2452 = vmatprep.subr.bf16.mxu0 %v737
    %2453 = vmatpush1.bf16.msra.mxu0 %v736
    %2454 = vmatprep.subr.bf16.mxu0 %v741
    %2455 = vmatpush1.bf16.msra.mxu0 %v740
    %2456 = vmatprep.subr.bf16.mxu0 %v745
    %2457 = vmatpush1.bf16.msra.mxu0 %v744
    %2458 = vmatprep.subr.bf16.mxu0 0
    %2459 = vmatpush1.bf16.msra.mxu0 0
    %2460 = vmatprep.subr.bf16.mxu0 0
    %2461 = vmatpush1.bf16.msra.mxu0 0
    %2462 = vmatprep.subr.bf16.mxu0 0
    %2463 = vmatpush1.bf16.msra.mxu0 0
    %2464 = vmatprep.subr.bf16.mxu0 0
    %2465 = vmatpush1.bf16.msra.mxu0 0
    %2466 = vmatprep.subr.bf16.mxu0 0
    %2467 = vmatpush1.bf16.msra.mxu0 0
    %2468 = vmatprep.subr.bf16.mxu0 0
    %2469 = vmatpush1.bf16.msra.mxu0 0
    %2470 = vmatprep.subr.bf16.mxu0 0
    %2471 = vmatpush1.bf16.msra.mxu0 0
    %2472 = vmatprep.subr.bf16.mxu0 0
    %2473 = vmatpush1.bf16.msra.mxu0 0
    %2474 = vmatprep.mubr.bf16.mxu0 0
    %2475 = vmatmul.mubr.bf16.gmra.mrb[0].mxu0 %v2400
    %v2476 = vpop.f32.mrb[0].mxu0
    %v2477 = vadd.f32 0.0, %v2476
    %v2478 = vpop.f32.mrb[0].mxu0
    %v2479 = vadd.f32 0.0, %v2478
    %v2480 = vpop.f32.mrb[0].mxu0
    %v2481 = vpop.f32.mrb[0].mxu0
    %2482 = vdwg.mxu0
    %v2483 = vadd.f32 %v2396, %v2436
    %v2484 = vadd.f32 %v2397, %v2438
    %v2485 = vadd.f32 %v2398, %v2477
    %v2486 = vadd.f32 %v2399, %v2479
    %v2487 = vxor.u32 %v2483, 2147483648
    %v2488 = vxor.u32 %v2484, 2147483648
    %v2489 = vxor.u32 %v2485, 2147483648
    %v2490 = vmul.f32 %v2487, 1.442695
    %v2491 = vpow.pop %v2490
    %v2492 = vmul.f32 %v2488, 1.442695
    %v2493 = vpow.pop %v2492
    %v2494 = vmul.f32 %v2489, 1.442695
    %v2495 = vpow.pop %v2494
    %v2496 = vadd.f32 %v2491, 1.0
    %v2497 = vadd.f32 %v2493, 1.0
    %v2498 = vadd.f32 %v2495, 1.0
    %v2499 = vrcp.pop %v2496
    %v2500 = vmul.f32 1.0, %v2499
    %v2501 = vrcp.pop %v2497
    %v2502 = vmul.f32 1.0, %v2501
    %v2503 = vrcp.pop %v2498
    %v2504 = vmul.f32 1.0, %v2503
    %v2505 = vtanh.pop %v2486
    %v2506 = vmul.f32 %v2502, %v2394
    %v2507 = vmul.f32 %v2500, %v2505
    %v2508 = vadd.f32 %v2506, %v2507
    %v2509 = vtanh.pop %v2508
    %v2510 = vmul.f32 %v2504, %v2509
    %v2511 = vsel %vm1808, %v2508, %v1690
    %v2512 = vsel %vm1808, %v2510, %v1692
    %v2513 = vld [vmem:[#allocation2 + $0x1e0] sm:$0xff]
    %v2514 = vld [vmem:[#allocation2 + $0x1e8] sm:$0xff]
    %v2515 = vld [vmem:[#allocation2 + $0x1f0] sm:$0xff]
    %v2516 = vld [vmem:[#allocation2 + $0x1f8] sm:$0xff]
    %v2517 = vpack.c.bf16 %v2512, %v2512
    %2518 = vmatprep.subr.bf16.mxu0 %v715
    %2519 = vmatpush1.bf16.msra.mxu0 %v714
    %2520 = vmatprep.subr.bf16.mxu0 %v719
    %2521 = vmatpush1.bf16.msra.mxu0 %v718
    %2522 = vmatprep.subr.bf16.mxu0 %v723
    %2523 = vmatpush1.bf16.msra.mxu0 %v722
    %2524 = vmatprep.subr.bf16.mxu0 %v727
    %2525 = vmatpush1.bf16.msra.mxu0 %v726
    %2526 = vmatprep.subr.bf16.mxu0 %v731
    %2527 = vmatpush1.bf16.msra.mxu0 %v730
    %2528 = vmatprep.subr.bf16.mxu0 %v735
    %2529 = vmatpush1.bf16.msra.mxu0 %v734
    %2530 = vmatprep.subr.bf16.mxu0 %v739
    %2531 = vmatpush1.bf16.msra.mxu0 %v738
    %2532 = vmatprep.subr.bf16.mxu0 %v743
    %2533 = vmatpush1.bf16.msra.mxu0 %v742
    %2534 = vmatprep.subr.bf16.mxu0 0
    %2535 = vmatpush1.bf16.msra.mxu0 0
    %2536 = vmatprep.subr.bf16.mxu0 0
    %2537 = vmatpush1.bf16.msra.mxu0 0
    %2538 = vmatprep.subr.bf16.mxu0 0
    %2539 = vmatpush1.bf16.msra.mxu0 0
    %2540 = vmatprep.subr.bf16.mxu0 0
    %2541 = vmatpush1.bf16.msra.mxu0 0
    %2542 = vmatprep.subr.bf16.mxu0 0
    %2543 = vmatpush1.bf16.msra.mxu0 0
    %2544 = vmatprep.subr.bf16.mxu0 0
    %2545 = vmatpush1.bf16.msra.mxu0 0
    %2546 = vmatprep.subr.bf16.mxu0 0
    %2547 = vmatpush1.bf16.msra.mxu0 0
    %2548 = vmatprep.subr.bf16.mxu0 0
    %2549 = vmatpush1.bf16.msra.mxu0 0
    %2550 = vmatprep.mubr.bf16.mxu0 0
    %2551 = vmatmul.mubr.bf16.gmra.mrb[0].mxu0 %v2517
    %v2552 = vpop.f32.mrb[0].mxu0
    %v2553 = vadd.f32 0.0, %v2552
    %v2554 = vpop.f32.mrb[0].mxu0
    %v2555 = vadd.f32 0.0, %v2554
    %v2556 = vpop.f32.mrb[0].mxu0
    %v2557 = vpop.f32.mrb[0].mxu0
    %2558 = vdwg.mxu0
    %2559 = vmatprep.subr.bf16.mxu0 %v717
    %2560 = vmatpush1.bf16.msra.mxu0 %v716
    %2561 = vmatprep.subr.bf16.mxu0 %v721
    %2562 = vmatpush1.bf16.msra.mxu0 %v720
    %2563 = vmatprep.subr.bf16.mxu0 %v725
    %2564 = vmatpush1.bf16.msra.mxu0 %v724
    %2565 = vmatprep.subr.bf16.mxu0 %v729
    %2566 = vmatpush1.bf16.msra.mxu0 %v728
    %2567 = vmatprep.subr.bf16.mxu0 %v733
    %2568 = vmatpush1.bf16.msra.mxu0 %v732
    %2569 = vmatprep.subr.bf16.mxu0 %v737
    %2570 = vmatpush1.bf16.msra.mxu0 %v736
    %2571 = vmatprep.subr.bf16.mxu0 %v741
    %2572 = vmatpush1.bf16.msra.mxu0 %v740
    %2573 = vmatprep.subr.bf16.mxu0 %v745
    %2574 = vmatpush1.bf16.msra.mxu0 %v744
    %2575 = vmatprep.subr.bf16.mxu0 0
    %2576 = vmatpush1.bf16.msra.mxu0 0
    %2577 = vmatprep.subr.bf16.mxu0 0
    %2578 = vmatpush1.bf16.msra.mxu0 0
    %2579 = vmatprep.subr.bf16.mxu0 0
    %2580 = vmatpush1.bf16.msra.mxu0 0
    %2581 = vmatprep.subr.bf16.mxu0 0
    %2582 = vmatpush1.bf16.msra.mxu0 0
    %2583 = vmatprep.subr.bf16.mxu0 0
    %2584 = vmatpush1.bf16.msra.mxu0 0
    %2585 = vmatprep.subr.bf16.mxu0 0
    %2586 = vmatpush1.bf16.msra.mxu0 0
    %2587 = vmatprep.subr.bf16.mxu0 0
    %2588 = vmatpush1.bf16.msra.mxu0 0
    %2589 = vmatprep.subr.bf16.mxu0 0
    %2590 = vmatpush1.bf16.msra.mxu0 0
    %2591 = vmatprep.mubr.bf16.mxu0 0
    %2592 = vmatmul.mubr.bf16.gmra.mrb[0].mxu0 %v2517
    %v2593 = vpop.f32.mrb[0].mxu0
    %v2594 = vadd.f32 0.0, %v2593
    %v2595 = vpop.f32.mrb[0].mxu0
    %v2596 = vadd.f32 0.0, %v2595
    %v2597 = vpop.f32.mrb[0].mxu0
    %v2598 = vpop.f32.mrb[0].mxu0
    %2599 = vdwg.mxu0
    %v2600 = vadd.f32 %v2513, %v2553
    %v2601 = vadd.f32 %v2514, %v2555
    %v2602 = vadd.f32 %v2515, %v2594
    %v2603 = vadd.f32 %v2516, %v2596
    %v2604 = vxor.u32 %v2600, 2147483648
    %v2605 = vxor.u32 %v2601, 2147483648
    %v2606 = vxor.u32 %v2602, 2147483648
    %v2607 = vmul.f32 %v2604, 1.442695
    %v2608 = vpow.pop %v2607
    %v2609 = vmul.f32 %v2605, 1.442695
    %v2610 = vpow.pop %v2609
    %v2611 = vmul.f32 %v2606, 1.442695
    %v2612 = vpow.pop %v2611
    %v2613 = vadd.f32 %v2608, 1.0
    %v2614 = vadd.f32 %v2610, 1.0
    %v2615 = vadd.f32 %v2612, 1.0
    %v2616 = vrcp.pop %v2613
    %v2617 = vmul.f32 1.0, %v2616
    %v2618 = vrcp.pop %v2614
    %v2619 = vmul.f32 1.0, %v2618
    %v2620 = vrcp.pop %v2615
    %v2621 = vmul.f32 1.0, %v2620
    %v2622 = vtanh.pop %v2603
    %v2623 = vmul.f32 %v2619, %v2511
    %v2624 = vmul.f32 %v2617, %v2622
    %v2625 = vadd.f32 %v2623, %v2624
    %v2626 = vtanh.pop %v2625
    %v2627 = vmul.f32 %v2621, %v2626
    %v2628 = vsel %vm1808, %v2627, %v1692
    %2629 = vst [vmem:[#allocation6] sm:$0x3] %v2628
    // Predicated region
    $region18: #{four_directional_lstm.1} parent=1 // pred_check
      _
    $region19: #{four_directional_lstm.1} parent=1 // pred_check_branch
      %2631 = sbr.rel (0) target = $region21
    $region20: #{four_directional_lstm.1} parent=1 // pred_region
      %s2633 = ssub.s32 32, 32
      %2634 = vsyncadd [#allocation5], %s2633
      %s2636 = sshll.u32 [#allocation6], 4
      %s2637 = int_to_ptr.vmem [resolvable:$true] %s2636
      %2639 = dma.vmem_to_hbm [thread:$0]  %s2637, 32, %s3, [#allocation5]
    $region21: #{four_directional_lstm.1} parent=1 // pred_fallthru
      _
    // Predicated region
    $region22: #{four_directional_lstm.1} parent=1 // pred_check
      _
    $region23: #{four_directional_lstm.1} parent=1 // pred_check_branch
      %2641 = sbr.rel (0) target = $region25
    $region24: #{four_directional_lstm.1} parent=1 // pred_region
      %2642 = dma.done [#allocation5], 32
    $region25: #{four_directional_lstm.1} parent=1 // pred_fallthru
      _
    %2643 = vsyncpa [#allocation4], 1
    %2644 = vsyncpa [#allocation5], 1

</llo_original>
